<compile_context>
chip_gen: v6e
topology: v6e:2x2x1
jax: 0.10.0
libtpu: 0.0.40
codegen_flags: <defaults>
</compile_context>

<pallas_src>
import functools

import jax
import jax.numpy as jnp
from jax import lax
from jax.experimental import pallas as pl
from jax.experimental.pallas import tpu as pltpu


# Scoped VMEM limit: plenty on v5e/v6e (128 MiB) and still leaves headroom on
# v7x (64 MiB physical); block sizes below are capped well under this.
_VMEM_LIMIT_BYTES = 48 * 1024 * 1024
# Per grouped-input block budget (double-buffered by the pipeliner).
_BLOCK_BUDGET_BYTES = 4 * 1024 * 1024


# ---------------------------------------------------------------------------
# Pallas kernels
# ---------------------------------------------------------------------------

def _mlp1_kernel(g_ref, w1, b1, w2, b2, w3, b3, out_ref, *, k):
    """SharedMLP #1 (3x Conv2d1x1+BN+ReLU) + max-pool over the k neighbors.

    g_ref:  (1, tile_s*k, c0)  bf16  (pre-flattened grouped features)
    out:    (1, tile_s, c_out) f32
    """
    x = g_ref[0]                                                     # [t*k, c0] bf16
    h = jnp.maximum(jnp.dot(x, w1[...], preferred_element_type=jnp.float32) + b1[...], 0.0)
    h = jnp.maximum(jnp.dot(h.astype(jnp.bfloat16), w2[...],
                            preferred_element_type=jnp.float32) + b2[...], 0.0)
    h = jnp.maximum(jnp.dot(h.astype(jnp.bfloat16), w3[...],
                            preferred_element_type=jnp.float32) + b3[...], 0.0)
    t = h.shape[0] // k
    out_ref[0] = jnp.max(h.reshape(t, k, h.shape[-1]), axis=1)       # neighbor max-pool


def _mlp23_kernel(g_ref, id_ref, wq, bq, w4, b4, w5, b5, out_ref, *, k):
    """Fused SharedMLP #2 (Conv2d1x1+BN, no act) + neighbor max-pool
    + mlp_module3 (Conv1d+BN+ReLU, Conv1d+BN) + skip connection + ReLU.

    g_ref:  (1, tile_s*k, c0)   bf16
    id_ref: (1, tile_s, c_out)  f32   (identity from stage 1)
    out:    (1, c_out, tile_s)  f32   (channels-first, lane-dense store)
    """
    x = g_ref[0]                                                     # [t*k, c0] bf16
    h = jnp.dot(x, wq[...], preferred_element_type=jnp.float32) + bq[...]
    t = h.shape[0] // k
    pooled = jnp.max(h.reshape(t, k, h.shape[-1]), axis=1)           # [t, c_mid] f32
    h4 = jnp.maximum(jnp.dot(pooled.astype(jnp.bfloat16), w4[...],
                             preferred_element_type=jnp.float32) + b4[...], 0.0)
    y = jnp.dot(h4.astype(jnp.bfloat16), w5[...],
                preferred_element_type=jnp.float32) + b5[...]
    y = jnp.maximum(y + id_ref[0], 0.0)                              # skip + ReLU
    out_ref[0] = y.T                                                 # [c_out, t]


def _const_spec(shape):
    nd = len(shape)
    return pl.BlockSpec(shape, lambda b, i: (0,) * nd)


def _pick_tile(n_sample, rows_per_item, bytes_per_row, *, lane_mult,
               budget_bytes=_BLOCK_BUDGET_BYTES, min_steps=1):
    """Largest divisor of n_sample whose grouped block fits the VMEM budget.

    lane_mult: alignment required on the tile itself (8 when the tile lands
    on the sublane axis of the output, 128 when it lands on the lane axis).
    min_steps: keep at least this many grid steps along the sample axis
    (so both v7x TensorCores get work even when batch == 1).
    """
    cands = [d for d in range(1, n_sample + 1)
             if n_sample % d == 0 and (d % lane_mult == 0 or d == n_sample)]
    pref = [d for d in cands if n_sample // d >= min_steps] or cands
    within = [d for d in pref if d * rows_per_item * bytes_per_row <= budget_bytes]
    return max(within) if within else min(pref)


def run_mlp1(g1, w1, b1, w2, b2, w3, b3, *, n_sample, k, tile_s):
    """g1: [B, n_sample*k, c0] bf16 -> [B, n_sample, c_out] f32."""
    B, _, c0 = g1.shape
    c_out = w3.shape[1]
    assert n_sample % tile_s == 0
    return pl.pallas_call(
        functools.partial(_mlp1_kernel, k=k),
        out_shape=jax.ShapeDtypeStruct((B, n_sample, c_out), jnp.float32),
        grid=(B, n_sample // tile_s),
        in_specs=[
            pl.BlockSpec((1, tile_s * k, c0), lambda b, i: (b, i, 0)),
            _const_spec(w1.shape), _const_spec(b1.shape),
            _const_spec(w2.shape), _const_spec(b2.shape),
            _const_spec(w3.shape), _const_spec(b3.shape),
        ],
        out_specs=pl.BlockSpec((1, tile_s, c_out), lambda b, i: (b, i, 0)),
        compiler_params=pltpu.CompilerParams(
            dimension_semantics=("parallel", "parallel"),
            vmem_limit_bytes=_VMEM_LIMIT_BYTES),
    )(g1, w1, b1, w2, b2, w3, b3)


def run_mlp23(g2, identity, wq, bq, w4, b4, w5, b5, *, n_sample, k, tile_s):
    """Fused stage 2 + stage 3.

    g2:       [B, n_sample*k, c0] bf16
    identity: [B, n_sample, c_out] f32
    returns   [B, c_out, n_sample] f32 (already channels-first)
    """
    B, _, c0 = g2.shape
    c_out = w5.shape[1]
    assert n_sample % tile_s == 0
    return pl.pallas_call(
        functools.partial(_mlp23_kernel, k=k),
        out_shape=jax.ShapeDtypeStruct((B, c_out, n_sample), jnp.float32),
        grid=(B, n_sample // tile_s),
        in_specs=[
            pl.BlockSpec((1, tile_s * k, c0), lambda b, i: (b, i, 0)),
            pl.BlockSpec((1, tile_s, c_out), lambda b, i: (b, i, 0)),
            _const_spec(wq.shape), _const_spec(bq.shape),
            _const_spec(w4.shape), _const_spec(b4.shape),
            _const_spec(w5.shape), _const_spec(b5.shape),
        ],
        out_specs=pl.BlockSpec((1, c_out, tile_s), lambda b, i: (b, 0, i)),
        compiler_params=pltpu.CompilerParams(
            dimension_semantics=("parallel", "parallel"),
            vmem_limit_bytes=_VMEM_LIMIT_BYTES),
    )(g2, identity, wq, bq, w4, b4, w5, b5)


# ---------------------------------------------------------------------------
# Plain-JAX glue: FPS, ball query, gathers, parameter folding
# ---------------------------------------------------------------------------

def furthest_point_sample(xyz, n_sample):
    """Matches pointnet2 CUDA FPS: first index 0, iterative farthest point."""
    n = xyz.shape[1]

    def per_batch(pts):
        def body(i, carry):
            dists, inds = carry
            last = pts[inds[i - 1]]
            d = jnp.sum((pts - last[None, :]) ** 2, axis=-1)
            dists = jnp.minimum(dists, d)
            nxt = jnp.argmax(dists).astype(jnp.int32)
            return dists, inds.at[i].set(nxt)

        dists0 = jnp.full((n,), 1e10, dtype=pts.dtype)
        inds0 = jnp.zeros((n_sample,), dtype=jnp.int32)
        _, inds = lax.fori_loop(1, n_sample, body, (dists0, inds0))
        return inds

    return jax.vmap(per_batch)(xyz)


def ball_query(radius, nsample, xyz, new_xyz):
    """Matches pointnet2 CUDA ball_query: first `nsample` in-radius points in
    index order; missing slots filled with the first in-radius index.
    TODO(synk): queries with ZERO in-radius neighbors fall back to index 0
    (an out-of-radius point), which may differ from the CUDA kernel's
    behavior for empty balls."""
    n = xyz.shape[1]
    d2 = jnp.sum((new_xyz[:, :, None, :] - xyz[:, None, :, :]) ** 2, axis=-1)  # [B,S,N]
    in_r = d2 < radius * radius
    idx = jnp.arange(n, dtype=jnp.int32)
    key = jnp.where(in_r, idx, n + idx)                      # in-radius first, by index
    order = jnp.argsort(key, axis=-1)[..., :nsample].astype(jnp.int32)  # [B,S,nsample]
    valid = jnp.take_along_axis(in_r, order, axis=-1)
    first = jnp.where(valid[..., :1], order[..., :1], 0)
    return jnp.where(valid, order, first)


def fold_bn(w, b, gamma, beta, mean, var, eps=1e-5):
    """Fold eval-mode BatchNorm into the (channels-last) conv weight/bias.
    Weight -> bf16 for the MXU, bias stays f32 (accumulated/added in f32)."""
    scale = gamma / jnp.sqrt(var + eps)
    w_eff = (w * scale[None, :]).astype(jnp.bfloat16)
    b_eff = ((b - mean) * scale + beta).astype(jnp.float32)[None, :]
    return w_eff, b_eff


def init_conv_bn(key, c_in, c_out):
    k1, k2, k3, k4, k5 = jax.random.split(key, 5)
    w = jax.random.normal(k1, (c_in, c_out), jnp.float32) / jnp.sqrt(float(c_in))
    b = jnp.zeros((c_out,), jnp.float32)   # conv bias disabled when bn=True
    gamma = 1.0 + 0.1 * jax.random.normal(k2, (c_out,), jnp.float32)
    beta = 0.1 * jax.random.normal(k3, (c_out,), jnp.float32)
    mean = 0.1 * jax.random.normal(k4, (c_out,), jnp.float32)
    var = 1.0 + 0.5 * jax.random.uniform(k5, (c_out,), jnp.float32)
    return fold_bn(w, b, gamma, beta, mean, var)


def init_params(key, mlp_dim):
    ks = jax.random.split(key, 6)
    c0 = mlp_dim + 3 + 3
    params = {
        "mlp1": (*init_conv_bn(ks[0], c0, mlp_dim),
                 *init_conv_bn(ks[1], mlp_dim, mlp_dim),
                 *init_conv_bn(ks[2], mlp_dim, mlp_dim * 2)),
        "mlp2": init_conv_bn(ks[3], mlp_dim * 2 + 6, mlp_dim * 2),
        "mlp3": (*init_conv_bn(ks[4], mlp_dim * 2, mlp_dim * 2 * 4),
                 *init_conv_bn(ks[5], mlp_dim * 2 * 4, mlp_dim * 2)),
    }
    return params


def local_aggregator_forward(locs, feats, boxes, params, *,
                             n_sample, radius, n_neighbor, n_neighbor_post):
    """forward_batch: locs [B,N,3], feats [B,Cf,N], boxes [B,N,6]."""
    B, N, _ = locs.shape
    dim_boxes = boxes[..., 3:] - boxes[..., :3]
    feats_nlc = jnp.transpose(feats, (0, 2, 1))                       # [B,N,Cf]

    fps_inds = furthest_point_sample(locs, n_sample)                  # [B,S]
    fps_locs = jnp.take_along_axis(locs, fps_inds[..., None], axis=1)         # [B,S,3]
    fps_dim_boxes = jnp.take_along_axis(dim_boxes, fps_inds[..., None], axis=1)
    fps_boxes = jnp.take_along_axis(boxes, fps_inds[..., None], axis=1)

    def gather(src, inds):   # src [B,N,C], inds [B,M] -> [B,M,C]
        return jnp.take_along_axis(src, inds[..., None], axis=1)

    # ---- stage 1: group around fps points, SharedMLP1 + max-pool (Pallas) ----
    # TODO(synk): at realistic ISBNet sizes the neighbor gather itself could be
    # moved in-kernel via PrefetchScalarGridSpec + DMA; done in XLA here.
    nb = ball_query(radius, n_neighbor, locs, fps_locs).reshape(B, -1)
    g_xyz = gather(locs, nb).reshape(B, n_sample, n_neighbor, 3)
    g_xyz = (g_xyz - fps_locs[:, :, None, :]) / radius
    g_dim = gather(dim_boxes, nb).reshape(B, n_sample, n_neighbor, 3)
    g_dim = jnp.abs(g_dim - fps_dim_boxes[:, :, None, :])
    g_feat = gather(feats_nlc, nb).reshape(B, n_sample, n_neighbor, -1)
    g1 = jnp.concatenate([g_xyz, g_dim, g_feat], axis=-1)             # [B,S,K,c0]
    c0_1 = g1.shape[-1]
    g1 = g1.reshape(B, n_sample * n_neighbor, c0_1).astype(jnp.bfloat16)

    min_steps = 1 if B >= 2 else 2
    tile1 = _pick_tile(n_sample, n_neighbor, c0_1 * 2, lane_mult=8,
                       min_steps=min_steps)
    new_feat = run_mlp1(g1, *params["mlp1"],
                        n_sample=n_sample, k=n_neighbor, tile_s=tile1)  # [B,S,2m] f32
    identity = new_feat

    # ---- stage 2+3 fused: group fps points, SharedMLP2 + max-pool,
    #      Conv1d bottleneck, skip + ReLU (one Pallas call) ----
    r2 = 2.0 * radius
    nb2 = ball_query(r2, n_neighbor_post, fps_locs, fps_locs).reshape(B, -1)
    g_xyz2 = gather(fps_locs, nb2).reshape(B, n_sample, n_neighbor_post, 3)
    g_xyz2 = (g_xyz2 - fps_locs[:, :, None, :]) / r2
    g_dim2 = gather(fps_dim_boxes, nb2).reshape(B, n_sample, n_neighbor_post, 3)
    g_dim2 = jnp.abs(g_dim2 - fps_dim_boxes[:, :, None, :])
    g_feat2 = gather(new_feat, nb2).reshape(B, n_sample, n_neighbor_post, -1)
    g2 = jnp.concatenate([g_xyz2, g_dim2, g_feat2], axis=-1)          # [B,S,K2,c0_2]
    c0_2 = g2.shape[-1]
    g2 = g2.reshape(B, n_sample * n_neighbor_post, c0_2).astype(jnp.bfloat16)

    tile2 = _pick_tile(n_sample, n_neighbor_post, c0_2 * 2, lane_mult=128,
                       min_steps=min_steps)
    feats_out = run_mlp23(g2, identity, *params["mlp2"], *params["mlp3"],
                          n_sample=n_sample, k=n_neighbor_post, tile_s=tile2)
    # feats_out already [B, 2m, S] (channels-first), no wrapper transpose.

    return fps_locs, feats_out, fps_boxes, fps_inds


# ---------------------------------------------------------------------------
# Demo
# ---------------------------------------------------------------------------

if __name__ == "__main__":
    B, N = 2, 64
    mlp_dim = 16
    n_sample, n_neighbor, n_neighbor_post = 32, 16, 16
    radius = 0.4

    key = jax.random.PRNGKey(0)
    k_locs, k_feats, k_sizes, k_params = jax.random.split(key, 4)

    locs = jax.random.uniform(k_locs, (B, N, 3), jnp.float32)          # points in [0,1]^3
    feats = jax.random.normal(k_feats, (B, mlp_dim, N), jnp.float32)   # channels-first, like PyTorch
    sizes = jax.random.uniform(k_sizes, (B, N, 3), jnp.float32, 0.05, 0.3)
    boxes = jnp.concatenate([locs - sizes / 2.0, locs + sizes / 2.0], axis=-1)  # [B,N,6]

    params = init_params(k_params, mlp_dim)

    fwd = jax.jit(functools.partial(
        local_aggregator_forward,
        n_sample=n_sample, radius=radius,
        n_neighbor=n_neighbor, n_neighbor_post=n_neighbor_post))

    fps_locs, feats_out, fps_boxes, fps_inds = fwd(locs, feats, boxes, params)
    jax.block_until_ready((fps_locs, feats_out, fps_boxes, fps_inds))

    assert fps_locs.shape == (B, n_sample, 3)
    assert feats_out.shape == (B, 2 * mlp_dim, n_sample)
    assert fps_boxes.shape == (B, n_sample, 6)
    assert fps_inds.shape == (B, n_sample)
    assert bool(jnp.all(jnp.isfinite(feats_out)))
    print("KERNEL_OK")
</pallas_src>

<mosaic_0001>
module attributes {stable_mosaic.version = 11 : i64} {
  func.func @_mlp1_kernel(%arg0: i32, %arg1: i32, %arg2: memref<1x512x22xbf16, #tpu.memory_space<vmem>>, %arg3: memref<22x16xbf16, #tpu.memory_space<vmem>>, %arg4: memref<1x16xf32, #tpu.memory_space<vmem>>, %arg5: memref<16x16xbf16, #tpu.memory_space<vmem>>, %arg6: memref<1x16xf32, #tpu.memory_space<vmem>>, %arg7: memref<16x32xbf16, #tpu.memory_space<vmem>>, %arg8: memref<1x32xf32, #tpu.memory_space<vmem>>, %arg9: memref<1x32x32xf32, #tpu.memory_space<vmem>>) attributes {dimension_semantics = [#tpu.dimension_semantics<parallel>, #tpu.dimension_semantics<parallel>], iteration_bounds = array<i64: 2, 1>, scalar_prefetch = 0 : i64, scratch_operands = 0 : i64, tpu.core_type = #tpu.core_type<tc>, window_params = [{transform_indices = @transform_0, window_bounds = array<i64: 1, 512, 22>}, {pipeline_mode = #tpu.pipeline_mode<synchronous>, transform_indices = @transform_1, window_bounds = array<i64: 22, 16>}, {pipeline_mode = #tpu.pipeline_mode<synchronous>, transform_indices = @transform_2, window_bounds = array<i64: 1, 16>}, {pipeline_mode = #tpu.pipeline_mode<synchronous>, transform_indices = @transform_3, window_bounds = array<i64: 16, 16>}, {pipeline_mode = #tpu.pipeline_mode<synchronous>, transform_indices = @transform_4, window_bounds = array<i64: 1, 16>}, {pipeline_mode = #tpu.pipeline_mode<synchronous>, transform_indices = @transform_5, window_bounds = array<i64: 16, 32>}, {pipeline_mode = #tpu.pipeline_mode<synchronous>, transform_indices = @transform_6, window_bounds = array<i64: 1, 32>}, {transform_indices = @transform_7, window_bounds = array<i64: 1, 32, 32>}]} {
    %c0 = arith.constant 0 : index
    %c0_0 = arith.constant 0 : index
    %c0_1 = arith.constant 0 : index
    %0 = vector.load %arg2[%c0, %c0_0, %c0_1] : memref<1x512x22xbf16, #tpu.memory_space<vmem>>, vector<1x512x22xbf16>
    %1 = vector.shape_cast %0 : vector<1x512x22xbf16> to vector<512x22xbf16>
    %c0_2 = arith.constant 0 : index
    %c0_3 = arith.constant 0 : index
    %2 = vector.load %arg3[%c0_2, %c0_3] : memref<22x16xbf16, #tpu.memory_space<vmem>>, vector<22x16xbf16>
    %cst = arith.constant dense<0.000000e+00> : vector<512x16xf32>
    %3 = tpu.matmul %1, %2, %cst {dimension_numbers = #tpu.dot_dimension_numbers<[1], [0], [0], [1], [0, 0, 1, 1], [], []>} : vector<512x22xbf16>, vector<22x16xbf16>, vector<512x16xf32> -> vector<512x16xf32>
    %c0_4 = arith.constant 0 : index
    %c0_5 = arith.constant 0 : index
    %4 = vector.load %arg4[%c0_4, %c0_5] : memref<1x16xf32, #tpu.memory_space<vmem>>, vector<1x16xf32>
    %5 = vector.broadcast %4 : vector<1x16xf32> to vector<512x16xf32>
    %6 = arith.addf %3, %5 : vector<512x16xf32>
    %cst_6 = arith.constant 0.000000e+00 : f32
    %7 = vector.broadcast %cst_6 : f32 to vector<512x16xf32>
    %8 = arith.maximumf %6, %7 : vector<512x16xf32>
    %9 = arith.truncf %8 : vector<512x16xf32> to vector<512x16xbf16>
    %c0_7 = arith.constant 0 : index
    %c0_8 = arith.constant 0 : index
    %10 = vector.load %arg5[%c0_7, %c0_8] : memref<16x16xbf16, #tpu.memory_space<vmem>>, vector<16x16xbf16>
    %cst_9 = arith.constant dense<0.000000e+00> : vector<512x16xf32>
    %11 = tpu.matmul %9, %10, %cst_9 {dimension_numbers = #tpu.dot_dimension_numbers<[1], [0], [0], [1], [0, 0, 1, 1], [], []>} : vector<512x16xbf16>, vector<16x16xbf16>, vector<512x16xf32> -> vector<512x16xf32>
    %c0_10 = arith.constant 0 : index
    %c0_11 = arith.constant 0 : index
    %12 = vector.load %arg6[%c0_10, %c0_11] : memref<1x16xf32, #tpu.memory_space<vmem>>, vector<1x16xf32>
    %13 = vector.broadcast %12 : vector<1x16xf32> to vector<512x16xf32>
    %14 = arith.addf %11, %13 : vector<512x16xf32>
    %cst_12 = arith.constant 0.000000e+00 : f32
    %15 = vector.broadcast %cst_12 : f32 to vector<512x16xf32>
    %16 = arith.maximumf %14, %15 : vector<512x16xf32>
    %17 = arith.truncf %16 : vector<512x16xf32> to vector<512x16xbf16>
    %c0_13 = arith.constant 0 : index
    %c0_14 = arith.constant 0 : index
    %18 = vector.load %arg7[%c0_13, %c0_14] : memref<16x32xbf16, #tpu.memory_space<vmem>>, vector<16x32xbf16>
    %cst_15 = arith.constant dense<0.000000e+00> : vector<512x32xf32>
    %19 = tpu.matmul %17, %18, %cst_15 {dimension_numbers = #tpu.dot_dimension_numbers<[1], [0], [0], [1], [0, 0, 1, 1], [], []>} : vector<512x16xbf16>, vector<16x32xbf16>, vector<512x32xf32> -> vector<512x32xf32>
    %c0_16 = arith.constant 0 : index
    %c0_17 = arith.constant 0 : index
    %20 = vector.load %arg8[%c0_16, %c0_17] : memref<1x32xf32, #tpu.memory_space<vmem>>, vector<1x32xf32>
    %21 = vector.broadcast %20 : vector<1x32xf32> to vector<512x32xf32>
    %22 = arith.addf %19, %21 : vector<512x32xf32>
    %cst_18 = arith.constant 0.000000e+00 : f32
    %23 = vector.broadcast %cst_18 : f32 to vector<512x32xf32>
    %24 = arith.maximumf %22, %23 : vector<512x32xf32>
    %25 = vector.shape_cast %24 : vector<512x32xf32> to vector<32x16x32xf32>
    %cst_19 = arith.constant dense<0xFF800000> : vector<32x32xf32>
    %26 = vector.multi_reduction <maximumf>, %25, %cst_19 [1] : vector<32x16x32xf32> to vector<32x32xf32>
    %c0_20 = arith.constant 0 : index
    %c0_21 = arith.constant 0 : index
    %c0_22 = arith.constant 0 : index
    %27 = vector.load %arg9[%c0_20, %c0_21, %c0_22] : memref<1x32x32xf32, #tpu.memory_space<vmem>>, vector<1x32x32xf32>
    %28 = vector.shape_cast %27 : vector<1x32x32xf32> to vector<32x32xf32>
    %29 = vector.shape_cast %26 : vector<32x32xf32> to vector<1x32x32xf32>
    tpu.vector_store %arg9[%c0_20, %c0_21, %c0_22], %29 {strides = array<i32>} : memref<1x32x32xf32, #tpu.memory_space<vmem>>, vector<1x32x32xf32>,
    return
  }
  func.func @transform_0(%arg0: i32, %arg1: i32) -> (i32, i32, i32) {
    %c0_i32 = arith.constant 0 : i32
    %c0_i32_0 = arith.constant 0 : i32
    return %arg0, %arg1, %c0_i32 : i32, i32, i32
  }
  func.func @transform_1(%arg0: i32, %arg1: i32) -> (i32, i32) {
    %c0_i32 = arith.constant 0 : i32
    %c0_i32_0 = arith.constant 0 : i32
    %c0_i32_1 = arith.constant 0 : i32
    return %c0_i32, %c0_i32_0 : i32, i32
  }
  func.func @transform_2(%arg0: i32, %arg1: i32) -> (i32, i32) {
    %c0_i32 = arith.constant 0 : i32
    %c0_i32_0 = arith.constant 0 : i32
    %c0_i32_1 = arith.constant 0 : i32
    return %c0_i32, %c0_i32_0 : i32, i32
  }
  func.func @transform_3(%arg0: i32, %arg1: i32) -> (i32, i32) {
    %c0_i32 = arith.constant 0 : i32
    %c0_i32_0 = arith.constant 0 : i32
    %c0_i32_1 = arith.constant 0 : i32
    return %c0_i32, %c0_i32_0 : i32, i32
  }
  func.func @transform_4(%arg0: i32, %arg1: i32) -> (i32, i32) {
    %c0_i32 = arith.constant 0 : i32
    %c0_i32_0 = arith.constant 0 : i32
    %c0_i32_1 = arith.constant 0 : i32
    return %c0_i32, %c0_i32_0 : i32, i32
  }
  func.func @transform_5(%arg0: i32, %arg1: i32) -> (i32, i32) {
    %c0_i32 = arith.constant 0 : i32
    %c0_i32_0 = arith.constant 0 : i32
    %c0_i32_1 = arith.constant 0 : i32
    return %c0_i32, %c0_i32_0 : i32, i32
  }
  func.func @transform_6(%arg0: i32, %arg1: i32) -> (i32, i32) {
    %c0_i32 = arith.constant 0 : i32
    %c0_i32_0 = arith.constant 0 : i32
    %c0_i32_1 = arith.constant 0 : i32
    return %c0_i32, %c0_i32_0 : i32, i32
  }
  func.func @transform_7(%arg0: i32, %arg1: i32) -> (i32, i32, i32) {
    %c0_i32 = arith.constant 0 : i32
    %c0_i32_0 = arith.constant 0 : i32
    return %arg0, %arg1, %c0_i32 : i32, i32, i32
  }
}

module attributes {stable_mosaic.version = 11 : i64} {
  func.func @_mlp23_kernel(%arg0: i32, %arg1: i32, %arg2: memref<1x512x38xbf16, #tpu.memory_space<vmem>>, %arg3: memref<1x32x32xf32, #tpu.memory_space<vmem>>, %arg4: memref<38x32xbf16, #tpu.memory_space<vmem>>, %arg5: memref<1x32xf32, #tpu.memory_space<vmem>>, %arg6: memref<32x128xbf16, #tpu.memory_space<vmem>>, %arg7: memref<1x128xf32, #tpu.memory_space<vmem>>, %arg8: memref<128x32xbf16, #tpu.memory_space<vmem>>, %arg9: memref<1x32xf32, #tpu.memory_space<vmem>>, %arg10: memref<1x32x32xf32, #tpu.memory_space<vmem>>) attributes {dimension_semantics = [#tpu.dimension_semantics<parallel>, #tpu.dimension_semantics<parallel>], iteration_bounds = array<i64: 2, 1>, scalar_prefetch = 0 : i64, scratch_operands = 0 : i64, tpu.core_type = #tpu.core_type<tc>, window_params = [{transform_indices = @transform_0, window_bounds = array<i64: 1, 512, 38>}, {transform_indices = @transform_1, window_bounds = array<i64: 1, 32, 32>}, {pipeline_mode = #tpu.pipeline_mode<synchronous>, transform_indices = @transform_2, window_bounds = array<i64: 38, 32>}, {pipeline_mode = #tpu.pipeline_mode<synchronous>, transform_indices = @transform_3, window_bounds = array<i64: 1, 32>}, {pipeline_mode = #tpu.pipeline_mode<synchronous>, transform_indices = @transform_4, window_bounds = array<i64: 32, 128>}, {pipeline_mode = #tpu.pipeline_mode<synchronous>, transform_indices = @transform_5, window_bounds = array<i64: 1, 128>}, {pipeline_mode = #tpu.pipeline_mode<synchronous>, transform_indices = @transform_6, window_bounds = array<i64: 128, 32>}, {pipeline_mode = #tpu.pipeline_mode<synchronous>, transform_indices = @transform_7, window_bounds = array<i64: 1, 32>}, {transform_indices = @transform_8, window_bounds = array<i64: 1, 32, 32>}]} {
    %c0 = arith.constant 0 : index
    %c0_0 = arith.constant 0 : index
    %c0_1 = arith.constant 0 : index
    %0 = vector.load %arg2[%c0, %c0_0, %c0_1] : memref<1x512x38xbf16, #tpu.memory_space<vmem>>, vector<1x512x38xbf16>
    %1 = vector.shape_cast %0 : vector<1x512x38xbf16> to vector<512x38xbf16>
    %c0_2 = arith.constant 0 : index
    %c0_3 = arith.constant 0 : index
    %2 = vector.load %arg4[%c0_2, %c0_3] : memref<38x32xbf16, #tpu.memory_space<vmem>>, vector<38x32xbf16>
    %cst = arith.constant dense<0.000000e+00> : vector<512x32xf32>
    %3 = tpu.matmul %1, %2, %cst {dimension_numbers = #tpu.dot_dimension_numbers<[1], [0], [0], [1], [0, 0, 1, 1], [], []>} : vector<512x38xbf16>, vector<38x32xbf16>, vector<512x32xf32> -> vector<512x32xf32>
    %c0_4 = arith.constant 0 : index
    %c0_5 = arith.constant 0 : index
    %4 = vector.load %arg5[%c0_4, %c0_5] : memref<1x32xf32, #tpu.memory_space<vmem>>, vector<1x32xf32>
    %5 = vector.broadcast %4 : vector<1x32xf32> to vector<512x32xf32>
    %6 = arith.addf %3, %5 : vector<512x32xf32>
    %7 = vector.shape_cast %6 : vector<512x32xf32> to vector<32x16x32xf32>
    %cst_6 = arith.constant dense<0xFF800000> : vector<32x32xf32>
    %8 = vector.multi_reduction <maximumf>, %7, %cst_6 [1] : vector<32x16x32xf32> to vector<32x32xf32>
    %9 = arith.truncf %8 : vector<32x32xf32> to vector<32x32xbf16>
    %c0_7 = arith.constant 0 : index
    %c0_8 = arith.constant 0 : index
    %10 = vector.load %arg6[%c0_7, %c0_8] : memref<32x128xbf16, #tpu.memory_space<vmem>>, vector<32x128xbf16>
    %cst_9 = arith.constant dense<0.000000e+00> : vector<32x128xf32>
    %11 = tpu.matmul %9, %10, %cst_9 {dimension_numbers = #tpu.dot_dimension_numbers<[1], [0], [0], [1], [0, 0, 1, 1], [], []>} : vector<32x32xbf16>, vector<32x128xbf16>, vector<32x128xf32> -> vector<32x128xf32>
    %c0_10 = arith.constant 0 : index
    %c0_11 = arith.constant 0 : index
    %12 = vector.load %arg7[%c0_10, %c0_11] : memref<1x128xf32, #tpu.memory_space<vmem>>, vector<1x128xf32>
    %13 = vector.broadcast %12 : vector<1x128xf32> to vector<32x128xf32>
    %14 = arith.addf %11, %13 : vector<32x128xf32>
    %cst_12 = arith.constant 0.000000e+00 : f32
    %15 = vector.broadcast %cst_12 : f32 to vector<32x128xf32>
    %16 = arith.maximumf %14, %15 : vector<32x128xf32>
    %17 = arith.truncf %16 : vector<32x128xf32> to vector<32x128xbf16>
    %c0_13 = arith.constant 0 : index
    %c0_14 = arith.constant 0 : index
    %18 = vector.load %arg8[%c0_13, %c0_14] : memref<128x32xbf16, #tpu.memory_space<vmem>>, vector<128x32xbf16>
    %cst_15 = arith.constant dense<0.000000e+00> : vector<32x32xf32>
    %19 = tpu.matmul %17, %18, %cst_15 {dimension_numbers = #tpu.dot_dimension_numbers<[1], [0], [0], [1], [0, 0, 1, 1], [], []>} : vector<32x128xbf16>, vector<128x32xbf16>, vector<32x32xf32> -> vector<32x32xf32>
    %c0_16 = arith.constant 0 : index
    %c0_17 = arith.constant 0 : index
    %20 = vector.load %arg9[%c0_16, %c0_17] : memref<1x32xf32, #tpu.memory_space<vmem>>, vector<1x32xf32>
    %21 = vector.broadcast %20 : vector<1x32xf32> to vector<32x32xf32>
    %22 = arith.addf %19, %21 : vector<32x32xf32>
    %c0_18 = arith.constant 0 : index
    %c0_19 = arith.constant 0 : index
    %c0_20 = arith.constant 0 : index
    %23 = vector.load %arg3[%c0_18, %c0_19, %c0_20] : memref<1x32x32xf32, #tpu.memory_space<vmem>>, vector<1x32x32xf32>
    %24 = vector.shape_cast %23 : vector<1x32x32xf32> to vector<32x32xf32>
    %25 = arith.addf %22, %24 : vector<32x32xf32>
    %cst_21 = arith.constant 0.000000e+00 : f32
    %26 = vector.broadcast %cst_21 : f32 to vector<32x32xf32>
    %27 = arith.maximumf %25, %26 : vector<32x32xf32>
    %28 = tpu.transpose %27, [1, 0] : vector<32x32xf32> -> vector<32x32xf32>
    %c0_22 = arith.constant 0 : index
    %c0_23 = arith.constant 0 : index
    %c0_24 = arith.constant 0 : index
    %29 = vector.load %arg10[%c0_22, %c0_23, %c0_24] : memref<1x32x32xf32, #tpu.memory_space<vmem>>, vector<1x32x32xf32>
    %30 = vector.shape_cast %29 : vector<1x32x32xf32> to vector<32x32xf32>
    %31 = vector.shape_cast %28 : vector<32x32xf32> to vector<1x32x32xf32>
    tpu.vector_store %arg10[%c0_22, %c0_23, %c0_24], %31 {strides = array<i32>} : memref<1x32x32xf32, #tpu.memory_space<vmem>>, vector<1x32x32xf32>,
    return
  }
  func.func @transform_0(%arg0: i32, %arg1: i32) -> (i32, i32, i32) {
    %c0_i32 = arith.constant 0 : i32
    %c0_i32_0 = arith.constant 0 : i32
    return %arg0, %arg1, %c0_i32 : i32, i32, i32
  }
  func.func @transform_1(%arg0: i32, %arg1: i32) -> (i32, i32, i32) {
    %c0_i32 = arith.constant 0 : i32
    %c0_i32_0 = arith.constant 0 : i32
    return %arg0, %arg1, %c0_i32 : i32, i32, i32
  }
  func.func @transform_2(%arg0: i32, %arg1: i32) -> (i32, i32) {
    %c0_i32 = arith.constant 0 : i32
    %c0_i32_0 = arith.constant 0 : i32
    %c0_i32_1 = arith.constant 0 : i32
    return %c0_i32, %c0_i32_0 : i32, i32
  }
  func.func @transform_3(%arg0: i32, %arg1: i32) -> (i32, i32) {
    %c0_i32 = arith.constant 0 : i32
    %c0_i32_0 = arith.constant 0 : i32
    %c0_i32_1 = arith.constant 0 : i32
    return %c0_i32, %c0_i32_0 : i32, i32
  }
  func.func @transform_4(%arg0: i32, %arg1: i32) -> (i32, i32) {
    %c0_i32 = arith.constant 0 : i32
    %c0_i32_0 = arith.constant 0 : i32
    %c0_i32_1 = arith.constant 0 : i32
    return %c0_i32, %c0_i32_0 : i32, i32
  }
  func.func @transform_5(%arg0: i32, %arg1: i32) -> (i32, i32) {
    %c0_i32 = arith.constant 0 : i32
    %c0_i32_0 = arith.constant 0 : i32
    %c0_i32_1 = arith.constant 0 : i32
    return %c0_i32, %c0_i32_0 : i32, i32
  }
  func.func @transform_6(%arg0: i32, %arg1: i32) -> (i32, i32) {
    %c0_i32 = arith.constant 0 : i32
    %c0_i32_0 = arith.constant 0 : i32
    %c0_i32_1 = arith.constant 0 : i32
    return %c0_i32, %c0_i32_0 : i32, i32
  }
  func.func @transform_7(%arg0: i32, %arg1: i32) -> (i32, i32) {
    %c0_i32 = arith.constant 0 : i32
    %c0_i32_0 = arith.constant 0 : i32
    %c0_i32_1 = arith.constant 0 : i32
    return %c0_i32, %c0_i32_0 : i32, i32
  }
  func.func @transform_8(%arg0: i32, %arg1: i32) -> (i32, i32, i32) {
    %c0_i32 = arith.constant 0 : i32
    %c0_i32_0 = arith.constant 0 : i32
    return %arg0, %c0_i32, %arg1 : i32, i32, i32
  }
}

</mosaic_0001>

<llo_original>
// kernel: custom-call.24
$region0: #{custom-call.24}
  %s0 = inlined_call_operand.vmem [shape: f32[2,64], index: 0, kind: output, shape index: {}]

// kernel: local_aggregator_forward.2
$region0: #{local_aggregator_forward.2}
  #allocation0 [shape = 'u32[]', space=smem, size = 0x4, offset = 0x4, fixed_abs, tag = 'smem constant byte address 0x4 - core index']
  #allocation1 [shape = 'u32[144,128]{1,0:T(1,128)}', space=vmem, size = 0x12000, scoped, tag = 'internal scratch']
  %s0 = inlined_call_operand.vmem [shape: bf16[2,512,22], index: 0, kind: input, shape index: {}]
  %s1 = inlined_call_operand.vmem [shape: bf16[22,16], index: 1, kind: input, shape index: {}]
  %s2 = inlined_call_operand.vmem [shape: f32[1,16], index: 2, kind: input, shape index: {}]
  %s3 = inlined_call_operand.vmem [shape: bf16[16,16], index: 3, kind: input, shape index: {}]
  %s4 = inlined_call_operand.vmem [shape: f32[1,16], index: 4, kind: input, shape index: {}]
  %s5 = inlined_call_operand.vmem [shape: bf16[16,32], index: 5, kind: input, shape index: {}]
  %s6 = inlined_call_operand.vmem [shape: f32[1,32], index: 6, kind: input, shape index: {}]
  %s7 = inlined_call_operand.vmem [shape: f32[2,32,32], index: 7, kind: output, shape index: {}]
  %s8 = sld [smem:[#allocation0]]
  $region61: #{local_aggregator_forward.2} parent=0
    _
  %s10 = ssub.s32 1, %s8
  %s11 = scalar_select 0, %s10, %s8
  loop: start=0, step=1, limit=4
  $region2: #{local_aggregator_forward.2} parent=0 // loop_pre_header
    _
  $region3: #{local_aggregator_forward.2} parent=0 // loop_header
    %s13 = sphi 0, %s17
    %p14 = scmp.ge.s32.totalorder %s13, 4
    %s20 = sphi 0, %s32
    %s21 = sphi 0, %s28
    %s22 = sphi 0, %s20
    %s23 = sphi 0, %s21
    %s24 = sphi 0, %s22
    %s25 = sphi 0, %s23
    %s37 = sphi 0, %s39
    %s40 = sphi 0, %s37
    %s41 = sphi 0, %s40
    %s57 = sphi 0, %s41
    %s61 = sphi 0, %s61
    %s63 = sphi 0, %s61
    %s64 = sphi 0, %s63
    %s78 = sphi 0, %s64
    %s82 = sphi 0, %s82
    %s84 = sphi 0, %s82
    %s85 = sphi 0, %s84
    %s99 = sphi 0, %s85
    %s103 = sphi 0, %s103
    %s105 = sphi 0, %s103
    %s106 = sphi 0, %s105
    %s120 = sphi 0, %s106
    %s124 = sphi 0, %s124
    %s126 = sphi 0, %s124
    %s127 = sphi 0, %s126
    %s141 = sphi 0, %s127
    %s145 = sphi 0, %s145
    %s147 = sphi 0, %s145
    %s148 = sphi 0, %s147
    %s162 = sphi 0, %s148
    %s166 = sphi 0, %s166
    %s168 = sphi 0, %s166
    %s169 = sphi 0, %s168
    %s183 = sphi 0, %s169
    %s191 = sphi 0, %s193
    %s194 = sphi 0, %s191
    %s195 = sphi 0, %s194
    %s211 = sphi 0, %s195
  $region4: #{local_aggregator_forward.2} parent=0 // loop_header_branch
    %16 = sbr.rel (%p14) target = $region8
  $region5: #{local_aggregator_forward.2} parent=0 // loop_body
    %s18 = ssub.s32 %s13, 1
    %s19 = ssub.s32 %s13, 2
    %s26 = sadd.s32 1, %s21
    %p27 = scmp.ge.s32.totalorder %s26, 1
    %s28 = scalar_select %p27, 0, %s26
    %s29 = sadd.s32 1, %s20
    %s30 = scalar_select %p27, %s29, %s20
    %p31 = scmp.ge.s32.totalorder %s30, 2
    %s32 = scalar_select %p31, 0, %s30
    %s33 = ssub.s32 %s20, %s32
    %s34 = ssub.s32 %s21, %s28
    %s35 = sor.u32 %s33, %s34
    %p36 = scmp.eq.s32.totalorder %s35, 0
    %s38 = sadd.s32 %s37, 1
    %s39 = scalar_select %p36, %s37, %s38
    %p42 = pneg %p36
    %p43 = scmp.eq.s32.totalorder %s13, 1
    %p44 = por %p42, %p43
    %p45 = scmp.ne.s32.totalorder %s37, %s40
    %p46 = scmp.eq.s32.totalorder %s13, 0
    %p47 = por %p45, %p46
    %p48 = scmp.ne.s32.totalorder %s37, %s40
    %p49 = scmp.eq.s32.totalorder %s18, 1
    %p50 = por %p48, %p49
    %p51 = scmp.ne.s32.totalorder %s40, %s41
    %p52 = scmp.eq.s32.totalorder %s18, 0
    %p53 = por %p51, %p52
    %p54 = scmp.ne.s32.totalorder %s40, %s41
    %p55 = scmp.eq.s32.totalorder %s19, 1
    %p56 = por %p54, %p55
    %p58 = scmp.ne.s32.totalorder %s41, %s57
    %p59 = scmp.eq.s32.totalorder %s19, 0
    %p60 = por %p58, %p59
    %s62 = sadd.s32 %s61, 1
    %p65 = scmp.eq.s32.totalorder %s13, 1
    %p66 = scmp.ne.s32.totalorder %s61, %s63
    %p67 = scmp.eq.s32.totalorder %s13, 0
    %p68 = por %p66, %p67
    %p69 = scmp.ne.s32.totalorder %s61, %s63
    %p70 = scmp.eq.s32.totalorder %s18, 1
    %p71 = por %p69, %p70
    %p72 = scmp.ne.s32.totalorder %s63, %s64
    %p73 = scmp.eq.s32.totalorder %s18, 0
    %p74 = por %p72, %p73
    %p75 = scmp.ne.s32.totalorder %s63, %s64
    %p76 = scmp.eq.s32.totalorder %s19, 1
    %p77 = por %p75, %p76
    %p79 = scmp.ne.s32.totalorder %s64, %s78
    %p80 = scmp.eq.s32.totalorder %s19, 0
    %p81 = por %p79, %p80
    %s83 = sadd.s32 %s82, 1
    %p86 = scmp.eq.s32.totalorder %s13, 1
    %p87 = scmp.ne.s32.totalorder %s82, %s84
    %p88 = scmp.eq.s32.totalorder %s13, 0
    %p89 = por %p87, %p88
    %p90 = scmp.ne.s32.totalorder %s82, %s84
    %p91 = scmp.eq.s32.totalorder %s18, 1
    %p92 = por %p90, %p91
    %p93 = scmp.ne.s32.totalorder %s84, %s85
    %p94 = scmp.eq.s32.totalorder %s18, 0
    %p95 = por %p93, %p94
    %p96 = scmp.ne.s32.totalorder %s84, %s85
    %p97 = scmp.eq.s32.totalorder %s19, 1
    %p98 = por %p96, %p97
    %p100 = scmp.ne.s32.totalorder %s85, %s99
    %p101 = scmp.eq.s32.totalorder %s19, 0
    %p102 = por %p100, %p101
    %s104 = sadd.s32 %s103, 1
    %p107 = scmp.eq.s32.totalorder %s13, 1
    %p108 = scmp.ne.s32.totalorder %s103, %s105
    %p109 = scmp.eq.s32.totalorder %s13, 0
    %p110 = por %p108, %p109
    %p111 = scmp.ne.s32.totalorder %s103, %s105
    %p112 = scmp.eq.s32.totalorder %s18, 1
    %p113 = por %p111, %p112
    %p114 = scmp.ne.s32.totalorder %s105, %s106
    %p115 = scmp.eq.s32.totalorder %s18, 0
    %p116 = por %p114, %p115
    %p117 = scmp.ne.s32.totalorder %s105, %s106
    %p118 = scmp.eq.s32.totalorder %s19, 1
    %p119 = por %p117, %p118
    %p121 = scmp.ne.s32.totalorder %s106, %s120
    %p122 = scmp.eq.s32.totalorder %s19, 0
    %p123 = por %p121, %p122
    %s125 = sadd.s32 %s124, 1
    %p128 = scmp.eq.s32.totalorder %s13, 1
    %p129 = scmp.ne.s32.totalorder %s124, %s126
    %p130 = scmp.eq.s32.totalorder %s13, 0
    %p131 = por %p129, %p130
    %p132 = scmp.ne.s32.totalorder %s124, %s126
    %p133 = scmp.eq.s32.totalorder %s18, 1
    %p134 = por %p132, %p133
    %p135 = scmp.ne.s32.totalorder %s126, %s127
    %p136 = scmp.eq.s32.totalorder %s18, 0
    %p137 = por %p135, %p136
    %p138 = scmp.ne.s32.totalorder %s126, %s127
    %p139 = scmp.eq.s32.totalorder %s19, 1
    %p140 = por %p138, %p139
    %p142 = scmp.ne.s32.totalorder %s127, %s141
    %p143 = scmp.eq.s32.totalorder %s19, 0
    %p144 = por %p142, %p143
    %s146 = sadd.s32 %s145, 1
    %p149 = scmp.eq.s32.totalorder %s13, 1
    %p150 = scmp.ne.s32.totalorder %s145, %s147
    %p151 = scmp.eq.s32.totalorder %s13, 0
    %p152 = por %p150, %p151
    %p153 = scmp.ne.s32.totalorder %s145, %s147
    %p154 = scmp.eq.s32.totalorder %s18, 1
    %p155 = por %p153, %p154
    %p156 = scmp.ne.s32.totalorder %s147, %s148
    %p157 = scmp.eq.s32.totalorder %s18, 0
    %p158 = por %p156, %p157
    %p159 = scmp.ne.s32.totalorder %s147, %s148
    %p160 = scmp.eq.s32.totalorder %s19, 1
    %p161 = por %p159, %p160
    %p163 = scmp.ne.s32.totalorder %s148, %s162
    %p164 = scmp.eq.s32.totalorder %s19, 0
    %p165 = por %p163, %p164
    %s167 = sadd.s32 %s166, 1
    %p170 = scmp.eq.s32.totalorder %s13, 1
    %p171 = scmp.ne.s32.totalorder %s166, %s168
    %p172 = scmp.eq.s32.totalorder %s13, 0
    %p173 = por %p171, %p172
    %p174 = scmp.ne.s32.totalorder %s166, %s168
    %p175 = scmp.eq.s32.totalorder %s18, 1
    %p176 = por %p174, %p175
    %p177 = scmp.ne.s32.totalorder %s168, %s169
    %p178 = scmp.eq.s32.totalorder %s18, 0
    %p179 = por %p177, %p178
    %p180 = scmp.ne.s32.totalorder %s168, %s169
    %p181 = scmp.eq.s32.totalorder %s19, 1
    %p182 = por %p180, %p181
    %p184 = scmp.ne.s32.totalorder %s169, %s183
    %p185 = scmp.eq.s32.totalorder %s19, 0
    %p186 = por %p184, %p185
    %s187 = ssub.s32 %s20, %s32
    %s188 = ssub.s32 %s21, %s28
    %s189 = sor.u32 %s187, %s188
    %p190 = scmp.eq.s32.totalorder %s189, 0
    %s192 = sadd.s32 %s191, 1
    %s193 = scalar_select %p190, %s191, %s192
    %p196 = pneg %p190
    %p197 = scmp.eq.s32.totalorder %s13, 1
    %p198 = por %p196, %p197
    %p199 = scmp.ne.s32.totalorder %s191, %s194
    %p200 = scmp.eq.s32.totalorder %s13, 0
    %p201 = por %p199, %p200
    %p202 = scmp.ne.s32.totalorder %s191, %s194
    %p203 = scmp.eq.s32.totalorder %s18, 1
    %p204 = por %p202, %p203
    %p205 = scmp.ne.s32.totalorder %s194, %s195
    %p206 = scmp.eq.s32.totalorder %s18, 0
    %p207 = por %p205, %p206
    %p208 = scmp.ne.s32.totalorder %s194, %s195
    %p209 = scmp.eq.s32.totalorder %s19, 1
    %p210 = por %p208, %p209
    %p212 = scmp.ne.s32.totalorder %s195, %s211
    %p213 = scmp.eq.s32.totalorder %s19, 0
    %p214 = por %p212, %p213
    %p215 = scmp.le.s32.totalorder 1, %s13
    %p216 = scmp.lt.s32.totalorder %s13, 3
    %p217 = pnand %p215, %p216
    %p218 = pneg %p217
    // Predicated region
    $region9: #{local_aggregator_forward.2} parent=5 // pred_check
      _
    $region10: #{local_aggregator_forward.2} parent=5 // pred_check_branch
      %220 = sbr.rel (%p217) target = $region12
    $region11: #{local_aggregator_forward.2} parent=5 // pred_region
      %s221 = ssub.s32 %s13, 1
      // Predicated region
      $region13: #{local_aggregator_forward.2} parent=11 // pred_check
        %p222 = pneg %p74
      $region14: #{local_aggregator_forward.2} parent=11 // pred_check_branch
        %224 = sbr.rel (%p222) target = $region16
      $region15: #{local_aggregator_forward.2} parent=11 // pred_region
        _
      $region16: #{local_aggregator_forward.2} parent=11 // pred_fallthru
        _
      // Predicated region
      $region17: #{local_aggregator_forward.2} parent=11 // pred_check
        %p225 = pneg %p95
      $region18: #{local_aggregator_forward.2} parent=11 // pred_check_branch
        %227 = sbr.rel (%p225) target = $region20
      $region19: #{local_aggregator_forward.2} parent=11 // pred_region
        _
      $region20: #{local_aggregator_forward.2} parent=11 // pred_fallthru
        _
      // Predicated region
      $region21: #{local_aggregator_forward.2} parent=11 // pred_check
        %p228 = pneg %p116
      $region22: #{local_aggregator_forward.2} parent=11 // pred_check_branch
        %230 = sbr.rel (%p228) target = $region24
      $region23: #{local_aggregator_forward.2} parent=11 // pred_region
        _
      $region24: #{local_aggregator_forward.2} parent=11 // pred_fallthru
        _
      // Predicated region
      $region25: #{local_aggregator_forward.2} parent=11 // pred_check
        %p231 = pneg %p137
      $region26: #{local_aggregator_forward.2} parent=11 // pred_check_branch
        %233 = sbr.rel (%p231) target = $region28
      $region27: #{local_aggregator_forward.2} parent=11 // pred_region
        _
      $region28: #{local_aggregator_forward.2} parent=11 // pred_fallthru
        _
      // Predicated region
      $region29: #{local_aggregator_forward.2} parent=11 // pred_check
        %p234 = pneg %p158
      $region30: #{local_aggregator_forward.2} parent=11 // pred_check_branch
        %236 = sbr.rel (%p234) target = $region32
      $region31: #{local_aggregator_forward.2} parent=11 // pred_region
        _
      $region32: #{local_aggregator_forward.2} parent=11 // pred_fallthru
        _
      // Predicated region
      $region33: #{local_aggregator_forward.2} parent=11 // pred_check
        %p237 = pneg %p179
      $region34: #{local_aggregator_forward.2} parent=11 // pred_check_branch
        %239 = sbr.rel (%p237) target = $region36
      $region35: #{local_aggregator_forward.2} parent=11 // pred_region
        _
      $region36: #{local_aggregator_forward.2} parent=11 // pred_fallthru
        _
    $region12: #{local_aggregator_forward.2} parent=5 // pred_fallthru
      _
    %p240 = scmp.lt.s32.totalorder %s13, 2
    // Predicated region
    $region37: #{local_aggregator_forward.2} parent=5 // pred_check
      %p241 = pneg %p240
    $region38: #{local_aggregator_forward.2} parent=5 // pred_check_branch
      %243 = sbr.rel (%p241) target = $region40
    $region39: #{local_aggregator_forward.2} parent=5 // pred_region
      // Predicated region
      $region41: #{local_aggregator_forward.2} parent=39 // pred_check
        %p244 = pneg %p47
      $region42: #{local_aggregator_forward.2} parent=39 // pred_check_branch
        %246 = sbr.rel (%p244) target = $region44
      $region43: #{local_aggregator_forward.2} parent=39 // pred_region
        %s247 = smul.u32 64, %s21
        %p248 = scmp.lt.s32.totalorder %s20, 1
        %s249 = scalar_select %p248, %s20, 1
        %p250 = scmp.lt.s32.totalorder %s247, 63
        %s251 = scalar_select %p250, %s247, 63
        %s252 = smul.addr %s249, 64
        %s253 = sadd.s32 %s251, %s252
        %s254 = smul.addr %s253, 4
        %s255 = scalar_lea.vmem %s0, %s254
        %s256 = smul.u32 64, %s21
      $region44: #{local_aggregator_forward.2} parent=39 // pred_fallthru
        _
    $region40: #{local_aggregator_forward.2} parent=5 // pred_fallthru
      _
    %p257 = scmp.le.s32.totalorder 1, %s13
    %p258 = scmp.lt.s32.totalorder %s13, 3
    %p259 = pnand %p257, %p258
    %p260 = pneg %p259
    // Predicated region
    $region45: #{local_aggregator_forward.2} parent=5 // pred_check
      _
    $region46: #{local_aggregator_forward.2} parent=5 // pred_check_branch
      %262 = sbr.rel (%p259) target = $region48
    $region47: #{local_aggregator_forward.2} parent=5 // pred_region
      %s263 = ssub.s32 %s13, 1
      %s264 = smul.u32 64, %s23
      %p265 = scmp.lt.s32.totalorder %s22, 1
      %s266 = scalar_select %p265, %s22, 1
      %p267 = scmp.lt.s32.totalorder %s264, 63
      %s268 = scalar_select %p267, %s264, 63
      %s269 = smul.addr %s266, 64
      %s270 = sadd.s32 %s268, %s269
      %s271 = smul.addr %s270, 4
      %s272 = scalar_lea.vmem %s0, %s271
      %p273 = pneg %p53
      %p274 = pneg %p50
      %p275 = pneg %p74
      %p276 = pneg %p71
      %p277 = pneg %p95
      %p278 = pneg %p92
      %p279 = pneg %p116
      %p280 = pneg %p113
      %p281 = pneg %p137
      %p282 = pneg %p134
      %p283 = pneg %p158
      %p284 = pneg %p155
      %p285 = pneg %p179
      %p286 = pneg %p176
      %p287 = pneg %p207
      %p288 = pneg %p204
      %s289 = smul.u32 4, %s23
      %p290 = scmp.lt.s32.totalorder %s22, 1
      %s291 = scalar_select %p290, %s22, 1
      %p292 = scmp.lt.s32.totalorder %s289, 3
      %s293 = scalar_select %p292, %s289, 3
      %s294 = smul.addr %s291, 4
      %s295 = sadd.s32 %s293, %s294
      %s296 = smul.addr %s295, 8
      %s297 = scalar_lea.vmem %s7, %s296
      %s298 = smul.u32 64, %s23
      %p299 = scmp.lt.s32.totalorder %s22, 1
      %s300 = scalar_select %p299, %s22, 1
      %p301 = scmp.lt.s32.totalorder %s298, 63
      %s302 = scalar_select %p301, %s298, 63
      %s303 = smul.addr %s300, 64
      %s304 = sadd.s32 %s302, %s303
      %s305 = smul.addr %s304, 4
      %s306 = scalar_lea.vmem %s0, %s305
      %s307 = smul.u32 64, %s23
      %s308 = smul.u32 4, %s23
      %p309 = scmp.lt.s32.totalorder %s22, 1
      %s310 = scalar_select %p309, %s22, 1
      %p311 = scmp.lt.s32.totalorder %s308, 3
      %s312 = scalar_select %p311, %s308, 3
      %s313 = smul.addr %s310, 4
      %s314 = sadd.s32 %s312, %s313
      %s315 = smul.addr %s314, 8
      %s316 = scalar_lea.vmem %s7, %s315
      %s317 = smul.u32 4, %s23
      %v319 = vld [vmem:[%s306] sm:$0xf]
      %v320 = vld [vmem:[%s306 + $0x4] sm:$0xf]
      %v321 = vld [vmem:[%s306 + $0x8] sm:$0xf]
      %v322 = vld [vmem:[%s306 + $0xc] sm:$0xf]
      %v323 = vld [vmem:[%s306 + $0x10] sm:$0xf]
      %v324 = vld [vmem:[%s306 + $0x14] sm:$0xf]
      %v325 = vld [vmem:[%s306 + $0x18] sm:$0xf]
      %v326 = vld [vmem:[%s306 + $0x1c] sm:$0xf]
      %v327 = vld [vmem:[%s306 + $0x20] sm:$0xf]
      %v328 = vld [vmem:[%s306 + $0x24] sm:$0xf]
      %v329 = vld [vmem:[%s306 + $0x28] sm:$0xf]
      %v330 = vld [vmem:[%s306 + $0x2c] sm:$0xf]
      %v331 = vld [vmem:[%s306 + $0x30] sm:$0xf]
      %v332 = vld [vmem:[%s306 + $0x34] sm:$0xf]
      %v333 = vld [vmem:[%s306 + $0x38] sm:$0xf]
      %v334 = vld [vmem:[%s306 + $0x3c] sm:$0xf]
      %v335 = vld [vmem:[%s306 + $0x40] sm:$0xf]
      %v336 = vld [vmem:[%s306 + $0x44] sm:$0xf]
      %v337 = vld [vmem:[%s306 + $0x48] sm:$0xf]
      %v338 = vld [vmem:[%s306 + $0x4c] sm:$0xf]
      %v339 = vld [vmem:[%s306 + $0x50] sm:$0xf]
      %v340 = vld [vmem:[%s306 + $0x54] sm:$0xf]
      %v341 = vld [vmem:[%s306 + $0x58] sm:$0xf]
      %v342 = vld [vmem:[%s306 + $0x5c] sm:$0xf]
      %v343 = vld [vmem:[%s306 + $0x60] sm:$0xf]
      %v344 = vld [vmem:[%s306 + $0x64] sm:$0xf]
      %v345 = vld [vmem:[%s306 + $0x68] sm:$0xf]
      %v346 = vld [vmem:[%s306 + $0x6c] sm:$0xf]
      %v347 = vld [vmem:[%s306 + $0x70] sm:$0xf]
      %v348 = vld [vmem:[%s306 + $0x74] sm:$0xf]
      %v349 = vld [vmem:[%s306 + $0x78] sm:$0xf]
      %v350 = vld [vmem:[%s306 + $0x7c] sm:$0xf]
      %v351 = vld [vmem:[%s306 + $0x80] sm:$0xf]
      %v352 = vld [vmem:[%s306 + $0x84] sm:$0xf]
      %v353 = vld [vmem:[%s306 + $0x88] sm:$0xf]
      %v354 = vld [vmem:[%s306 + $0x8c] sm:$0xf]
      %v355 = vld [vmem:[%s306 + $0x90] sm:$0xf]
      %v356 = vld [vmem:[%s306 + $0x94] sm:$0xf]
      %v357 = vld [vmem:[%s306 + $0x98] sm:$0xf]
      %v358 = vld [vmem:[%s306 + $0x9c] sm:$0xf]
      %v359 = vld [vmem:[%s306 + $0xa0] sm:$0xf]
      %v360 = vld [vmem:[%s306 + $0xa4] sm:$0xf]
      %v361 = vld [vmem:[%s306 + $0xa8] sm:$0xf]
      %v362 = vld [vmem:[%s306 + $0xac] sm:$0xf]
      %v363 = vld [vmem:[%s306 + $0xb0] sm:$0xf]
      %v364 = vld [vmem:[%s306 + $0xb4] sm:$0xf]
      %v365 = vld [vmem:[%s306 + $0xb8] sm:$0xf]
      %v366 = vld [vmem:[%s306 + $0xbc] sm:$0xf]
      %v367 = vld [vmem:[%s306 + $0xc0] sm:$0xf]
      %v368 = vld [vmem:[%s306 + $0xc4] sm:$0xf]
      %v369 = vld [vmem:[%s306 + $0xc8] sm:$0xf]
      %v370 = vld [vmem:[%s306 + $0xcc] sm:$0xf]
      %v371 = vld [vmem:[%s306 + $0xd0] sm:$0xf]
      %v372 = vld [vmem:[%s306 + $0xd4] sm:$0xf]
      %v373 = vld [vmem:[%s306 + $0xd8] sm:$0xf]
      %v374 = vld [vmem:[%s306 + $0xdc] sm:$0xf]
      %v375 = vld [vmem:[%s306 + $0xe0] sm:$0xf]
      %v376 = vld [vmem:[%s306 + $0xe4] sm:$0xf]
      %v377 = vld [vmem:[%s306 + $0xe8] sm:$0xf]
      %v378 = vld [vmem:[%s306 + $0xec] sm:$0xf]
      %v379 = vld [vmem:[%s306 + $0xf0] sm:$0xf]
      %v380 = vld [vmem:[%s306 + $0xf4] sm:$0xf]
      %v381 = vld [vmem:[%s306 + $0xf8] sm:$0xf]
      %v382 = vld [vmem:[%s306 + $0xfc] sm:$0xf]
      %v383 = vld [vmem:[%s1] sm:$0xf]
      %v384 = vld [vmem:[%s1 + $0x4] sm:$0xf]
      %v385 = vld [vmem:[%s1 + $0x8] sm:$0x7]
      %v386 = vld [vmem:[%s2] sm:$0x1]
      %v388 = vlaneseq
      %v389 = vshrl.u32 %v388, 7
      %v390 = vsub.s32 0, %v389
      %v391 = vrot.slane %v386, %v390
      %v457 = vunpack.c.l.b16 %v319
      %v458 = vunpack.c.l.b16 %v320
      %v459 = vunpack.c.l.b16 %v321
      %v460 = vunpack.c.l.b16 %v322
      %v461 = vunpack.c.l.b16 %v323
      %v462 = vunpack.c.l.b16 %v324
      %v463 = vunpack.c.l.b16 %v325
      %v464 = vunpack.c.l.b16 %v326
      %v465 = vunpack.c.l.b16 %v327
      %v466 = vunpack.c.l.b16 %v328
      %v467 = vunpack.c.l.b16 %v329
      %v468 = vunpack.c.l.b16 %v330
      %v469 = vunpack.c.l.b16 %v331
      %v470 = vunpack.c.l.b16 %v332
      %v471 = vunpack.c.l.b16 %v333
      %v472 = vunpack.c.l.b16 %v334
      %v473 = vunpack.c.l.b16 %v335
      %v474 = vunpack.c.l.b16 %v336
      %v475 = vunpack.c.l.b16 %v337
      %v476 = vunpack.c.l.b16 %v338
      %v477 = vunpack.c.l.b16 %v339
      %v478 = vunpack.c.l.b16 %v340
      %v479 = vunpack.c.l.b16 %v341
      %v480 = vunpack.c.l.b16 %v342
      %v481 = vunpack.c.l.b16 %v343
      %v482 = vunpack.c.l.b16 %v344
      %v483 = vunpack.c.l.b16 %v345
      %v484 = vunpack.c.l.b16 %v346
      %v485 = vunpack.c.l.b16 %v347
      %v486 = vunpack.c.l.b16 %v348
      %v487 = vunpack.c.l.b16 %v349
      %v488 = vunpack.c.l.b16 %v350
      %v489 = vunpack.c.l.b16 %v351
      %v490 = vunpack.c.l.b16 %v352
      %v491 = vunpack.c.l.b16 %v353
      %v492 = vunpack.c.l.b16 %v354
      %v493 = vunpack.c.l.b16 %v355
      %v494 = vunpack.c.l.b16 %v356
      %v495 = vunpack.c.l.b16 %v357
      %v496 = vunpack.c.l.b16 %v358
      %v497 = vunpack.c.l.b16 %v359
      %v498 = vunpack.c.l.b16 %v360
      %v499 = vunpack.c.l.b16 %v361
      %v500 = vunpack.c.l.b16 %v362
      %v501 = vunpack.c.l.b16 %v363
      %v502 = vunpack.c.l.b16 %v364
      %v503 = vunpack.c.l.b16 %v365
      %v504 = vunpack.c.l.b16 %v366
      %v505 = vunpack.c.l.b16 %v367
      %v506 = vunpack.c.l.b16 %v368
      %v507 = vunpack.c.l.b16 %v369
      %v508 = vunpack.c.l.b16 %v370
      %v509 = vunpack.c.l.b16 %v371
      %v510 = vunpack.c.l.b16 %v372
      %v511 = vunpack.c.l.b16 %v373
      %v512 = vunpack.c.l.b16 %v374
      %v513 = vunpack.c.l.b16 %v375
      %v514 = vunpack.c.l.b16 %v376
      %v515 = vunpack.c.l.b16 %v377
      %v516 = vunpack.c.l.b16 %v378
      %v517 = vunpack.c.l.b16 %v379
      %v518 = vunpack.c.l.b16 %v380
      %v519 = vunpack.c.l.b16 %v381
      %v520 = vunpack.c.l.b16 %v382
      %v521 = vpack.c.b16 %v458, %v457
      %v522 = vpack.c.b16 %v460, %v459
      %v523 = vpack.c.b16 %v462, %v461
      %v524 = vpack.c.b16 %v464, %v463
      %v525 = vpack.c.b16 %v466, %v465
      %v526 = vpack.c.b16 %v468, %v467
      %v527 = vpack.c.b16 %v470, %v469
      %v528 = vpack.c.b16 %v472, %v471
      %v529 = vpack.c.b16 %v474, %v473
      %v530 = vpack.c.b16 %v476, %v475
      %v531 = vpack.c.b16 %v478, %v477
      %v532 = vpack.c.b16 %v480, %v479
      %v533 = vpack.c.b16 %v482, %v481
      %v534 = vpack.c.b16 %v484, %v483
      %v535 = vpack.c.b16 %v486, %v485
      %v536 = vpack.c.b16 %v488, %v487
      %v537 = vpack.c.b16 %v490, %v489
      %v538 = vpack.c.b16 %v492, %v491
      %v539 = vpack.c.b16 %v494, %v493
      %v540 = vpack.c.b16 %v496, %v495
      %v541 = vpack.c.b16 %v498, %v497
      %v542 = vpack.c.b16 %v500, %v499
      %v543 = vpack.c.b16 %v502, %v501
      %v544 = vpack.c.b16 %v504, %v503
      %v545 = vpack.c.b16 %v506, %v505
      %v546 = vpack.c.b16 %v508, %v507
      %v547 = vpack.c.b16 %v510, %v509
      %v548 = vpack.c.b16 %v512, %v511
      %v549 = vpack.c.b16 %v514, %v513
      %v550 = vpack.c.b16 %v516, %v515
      %v551 = vpack.c.b16 %v518, %v517
      %v552 = vpack.c.b16 %v520, %v519
      %v556 = vunpack.c.l.b16 %v383
      %v557 = vunpack.c.l.b16 %v384
      %v558 = vunpack.c.l.b16 %v385
      %v559 = vpack.c.b16 %v557, %v556
      %v560 = vpack.c.b16 %v558, %v558
      %vm562 = vcmask 179200
      %v564 = vsel %vm562, %v521, 0
      %v567 = vsel %vm562, %v522, 0
      %v570 = vsel %vm562, %v523, 0
      %v573 = vsel %vm562, %v524, 0
      %v576 = vsel %vm562, %v525, 0
      %v579 = vsel %vm562, %v526, 0
      %v582 = vsel %vm562, %v527, 0
      %v585 = vsel %vm562, %v528, 0
      %v588 = vsel %vm562, %v529, 0
      %v591 = vsel %vm562, %v530, 0
      %v594 = vsel %vm562, %v531, 0
      %v597 = vsel %vm562, %v532, 0
      %v600 = vsel %vm562, %v533, 0
      %v603 = vsel %vm562, %v534, 0
      %v606 = vsel %vm562, %v535, 0
      %v609 = vsel %vm562, %v536, 0
      %v612 = vsel %vm562, %v537, 0
      %v615 = vsel %vm562, %v538, 0
      %v618 = vsel %vm562, %v539, 0
      %v621 = vsel %vm562, %v540, 0
      %v624 = vsel %vm562, %v541, 0
      %v627 = vsel %vm562, %v542, 0
      %v630 = vsel %vm562, %v543, 0
      %v633 = vsel %vm562, %v544, 0
      %v636 = vsel %vm562, %v545, 0
      %v639 = vsel %vm562, %v546, 0
      %v642 = vsel %vm562, %v547, 0
      %v645 = vsel %vm562, %v548, 0
      %v648 = vsel %vm562, %v549, 0
      %v651 = vsel %vm562, %v550, 0
      %v654 = vsel %vm562, %v551, 0
      %v657 = vsel %vm562, %v552, 0
      %vm659 = vcmask 1042432
      %v661 = vsel %vm659, %v560, 0
      %663 = vmatprep.subr.bf16.mxu0 0
      %664 = vmatpush1.bf16.msra.mxu0 0
      %665 = vmatprep.subr.bf16.mxu0 0
      %666 = vmatpush1.bf16.msra.mxu0 0
      %667 = vmatprep.subr.bf16.mxu0 0
      %668 = vmatpush1.bf16.msra.mxu0 0
      %669 = vmatprep.subr.bf16.mxu0 0
      %670 = vmatpush1.bf16.msra.mxu0 0
      %671 = vmatprep.subr.bf16.mxu0 0
      %672 = vmatpush1.bf16.msra.mxu0 0
      %673 = vmatprep.subr.bf16.mxu0 0
      %674 = vmatpush1.bf16.msra.mxu0 0
      %675 = vmatprep.subr.bf16.mxu0 0
      %676 = vmatpush1.bf16.msra.mxu0 %v661
      %677 = vmatprep.subr.bf16.mxu0 0
      %678 = vmatpush1.bf16.msra.mxu0 %v559
      %679 = vmatprep.subr.bf16.mxu0 0
      %680 = vmatpush2.bf16.msra.mxu0 0
      %681 = vmatprep.subr.bf16.mxu0 0
      %682 = vmatpush2.bf16.msra.mxu0 0
      %683 = vmatprep.subr.bf16.mxu0 0
      %684 = vmatpush2.bf16.msra.mxu0 0
      %685 = vmatprep.subr.bf16.mxu0 0
      %686 = vmatpush2.bf16.msra.mxu0 0
      %687 = vmatprep.subr.bf16.mxu0 0
      %688 = vmatpush2.bf16.msra.mxu0 0
      %689 = vmatprep.subr.bf16.mxu0 0
      %690 = vmatpush2.bf16.msra.mxu0 0
      %691 = vmatprep.subr.bf16.mxu0 0
      %692 = vmatpush2.bf16.msra.mxu0 0
      %693 = vmatprep.subr.bf16.mxu0 0
      %694 = vmatpush2.bf16.msra.mxu0 0
      %695 = vmatprep.mubr.bf16.mxu0 0
      %696 = vmatmul.mubr.bf16.gmra.mxu0 %v564
      %v697 = vpop.f32.mrf.mxu0
      %v698 = vadd.f32 %v391, %v697
      %v699 = vpop.f32.mrf.mxu0
      %v700 = vpop.f32.mrf.mxu0
      %v701 = vadd.f32 %v391, %v700
      %v702 = vpop.f32.mrf.mxu0
      %703 = vmatprep.mubr.bf16.mxu0 0
      %704 = vmatmul.mubr.bf16.gmra.mxu0 %v567
      %v705 = vpop.f32.mrf.mxu0
      %v706 = vadd.f32 %v391, %v705
      %v707 = vpop.f32.mrf.mxu0
      %v708 = vpop.f32.mrf.mxu0
      %v709 = vadd.f32 %v391, %v708
      %v710 = vpop.f32.mrf.mxu0
      %711 = vmatprep.mubr.bf16.mxu0 0
      %712 = vmatmul.mubr.bf16.gmra.mxu0 %v570
      %v713 = vpop.f32.mrf.mxu0
      %v714 = vadd.f32 %v391, %v713
      %v715 = vpop.f32.mrf.mxu0
      %v716 = vpop.f32.mrf.mxu0
      %v717 = vadd.f32 %v391, %v716
      %v718 = vpop.f32.mrf.mxu0
      %719 = vmatprep.mubr.bf16.mxu0 0
      %720 = vmatmul.mubr.bf16.gmra.mxu0 %v573
      %v721 = vpop.f32.mrf.mxu0
      %v722 = vadd.f32 %v391, %v721
      %v723 = vpop.f32.mrf.mxu0
      %v724 = vpop.f32.mrf.mxu0
      %v725 = vadd.f32 %v391, %v724
      %v726 = vpop.f32.mrf.mxu0
      %727 = vmatprep.mubr.bf16.mxu0 0
      %728 = vmatmul.mubr.bf16.gmra.mxu0 %v576
      %v729 = vpop.f32.mrf.mxu0
      %v730 = vadd.f32 %v391, %v729
      %v731 = vpop.f32.mrf.mxu0
      %v732 = vpop.f32.mrf.mxu0
      %v733 = vadd.f32 %v391, %v732
      %v734 = vpop.f32.mrf.mxu0
      %735 = vmatprep.mubr.bf16.mxu0 0
      %736 = vmatmul.mubr.bf16.gmra.mxu0 %v579
      %v737 = vpop.f32.mrf.mxu0
      %v738 = vadd.f32 %v391, %v737
      %v739 = vpop.f32.mrf.mxu0
      %v740 = vpop.f32.mrf.mxu0
      %v741 = vadd.f32 %v391, %v740
      %v742 = vpop.f32.mrf.mxu0
      %743 = vmatprep.mubr.bf16.mxu0 0
      %744 = vmatmul.mubr.bf16.gmra.mxu0 %v582
      %v745 = vpop.f32.mrf.mxu0
      %v746 = vadd.f32 %v391, %v745
      %v747 = vpop.f32.mrf.mxu0
      %v748 = vpop.f32.mrf.mxu0
      %v749 = vadd.f32 %v391, %v748
      %v750 = vpop.f32.mrf.mxu0
      %751 = vmatprep.mubr.bf16.mxu0 0
      %752 = vmatmul.mubr.bf16.gmra.mxu0 %v585
      %v753 = vpop.f32.mrf.mxu0
      %v754 = vadd.f32 %v391, %v753
      %v755 = vpop.f32.mrf.mxu0
      %v756 = vpop.f32.mrf.mxu0
      %v757 = vadd.f32 %v391, %v756
      %v758 = vpop.f32.mrf.mxu0
      %759 = vmatprep.mubr.bf16.mxu0 0
      %760 = vmatmul.mubr.bf16.gmra.mxu0 %v588
      %v761 = vpop.f32.mrf.mxu0
      %v762 = vadd.f32 %v391, %v761
      %v763 = vpop.f32.mrf.mxu0
      %v764 = vpop.f32.mrf.mxu0
      %v765 = vadd.f32 %v391, %v764
      %v766 = vpop.f32.mrf.mxu0
      %767 = vmatprep.mubr.bf16.mxu0 0
      %768 = vmatmul.mubr.bf16.gmra.mxu0 %v591
      %v769 = vpop.f32.mrf.mxu0
      %v770 = vadd.f32 %v391, %v769
      %v771 = vpop.f32.mrf.mxu0
      %v772 = vpop.f32.mrf.mxu0
      %v773 = vadd.f32 %v391, %v772
      %v774 = vpop.f32.mrf.mxu0
      %775 = vmatprep.mubr.bf16.mxu0 0
      %776 = vmatmul.mubr.bf16.gmra.mxu0 %v594
      %v777 = vpop.f32.mrf.mxu0
      %v778 = vadd.f32 %v391, %v777
      %v779 = vpop.f32.mrf.mxu0
      %v780 = vpop.f32.mrf.mxu0
      %v781 = vadd.f32 %v391, %v780
      %v782 = vpop.f32.mrf.mxu0
      %783 = vmatprep.mubr.bf16.mxu0 0
      %784 = vmatmul.mubr.bf16.gmra.mxu0 %v597
      %v785 = vpop.f32.mrf.mxu0
      %v786 = vadd.f32 %v391, %v785
      %v787 = vpop.f32.mrf.mxu0
      %v788 = vpop.f32.mrf.mxu0
      %v789 = vadd.f32 %v391, %v788
      %v790 = vpop.f32.mrf.mxu0
      %791 = vmatprep.mubr.bf16.mxu0 0
      %792 = vmatmul.mubr.bf16.gmra.mxu0 %v600
      %v793 = vpop.f32.mrf.mxu0
      %v794 = vadd.f32 %v391, %v793
      %v795 = vpop.f32.mrf.mxu0
      %v796 = vpop.f32.mrf.mxu0
      %v797 = vadd.f32 %v391, %v796
      %v798 = vpop.f32.mrf.mxu0
      %799 = vmatprep.mubr.bf16.mxu0 0
      %800 = vmatmul.mubr.bf16.gmra.mxu0 %v603
      %v801 = vpop.f32.mrf.mxu0
      %v802 = vadd.f32 %v391, %v801
      %v803 = vpop.f32.mrf.mxu0
      %v804 = vpop.f32.mrf.mxu0
      %v805 = vadd.f32 %v391, %v804
      %v806 = vpop.f32.mrf.mxu0
      %807 = vmatprep.mubr.bf16.mxu0 0
      %808 = vmatmul.mubr.bf16.gmra.mxu0 %v606
      %v809 = vpop.f32.mrf.mxu0
      %v810 = vadd.f32 %v391, %v809
      %v811 = vpop.f32.mrf.mxu0
      %v812 = vpop.f32.mrf.mxu0
      %v813 = vadd.f32 %v391, %v812
      %v814 = vpop.f32.mrf.mxu0
      %815 = vmatprep.mubr.bf16.mxu0 0
      %816 = vmatmul.mubr.bf16.gmra.mxu0 %v609
      %v817 = vpop.f32.mrf.mxu0
      %v818 = vadd.f32 %v391, %v817
      %v819 = vpop.f32.mrf.mxu0
      %v820 = vpop.f32.mrf.mxu0
      %v821 = vadd.f32 %v391, %v820
      %v822 = vpop.f32.mrf.mxu0
      %823 = vmatprep.mubr.bf16.mxu0 0
      %824 = vmatmul.mubr.bf16.gmra.mxu0 %v612
      %v825 = vpop.f32.mrf.mxu0
      %v826 = vadd.f32 %v391, %v825
      %v827 = vpop.f32.mrf.mxu0
      %v828 = vpop.f32.mrf.mxu0
      %v829 = vadd.f32 %v391, %v828
      %v830 = vpop.f32.mrf.mxu0
      %831 = vmatprep.mubr.bf16.mxu0 0
      %832 = vmatmul.mubr.bf16.gmra.mxu0 %v615
      %v833 = vpop.f32.mrf.mxu0
      %v834 = vadd.f32 %v391, %v833
      %v835 = vpop.f32.mrf.mxu0
      %v836 = vpop.f32.mrf.mxu0
      %v837 = vadd.f32 %v391, %v836
      %v838 = vpop.f32.mrf.mxu0
      %839 = vmatprep.mubr.bf16.mxu0 0
      %840 = vmatmul.mubr.bf16.gmra.mxu0 %v618
      %v841 = vpop.f32.mrf.mxu0
      %v842 = vadd.f32 %v391, %v841
      %v843 = vpop.f32.mrf.mxu0
      %v844 = vpop.f32.mrf.mxu0
      %v845 = vadd.f32 %v391, %v844
      %v846 = vpop.f32.mrf.mxu0
      %847 = vmatprep.mubr.bf16.mxu0 0
      %848 = vmatmul.mubr.bf16.gmra.mxu0 %v621
      %v849 = vpop.f32.mrf.mxu0
      %v850 = vadd.f32 %v391, %v849
      %v851 = vpop.f32.mrf.mxu0
      %v852 = vpop.f32.mrf.mxu0
      %v853 = vadd.f32 %v391, %v852
      %v854 = vpop.f32.mrf.mxu0
      %855 = vmatprep.mubr.bf16.mxu0 0
      %856 = vmatmul.mubr.bf16.gmra.mxu0 %v624
      %v857 = vpop.f32.mrf.mxu0
      %v858 = vadd.f32 %v391, %v857
      %v859 = vpop.f32.mrf.mxu0
      %v860 = vpop.f32.mrf.mxu0
      %v861 = vadd.f32 %v391, %v860
      %v862 = vpop.f32.mrf.mxu0
      %863 = vmatprep.mubr.bf16.mxu0 0
      %864 = vmatmul.mubr.bf16.gmra.mxu0 %v627
      %v865 = vpop.f32.mrf.mxu0
      %v866 = vadd.f32 %v391, %v865
      %v867 = vpop.f32.mrf.mxu0
      %v868 = vpop.f32.mrf.mxu0
      %v869 = vadd.f32 %v391, %v868
      %v870 = vpop.f32.mrf.mxu0
      %871 = vmatprep.mubr.bf16.mxu0 0
      %872 = vmatmul.mubr.bf16.gmra.mxu0 %v630
      %v873 = vpop.f32.mrf.mxu0
      %v874 = vadd.f32 %v391, %v873
      %v875 = vpop.f32.mrf.mxu0
      %v876 = vpop.f32.mrf.mxu0
      %v877 = vadd.f32 %v391, %v876
      %v878 = vpop.f32.mrf.mxu0
      %879 = vmatprep.mubr.bf16.mxu0 0
      %880 = vmatmul.mubr.bf16.gmra.mxu0 %v633
      %v881 = vpop.f32.mrf.mxu0
      %v882 = vadd.f32 %v391, %v881
      %v883 = vpop.f32.mrf.mxu0
      %v884 = vpop.f32.mrf.mxu0
      %v885 = vadd.f32 %v391, %v884
      %v886 = vpop.f32.mrf.mxu0
      %887 = vmatprep.mubr.bf16.mxu0 0
      %888 = vmatmul.mubr.bf16.gmra.mxu0 %v636
      %v889 = vpop.f32.mrf.mxu0
      %v890 = vadd.f32 %v391, %v889
      %v891 = vpop.f32.mrf.mxu0
      %v892 = vpop.f32.mrf.mxu0
      %v893 = vadd.f32 %v391, %v892
      %v894 = vpop.f32.mrf.mxu0
      %895 = vmatprep.mubr.bf16.mxu0 0
      %896 = vmatmul.mubr.bf16.gmra.mxu0 %v639
      %v897 = vpop.f32.mrf.mxu0
      %v898 = vadd.f32 %v391, %v897
      %v899 = vpop.f32.mrf.mxu0
      %v900 = vpop.f32.mrf.mxu0
      %v901 = vadd.f32 %v391, %v900
      %v902 = vpop.f32.mrf.mxu0
      %903 = vmatprep.mubr.bf16.mxu0 0
      %904 = vmatmul.mubr.bf16.gmra.mxu0 %v642
      %v905 = vpop.f32.mrf.mxu0
      %v906 = vadd.f32 %v391, %v905
      %v907 = vpop.f32.mrf.mxu0
      %v908 = vpop.f32.mrf.mxu0
      %v909 = vadd.f32 %v391, %v908
      %v910 = vpop.f32.mrf.mxu0
      %911 = vmatprep.mubr.bf16.mxu0 0
      %912 = vmatmul.mubr.bf16.gmra.mxu0 %v645
      %v913 = vpop.f32.mrf.mxu0
      %v914 = vadd.f32 %v391, %v913
      %v915 = vpop.f32.mrf.mxu0
      %v916 = vpop.f32.mrf.mxu0
      %v917 = vadd.f32 %v391, %v916
      %v918 = vpop.f32.mrf.mxu0
      %919 = vmatprep.mubr.bf16.mxu0 0
      %920 = vmatmul.mubr.bf16.gmra.mxu0 %v648
      %v921 = vpop.f32.mrf.mxu0
      %v922 = vadd.f32 %v391, %v921
      %v923 = vpop.f32.mrf.mxu0
      %v924 = vpop.f32.mrf.mxu0
      %v925 = vadd.f32 %v391, %v924
      %v926 = vpop.f32.mrf.mxu0
      %927 = vmatprep.mubr.bf16.mxu0 0
      %928 = vmatmul.mubr.bf16.gmra.mxu0 %v651
      %v929 = vpop.f32.mrf.mxu0
      %v930 = vadd.f32 %v391, %v929
      %v931 = vpop.f32.mrf.mxu0
      %v932 = vpop.f32.mrf.mxu0
      %v933 = vadd.f32 %v391, %v932
      %v934 = vpop.f32.mrf.mxu0
      %935 = vmatprep.mubr.bf16.mxu0 0
      %936 = vmatmul.mubr.bf16.gmra.mxu0 %v654
      %v937 = vpop.f32.mrf.mxu0
      %v938 = vadd.f32 %v391, %v937
      %v939 = vpop.f32.mrf.mxu0
      %v940 = vpop.f32.mrf.mxu0
      %v941 = vadd.f32 %v391, %v940
      %v942 = vpop.f32.mrf.mxu0
      %943 = vmatprep.mubr.bf16.mxu0 0
      %944 = vmatmul.mubr.bf16.gmra.mxu0 %v657
      %v945 = vpop.f32.mrf.mxu0
      %v946 = vadd.f32 %v391, %v945
      %v947 = vpop.f32.mrf.mxu0
      %v948 = vpop.f32.mrf.mxu0
      %v949 = vadd.f32 %v391, %v948
      %v950 = vpop.f32.mrf.mxu0
      %951 = vdwg.mxu0
      %v952 = vmax.f32 %v698, 0.0
      %v953 = vmax.f32 %v701, 0.0
      %v954 = vmax.f32 %v706, 0.0
      %v955 = vmax.f32 %v709, 0.0
      %v956 = vmax.f32 %v714, 0.0
      %v957 = vmax.f32 %v717, 0.0
      %v958 = vmax.f32 %v722, 0.0
      %v959 = vmax.f32 %v725, 0.0
      %v960 = vmax.f32 %v730, 0.0
      %v961 = vmax.f32 %v733, 0.0
      %v962 = vmax.f32 %v738, 0.0
      %v963 = vmax.f32 %v741, 0.0
      %v964 = vmax.f32 %v746, 0.0
      %v965 = vmax.f32 %v749, 0.0
      %v966 = vmax.f32 %v754, 0.0
      %v967 = vmax.f32 %v757, 0.0
      %v968 = vmax.f32 %v762, 0.0
      %v969 = vmax.f32 %v765, 0.0
      %v970 = vmax.f32 %v770, 0.0
      %v971 = vmax.f32 %v773, 0.0
      %v972 = vmax.f32 %v778, 0.0
      %v973 = vmax.f32 %v781, 0.0
      %v974 = vmax.f32 %v786, 0.0
      %v975 = vmax.f32 %v789, 0.0
      %v976 = vmax.f32 %v794, 0.0
      %v977 = vmax.f32 %v797, 0.0
      %v978 = vmax.f32 %v802, 0.0
      %v979 = vmax.f32 %v805, 0.0
      %v980 = vmax.f32 %v810, 0.0
      %v981 = vmax.f32 %v813, 0.0
      %v982 = vmax.f32 %v818, 0.0
      %v983 = vmax.f32 %v821, 0.0
      %v984 = vmax.f32 %v826, 0.0
      %v985 = vmax.f32 %v829, 0.0
      %v986 = vmax.f32 %v834, 0.0
      %v987 = vmax.f32 %v837, 0.0
      %v988 = vmax.f32 %v842, 0.0
      %v989 = vmax.f32 %v845, 0.0
      %v990 = vmax.f32 %v850, 0.0
      %v991 = vmax.f32 %v853, 0.0
      %v992 = vmax.f32 %v858, 0.0
      %v993 = vmax.f32 %v861, 0.0
      %v994 = vmax.f32 %v866, 0.0
      %v995 = vmax.f32 %v869, 0.0
      %v996 = vmax.f32 %v874, 0.0
      %v997 = vmax.f32 %v877, 0.0
      %v998 = vmax.f32 %v882, 0.0
      %v999 = vmax.f32 %v885, 0.0
      %v1000 = vmax.f32 %v890, 0.0
      %v1001 = vmax.f32 %v893, 0.0
      %v1002 = vmax.f32 %v898, 0.0
      %v1003 = vmax.f32 %v901, 0.0
      %v1004 = vmax.f32 %v906, 0.0
      %v1005 = vmax.f32 %v909, 0.0
      %v1006 = vmax.f32 %v914, 0.0
      %v1007 = vmax.f32 %v917, 0.0
      %v1008 = vmax.f32 %v922, 0.0
      %v1009 = vmax.f32 %v925, 0.0
      %v1010 = vmax.f32 %v930, 0.0
      %v1011 = vmax.f32 %v933, 0.0
      %v1012 = vmax.f32 %v938, 0.0
      %v1013 = vmax.f32 %v941, 0.0
      %v1014 = vmax.f32 %v946, 0.0
      %v1015 = vmax.f32 %v949, 0.0
      %v1016 = vpack.c.bf16 %v953, %v952
      %v1017 = vpack.c.bf16 %v955, %v954
      %v1018 = vpack.c.bf16 %v957, %v956
      %v1019 = vpack.c.bf16 %v959, %v958
      %v1020 = vpack.c.bf16 %v961, %v960
      %v1021 = vpack.c.bf16 %v963, %v962
      %v1022 = vpack.c.bf16 %v965, %v964
      %v1023 = vpack.c.bf16 %v967, %v966
      %v1024 = vpack.c.bf16 %v969, %v968
      %v1025 = vpack.c.bf16 %v971, %v970
      %v1026 = vpack.c.bf16 %v973, %v972
      %v1027 = vpack.c.bf16 %v975, %v974
      %v1028 = vpack.c.bf16 %v977, %v976
      %v1029 = vpack.c.bf16 %v979, %v978
      %v1030 = vpack.c.bf16 %v981, %v980
      %v1031 = vpack.c.bf16 %v983, %v982
      %v1032 = vpack.c.bf16 %v985, %v984
      %v1033 = vpack.c.bf16 %v987, %v986
      %v1034 = vpack.c.bf16 %v989, %v988
      %v1035 = vpack.c.bf16 %v991, %v990
      %v1036 = vpack.c.bf16 %v993, %v992
      %v1037 = vpack.c.bf16 %v995, %v994
      %v1038 = vpack.c.bf16 %v997, %v996
      %v1039 = vpack.c.bf16 %v999, %v998
      %v1040 = vpack.c.bf16 %v1001, %v1000
      %v1041 = vpack.c.bf16 %v1003, %v1002
      %v1042 = vpack.c.bf16 %v1005, %v1004
      %v1043 = vpack.c.bf16 %v1007, %v1006
      %v1044 = vpack.c.bf16 %v1009, %v1008
      %v1045 = vpack.c.bf16 %v1011, %v1010
      %v1046 = vpack.c.bf16 %v1013, %v1012
      %v1047 = vpack.c.bf16 %v1015, %v1014
      %v1048 = vld [vmem:[%s3] sm:$0xf]
      %v1049 = vld [vmem:[%s3 + $0x4] sm:$0xf]
      %v1050 = vld [vmem:[%s4] sm:$0x1]
      %v1052 = vlaneseq
      %v1053 = vshrl.u32 %v1052, 7
      %v1054 = vsub.s32 0, %v1053
      %v1055 = vrot.slane %v1050, %v1054
      %v1059 = vunpack.c.l.b16 %v1048
      %v1060 = vunpack.c.l.b16 %v1049
      %v1061 = vpack.c.b16 %v1060, %v1059
      %vm1063 = vcmask 130048
      %v1065 = vsel %vm1063, %v1016, 0
      %v1068 = vsel %vm1063, %v1017, 0
      %v1071 = vsel %vm1063, %v1018, 0
      %v1074 = vsel %vm1063, %v1019, 0
      %v1077 = vsel %vm1063, %v1020, 0
      %v1080 = vsel %vm1063, %v1021, 0
      %v1083 = vsel %vm1063, %v1022, 0
      %v1086 = vsel %vm1063, %v1023, 0
      %v1089 = vsel %vm1063, %v1024, 0
      %v1092 = vsel %vm1063, %v1025, 0
      %v1095 = vsel %vm1063, %v1026, 0
      %v1098 = vsel %vm1063, %v1027, 0
      %v1101 = vsel %vm1063, %v1028, 0
      %v1104 = vsel %vm1063, %v1029, 0
      %v1107 = vsel %vm1063, %v1030, 0
      %v1110 = vsel %vm1063, %v1031, 0
      %v1113 = vsel %vm1063, %v1032, 0
      %v1116 = vsel %vm1063, %v1033, 0
      %v1119 = vsel %vm1063, %v1034, 0
      %v1122 = vsel %vm1063, %v1035, 0
      %v1125 = vsel %vm1063, %v1036, 0
      %v1128 = vsel %vm1063, %v1037, 0
      %v1131 = vsel %vm1063, %v1038, 0
      %v1134 = vsel %vm1063, %v1039, 0
      %v1137 = vsel %vm1063, %v1040, 0
      %v1140 = vsel %vm1063, %v1041, 0
      %v1143 = vsel %vm1063, %v1042, 0
      %v1146 = vsel %vm1063, %v1043, 0
      %v1149 = vsel %vm1063, %v1044, 0
      %v1152 = vsel %vm1063, %v1045, 0
      %v1155 = vsel %vm1063, %v1046, 0
      %v1158 = vsel %vm1063, %v1047, 0
      %1160 = vmatprep.subr.bf16.mxu0 0
      %1161 = vmatpush1.bf16.msra.mxu0 0
      %1162 = vmatprep.subr.bf16.mxu0 0
      %1163 = vmatpush1.bf16.msra.mxu0 0
      %1164 = vmatprep.subr.bf16.mxu0 0
      %1165 = vmatpush1.bf16.msra.mxu0 0
      %1166 = vmatprep.subr.bf16.mxu0 0
      %1167 = vmatpush1.bf16.msra.mxu0 0
      %1168 = vmatprep.subr.bf16.mxu0 0
      %1169 = vmatpush1.bf16.msra.mxu0 0
      %1170 = vmatprep.subr.bf16.mxu0 0
      %1171 = vmatpush1.bf16.msra.mxu0 0
      %1172 = vmatprep.subr.bf16.mxu0 0
      %1173 = vmatpush1.bf16.msra.mxu0 0
      %1174 = vmatprep.subr.bf16.mxu0 0
      %1175 = vmatpush1.bf16.msra.mxu0 %v1061
      %1176 = vmatprep.subr.bf16.mxu0 0
      %1177 = vmatpush2.bf16.msra.mxu0 0
      %1178 = vmatprep.subr.bf16.mxu0 0
      %1179 = vmatpush2.bf16.msra.mxu0 0
      %1180 = vmatprep.subr.bf16.mxu0 0
      %1181 = vmatpush2.bf16.msra.mxu0 0
      %1182 = vmatprep.subr.bf16.mxu0 0
      %1183 = vmatpush2.bf16.msra.mxu0 0
      %1184 = vmatprep.subr.bf16.mxu0 0
      %1185 = vmatpush2.bf16.msra.mxu0 0
      %1186 = vmatprep.subr.bf16.mxu0 0
      %1187 = vmatpush2.bf16.msra.mxu0 0
      %1188 = vmatprep.subr.bf16.mxu0 0
      %1189 = vmatpush2.bf16.msra.mxu0 0
      %1190 = vmatprep.subr.bf16.mxu0 0
      %1191 = vmatpush2.bf16.msra.mxu0 0
      %1192 = vmatprep.mubr.bf16.mxu0 0
      %1193 = vmatmul.mubr.bf16.gmra.mxu0 %v1065
      %v1194 = vpop.f32.mrf.mxu0
      %v1195 = vadd.f32 %v1055, %v1194
      %v1196 = vpop.f32.mrf.mxu0
      %v1197 = vpop.f32.mrf.mxu0
      %v1198 = vadd.f32 %v1055, %v1197
      %v1199 = vpop.f32.mrf.mxu0
      %1200 = vmatprep.mubr.bf16.mxu0 0
      %1201 = vmatmul.mubr.bf16.gmra.mxu0 %v1068
      %v1202 = vpop.f32.mrf.mxu0
      %v1203 = vadd.f32 %v1055, %v1202
      %v1204 = vpop.f32.mrf.mxu0
      %v1205 = vpop.f32.mrf.mxu0
      %v1206 = vadd.f32 %v1055, %v1205
      %v1207 = vpop.f32.mrf.mxu0
      %1208 = vmatprep.mubr.bf16.mxu0 0
      %1209 = vmatmul.mubr.bf16.gmra.mxu0 %v1071
      %v1210 = vpop.f32.mrf.mxu0
      %v1211 = vadd.f32 %v1055, %v1210
      %v1212 = vpop.f32.mrf.mxu0
      %v1213 = vpop.f32.mrf.mxu0
      %v1214 = vadd.f32 %v1055, %v1213
      %v1215 = vpop.f32.mrf.mxu0
      %1216 = vmatprep.mubr.bf16.mxu0 0
      %1217 = vmatmul.mubr.bf16.gmra.mxu0 %v1074
      %v1218 = vpop.f32.mrf.mxu0
      %v1219 = vadd.f32 %v1055, %v1218
      %v1220 = vpop.f32.mrf.mxu0
      %v1221 = vpop.f32.mrf.mxu0
      %v1222 = vadd.f32 %v1055, %v1221
      %v1223 = vpop.f32.mrf.mxu0
      %1224 = vmatprep.mubr.bf16.mxu0 0
      %1225 = vmatmul.mubr.bf16.gmra.mxu0 %v1077
      %v1226 = vpop.f32.mrf.mxu0
      %v1227 = vadd.f32 %v1055, %v1226
      %v1228 = vpop.f32.mrf.mxu0
      %v1229 = vpop.f32.mrf.mxu0
      %v1230 = vadd.f32 %v1055, %v1229
      %v1231 = vpop.f32.mrf.mxu0
      %1232 = vmatprep.mubr.bf16.mxu0 0
      %1233 = vmatmul.mubr.bf16.gmra.mxu0 %v1080
      %v1234 = vpop.f32.mrf.mxu0
      %v1235 = vadd.f32 %v1055, %v1234
      %v1236 = vpop.f32.mrf.mxu0
      %v1237 = vpop.f32.mrf.mxu0
      %v1238 = vadd.f32 %v1055, %v1237
      %v1239 = vpop.f32.mrf.mxu0
      %1240 = vmatprep.mubr.bf16.mxu0 0
      %1241 = vmatmul.mubr.bf16.gmra.mxu0 %v1083
      %v1242 = vpop.f32.mrf.mxu0
      %v1243 = vadd.f32 %v1055, %v1242
      %v1244 = vpop.f32.mrf.mxu0
      %v1245 = vpop.f32.mrf.mxu0
      %v1246 = vadd.f32 %v1055, %v1245
      %v1247 = vpop.f32.mrf.mxu0
      %1248 = vmatprep.mubr.bf16.mxu0 0
      %1249 = vmatmul.mubr.bf16.gmra.mxu0 %v1086
      %v1250 = vpop.f32.mrf.mxu0
      %v1251 = vadd.f32 %v1055, %v1250
      %v1252 = vpop.f32.mrf.mxu0
      %v1253 = vpop.f32.mrf.mxu0
      %v1254 = vadd.f32 %v1055, %v1253
      %v1255 = vpop.f32.mrf.mxu0
      %1256 = vmatprep.mubr.bf16.mxu0 0
      %1257 = vmatmul.mubr.bf16.gmra.mxu0 %v1089
      %v1258 = vpop.f32.mrf.mxu0
      %v1259 = vadd.f32 %v1055, %v1258
      %v1260 = vpop.f32.mrf.mxu0
      %v1261 = vpop.f32.mrf.mxu0
      %v1262 = vadd.f32 %v1055, %v1261
      %v1263 = vpop.f32.mrf.mxu0
      %1264 = vmatprep.mubr.bf16.mxu0 0
      %1265 = vmatmul.mubr.bf16.gmra.mxu0 %v1092
      %v1266 = vpop.f32.mrf.mxu0
      %v1267 = vadd.f32 %v1055, %v1266
      %v1268 = vpop.f32.mrf.mxu0
      %v1269 = vpop.f32.mrf.mxu0
      %v1270 = vadd.f32 %v1055, %v1269
      %v1271 = vpop.f32.mrf.mxu0
      %1272 = vmatprep.mubr.bf16.mxu0 0
      %1273 = vmatmul.mubr.bf16.gmra.mxu0 %v1095
      %v1274 = vpop.f32.mrf.mxu0
      %v1275 = vadd.f32 %v1055, %v1274
      %v1276 = vpop.f32.mrf.mxu0
      %v1277 = vpop.f32.mrf.mxu0
      %v1278 = vadd.f32 %v1055, %v1277
      %v1279 = vpop.f32.mrf.mxu0
      %1280 = vmatprep.mubr.bf16.mxu0 0
      %1281 = vmatmul.mubr.bf16.gmra.mxu0 %v1098
      %v1282 = vpop.f32.mrf.mxu0
      %v1283 = vadd.f32 %v1055, %v1282
      %v1284 = vpop.f32.mrf.mxu0
      %v1285 = vpop.f32.mrf.mxu0
      %v1286 = vadd.f32 %v1055, %v1285
      %v1287 = vpop.f32.mrf.mxu0
      %1288 = vmatprep.mubr.bf16.mxu0 0
      %1289 = vmatmul.mubr.bf16.gmra.mxu0 %v1101
      %v1290 = vpop.f32.mrf.mxu0
      %v1291 = vadd.f32 %v1055, %v1290
      %v1292 = vpop.f32.mrf.mxu0
      %v1293 = vpop.f32.mrf.mxu0
      %v1294 = vadd.f32 %v1055, %v1293
      %v1295 = vpop.f32.mrf.mxu0
      %1296 = vmatprep.mubr.bf16.mxu0 0
      %1297 = vmatmul.mubr.bf16.gmra.mxu0 %v1104
      %v1298 = vpop.f32.mrf.mxu0
      %v1299 = vadd.f32 %v1055, %v1298
      %v1300 = vpop.f32.mrf.mxu0
      %v1301 = vpop.f32.mrf.mxu0
      %v1302 = vadd.f32 %v1055, %v1301
      %v1303 = vpop.f32.mrf.mxu0
      %1304 = vmatprep.mubr.bf16.mxu0 0
      %1305 = vmatmul.mubr.bf16.gmra.mxu0 %v1107
      %v1306 = vpop.f32.mrf.mxu0
      %v1307 = vadd.f32 %v1055, %v1306
      %v1308 = vpop.f32.mrf.mxu0
      %v1309 = vpop.f32.mrf.mxu0
      %v1310 = vadd.f32 %v1055, %v1309
      %v1311 = vpop.f32.mrf.mxu0
      %1312 = vmatprep.mubr.bf16.mxu0 0
      %1313 = vmatmul.mubr.bf16.gmra.mxu0 %v1110
      %v1314 = vpop.f32.mrf.mxu0
      %v1315 = vadd.f32 %v1055, %v1314
      %v1316 = vpop.f32.mrf.mxu0
      %v1317 = vpop.f32.mrf.mxu0
      %v1318 = vadd.f32 %v1055, %v1317
      %v1319 = vpop.f32.mrf.mxu0
      %1320 = vmatprep.mubr.bf16.mxu0 0
      %1321 = vmatmul.mubr.bf16.gmra.mxu0 %v1113
      %v1322 = vpop.f32.mrf.mxu0
      %v1323 = vadd.f32 %v1055, %v1322
      %v1324 = vpop.f32.mrf.mxu0
      %v1325 = vpop.f32.mrf.mxu0
      %v1326 = vadd.f32 %v1055, %v1325
      %v1327 = vpop.f32.mrf.mxu0
      %1328 = vmatprep.mubr.bf16.mxu0 0
      %1329 = vmatmul.mubr.bf16.gmra.mxu0 %v1116
      %v1330 = vpop.f32.mrf.mxu0
      %v1331 = vadd.f32 %v1055, %v1330
      %v1332 = vpop.f32.mrf.mxu0
      %v1333 = vpop.f32.mrf.mxu0
      %v1334 = vadd.f32 %v1055, %v1333
      %v1335 = vpop.f32.mrf.mxu0
      %1336 = vmatprep.mubr.bf16.mxu0 0
      %1337 = vmatmul.mubr.bf16.gmra.mxu0 %v1119
      %v1338 = vpop.f32.mrf.mxu0
      %v1339 = vadd.f32 %v1055, %v1338
      %v1340 = vpop.f32.mrf.mxu0
      %v1341 = vpop.f32.mrf.mxu0
      %v1342 = vadd.f32 %v1055, %v1341
      %v1343 = vpop.f32.mrf.mxu0
      %1344 = vmatprep.mubr.bf16.mxu0 0
      %1345 = vmatmul.mubr.bf16.gmra.mxu0 %v1122
      %v1346 = vpop.f32.mrf.mxu0
      %v1347 = vadd.f32 %v1055, %v1346
      %v1348 = vpop.f32.mrf.mxu0
      %v1349 = vpop.f32.mrf.mxu0
      %v1350 = vadd.f32 %v1055, %v1349
      %v1351 = vpop.f32.mrf.mxu0
      %1352 = vmatprep.mubr.bf16.mxu0 0
      %1353 = vmatmul.mubr.bf16.gmra.mxu0 %v1125
      %v1354 = vpop.f32.mrf.mxu0
      %v1355 = vadd.f32 %v1055, %v1354
      %v1356 = vpop.f32.mrf.mxu0
      %v1357 = vpop.f32.mrf.mxu0
      %v1358 = vadd.f32 %v1055, %v1357
      %v1359 = vpop.f32.mrf.mxu0
      %1360 = vmatprep.mubr.bf16.mxu0 0
      %1361 = vmatmul.mubr.bf16.gmra.mxu0 %v1128
      %v1362 = vpop.f32.mrf.mxu0
      %v1363 = vadd.f32 %v1055, %v1362
      %v1364 = vpop.f32.mrf.mxu0
      %v1365 = vpop.f32.mrf.mxu0
      %v1366 = vadd.f32 %v1055, %v1365
      %v1367 = vpop.f32.mrf.mxu0
      %1368 = vmatprep.mubr.bf16.mxu0 0
      %1369 = vmatmul.mubr.bf16.gmra.mxu0 %v1131
      %v1370 = vpop.f32.mrf.mxu0
      %v1371 = vadd.f32 %v1055, %v1370
      %v1372 = vpop.f32.mrf.mxu0
      %v1373 = vpop.f32.mrf.mxu0
      %v1374 = vadd.f32 %v1055, %v1373
      %v1375 = vpop.f32.mrf.mxu0
      %1376 = vmatprep.mubr.bf16.mxu0 0
      %1377 = vmatmul.mubr.bf16.gmra.mxu0 %v1134
      %v1378 = vpop.f32.mrf.mxu0
      %v1379 = vadd.f32 %v1055, %v1378
      %v1380 = vpop.f32.mrf.mxu0
      %v1381 = vpop.f32.mrf.mxu0
      %v1382 = vadd.f32 %v1055, %v1381
      %v1383 = vpop.f32.mrf.mxu0
      %1384 = vmatprep.mubr.bf16.mxu0 0
      %1385 = vmatmul.mubr.bf16.gmra.mxu0 %v1137
      %v1386 = vpop.f32.mrf.mxu0
      %v1387 = vadd.f32 %v1055, %v1386
      %v1388 = vpop.f32.mrf.mxu0
      %v1389 = vpop.f32.mrf.mxu0
      %v1390 = vadd.f32 %v1055, %v1389
      %v1391 = vpop.f32.mrf.mxu0
      %1392 = vmatprep.mubr.bf16.mxu0 0
      %1393 = vmatmul.mubr.bf16.gmra.mxu0 %v1140
      %v1394 = vpop.f32.mrf.mxu0
      %v1395 = vadd.f32 %v1055, %v1394
      %v1396 = vpop.f32.mrf.mxu0
      %v1397 = vpop.f32.mrf.mxu0
      %v1398 = vadd.f32 %v1055, %v1397
      %v1399 = vpop.f32.mrf.mxu0
      %1400 = vmatprep.mubr.bf16.mxu0 0
      %1401 = vmatmul.mubr.bf16.gmra.mxu0 %v1143
      %v1402 = vpop.f32.mrf.mxu0
      %v1403 = vadd.f32 %v1055, %v1402
      %v1404 = vpop.f32.mrf.mxu0
      %v1405 = vpop.f32.mrf.mxu0
      %v1406 = vadd.f32 %v1055, %v1405
      %v1407 = vpop.f32.mrf.mxu0
      %1408 = vmatprep.mubr.bf16.mxu0 0
      %1409 = vmatmul.mubr.bf16.gmra.mxu0 %v1146
      %v1410 = vpop.f32.mrf.mxu0
      %v1411 = vadd.f32 %v1055, %v1410
      %v1412 = vpop.f32.mrf.mxu0
      %v1413 = vpop.f32.mrf.mxu0
      %v1414 = vadd.f32 %v1055, %v1413
      %v1415 = vpop.f32.mrf.mxu0
      %1416 = vmatprep.mubr.bf16.mxu0 0
      %1417 = vmatmul.mubr.bf16.gmra.mxu0 %v1149
      %v1418 = vpop.f32.mrf.mxu0
      %v1419 = vadd.f32 %v1055, %v1418
      %v1420 = vpop.f32.mrf.mxu0
      %v1421 = vpop.f32.mrf.mxu0
      %v1422 = vadd.f32 %v1055, %v1421
      %v1423 = vpop.f32.mrf.mxu0
      %1424 = vmatprep.mubr.bf16.mxu0 0
      %1425 = vmatmul.mubr.bf16.gmra.mxu0 %v1152
      %v1426 = vpop.f32.mrf.mxu0
      %v1427 = vadd.f32 %v1055, %v1426
      %v1428 = vpop.f32.mrf.mxu0
      %v1429 = vpop.f32.mrf.mxu0
      %v1430 = vadd.f32 %v1055, %v1429
      %v1431 = vpop.f32.mrf.mxu0
      %1432 = vmatprep.mubr.bf16.mxu0 0
      %1433 = vmatmul.mubr.bf16.gmra.mxu0 %v1155
      %v1434 = vpop.f32.mrf.mxu0
      %v1435 = vadd.f32 %v1055, %v1434
      %v1436 = vpop.f32.mrf.mxu0
      %v1437 = vpop.f32.mrf.mxu0
      %v1438 = vadd.f32 %v1055, %v1437
      %v1439 = vpop.f32.mrf.mxu0
      %1440 = vmatprep.mubr.bf16.mxu0 0
      %1441 = vmatmul.mubr.bf16.gmra.mxu0 %v1158
      %v1442 = vpop.f32.mrf.mxu0
      %v1443 = vadd.f32 %v1055, %v1442
      %v1444 = vpop.f32.mrf.mxu0
      %v1445 = vpop.f32.mrf.mxu0
      %v1446 = vadd.f32 %v1055, %v1445
      %v1447 = vpop.f32.mrf.mxu0
      %1448 = vdwg.mxu0
      %v1449 = vmax.f32 %v1195, 0.0
      %v1450 = vmax.f32 %v1198, 0.0
      %v1451 = vmax.f32 %v1203, 0.0
      %v1452 = vmax.f32 %v1206, 0.0
      %v1453 = vmax.f32 %v1211, 0.0
      %v1454 = vmax.f32 %v1214, 0.0
      %v1455 = vmax.f32 %v1219, 0.0
      %v1456 = vmax.f32 %v1222, 0.0
      %v1457 = vmax.f32 %v1227, 0.0
      %v1458 = vmax.f32 %v1230, 0.0
      %v1459 = vmax.f32 %v1235, 0.0
      %v1460 = vmax.f32 %v1238, 0.0
      %v1461 = vmax.f32 %v1243, 0.0
      %v1462 = vmax.f32 %v1246, 0.0
      %v1463 = vmax.f32 %v1251, 0.0
      %v1464 = vmax.f32 %v1254, 0.0
      %v1465 = vmax.f32 %v1259, 0.0
      %v1466 = vmax.f32 %v1262, 0.0
      %v1467 = vmax.f32 %v1267, 0.0
      %v1468 = vmax.f32 %v1270, 0.0
      %v1469 = vmax.f32 %v1275, 0.0
      %v1470 = vmax.f32 %v1278, 0.0
      %v1471 = vmax.f32 %v1283, 0.0
      %v1472 = vmax.f32 %v1286, 0.0
      %v1473 = vmax.f32 %v1291, 0.0
      %v1474 = vmax.f32 %v1294, 0.0
      %v1475 = vmax.f32 %v1299, 0.0
      %v1476 = vmax.f32 %v1302, 0.0
      %v1477 = vmax.f32 %v1307, 0.0
      %v1478 = vmax.f32 %v1310, 0.0
      %v1479 = vmax.f32 %v1315, 0.0
      %v1480 = vmax.f32 %v1318, 0.0
      %v1481 = vmax.f32 %v1323, 0.0
      %v1482 = vmax.f32 %v1326, 0.0
      %v1483 = vmax.f32 %v1331, 0.0
      %v1484 = vmax.f32 %v1334, 0.0
      %v1485 = vmax.f32 %v1339, 0.0
      %v1486 = vmax.f32 %v1342, 0.0
      %v1487 = vmax.f32 %v1347, 0.0
      %v1488 = vmax.f32 %v1350, 0.0
      %v1489 = vmax.f32 %v1355, 0.0
      %v1490 = vmax.f32 %v1358, 0.0
      %v1491 = vmax.f32 %v1363, 0.0
      %v1492 = vmax.f32 %v1366, 0.0
      %v1493 = vmax.f32 %v1371, 0.0
      %v1494 = vmax.f32 %v1374, 0.0
      %v1495 = vmax.f32 %v1379, 0.0
      %v1496 = vmax.f32 %v1382, 0.0
      %v1497 = vmax.f32 %v1387, 0.0
      %v1498 = vmax.f32 %v1390, 0.0
      %v1499 = vmax.f32 %v1395, 0.0
      %v1500 = vmax.f32 %v1398, 0.0
      %v1501 = vmax.f32 %v1403, 0.0
      %v1502 = vmax.f32 %v1406, 0.0
      %v1503 = vmax.f32 %v1411, 0.0
      %v1504 = vmax.f32 %v1414, 0.0
      %v1505 = vmax.f32 %v1419, 0.0
      %v1506 = vmax.f32 %v1422, 0.0
      %v1507 = vmax.f32 %v1427, 0.0
      %v1508 = vmax.f32 %v1430, 0.0
      %v1509 = vmax.f32 %v1435, 0.0
      %v1510 = vmax.f32 %v1438, 0.0
      %v1511 = vmax.f32 %v1443, 0.0
      %v1512 = vmax.f32 %v1446, 0.0
      %v1513 = vpack.c.bf16 %v1450, %v1449
      %v1514 = vpack.c.bf16 %v1452, %v1451
      %v1515 = vpack.c.bf16 %v1454, %v1453
      %v1516 = vpack.c.bf16 %v1456, %v1455
      %v1517 = vpack.c.bf16 %v1458, %v1457
      %v1518 = vpack.c.bf16 %v1460, %v1459
      %v1519 = vpack.c.bf16 %v1462, %v1461
      %v1520 = vpack.c.bf16 %v1464, %v1463
      %v1521 = vpack.c.bf16 %v1466, %v1465
      %v1522 = vpack.c.bf16 %v1468, %v1467
      %v1523 = vpack.c.bf16 %v1470, %v1469
      %v1524 = vpack.c.bf16 %v1472, %v1471
      %v1525 = vpack.c.bf16 %v1474, %v1473
      %v1526 = vpack.c.bf16 %v1476, %v1475
      %v1527 = vpack.c.bf16 %v1478, %v1477
      %v1528 = vpack.c.bf16 %v1480, %v1479
      %v1529 = vpack.c.bf16 %v1482, %v1481
      %v1530 = vpack.c.bf16 %v1484, %v1483
      %v1531 = vpack.c.bf16 %v1486, %v1485
      %v1532 = vpack.c.bf16 %v1488, %v1487
      %v1533 = vpack.c.bf16 %v1490, %v1489
      %v1534 = vpack.c.bf16 %v1492, %v1491
      %v1535 = vpack.c.bf16 %v1494, %v1493
      %v1536 = vpack.c.bf16 %v1496, %v1495
      %v1537 = vpack.c.bf16 %v1498, %v1497
      %v1538 = vpack.c.bf16 %v1500, %v1499
      %v1539 = vpack.c.bf16 %v1502, %v1501
      %v1540 = vpack.c.bf16 %v1504, %v1503
      %v1541 = vpack.c.bf16 %v1506, %v1505
      %v1542 = vpack.c.bf16 %v1508, %v1507
      %v1543 = vpack.c.bf16 %v1510, %v1509
      %v1544 = vpack.c.bf16 %v1512, %v1511
      %v1545 = vld [vmem:[%s5] sm:$0xf]
      %v1546 = vld [vmem:[%s5 + $0x4] sm:$0xf]
      %v1547 = vld [vmem:[%s6] sm:$0x1]
      %v1549 = vlaneseq
      %v1550 = vshrl.u32 %v1549, 7
      %v1551 = vsub.s32 0, %v1550
      %v1552 = vrot.slane %v1547, %v1551
      %v1556 = vunpack.c.l.b16 %v1545
      %v1557 = vunpack.c.l.b16 %v1546
      %v1558 = vpack.c.b16 %v1557, %v1556
      %v1561 = vsel %vm1063, %v1513, 0
      %v1564 = vsel %vm1063, %v1514, 0
      %v1567 = vsel %vm1063, %v1515, 0
      %v1570 = vsel %vm1063, %v1516, 0
      %v1573 = vsel %vm1063, %v1517, 0
      %v1576 = vsel %vm1063, %v1518, 0
      %v1579 = vsel %vm1063, %v1519, 0
      %v1582 = vsel %vm1063, %v1520, 0
      %v1585 = vsel %vm1063, %v1521, 0
      %v1588 = vsel %vm1063, %v1522, 0
      %v1591 = vsel %vm1063, %v1523, 0
      %v1594 = vsel %vm1063, %v1524, 0
      %v1597 = vsel %vm1063, %v1525, 0
      %v1600 = vsel %vm1063, %v1526, 0
      %v1603 = vsel %vm1063, %v1527, 0
      %v1606 = vsel %vm1063, %v1528, 0
      %v1609 = vsel %vm1063, %v1529, 0
      %v1612 = vsel %vm1063, %v1530, 0
      %v1615 = vsel %vm1063, %v1531, 0
      %v1618 = vsel %vm1063, %v1532, 0
      %v1621 = vsel %vm1063, %v1533, 0
      %v1624 = vsel %vm1063, %v1534, 0
      %v1627 = vsel %vm1063, %v1535, 0
      %v1630 = vsel %vm1063, %v1536, 0
      %v1633 = vsel %vm1063, %v1537, 0
      %v1636 = vsel %vm1063, %v1538, 0
      %v1639 = vsel %vm1063, %v1539, 0
      %v1642 = vsel %vm1063, %v1540, 0
      %v1645 = vsel %vm1063, %v1541, 0
      %v1648 = vsel %vm1063, %v1542, 0
      %v1651 = vsel %vm1063, %v1543, 0
      %v1654 = vsel %vm1063, %v1544, 0
      %1656 = vmatprep.subr.bf16.mxu0 0
      %1657 = vmatpush1.bf16.msra.mxu0 0
      %1658 = vmatprep.subr.bf16.mxu0 0
      %1659 = vmatpush1.bf16.msra.mxu0 0
      %1660 = vmatprep.subr.bf16.mxu0 0
      %1661 = vmatpush1.bf16.msra.mxu0 0
      %1662 = vmatprep.subr.bf16.mxu0 0
      %1663 = vmatpush1.bf16.msra.mxu0 0
      %1664 = vmatprep.subr.bf16.mxu0 0
      %1665 = vmatpush1.bf16.msra.mxu0 0
      %1666 = vmatprep.subr.bf16.mxu0 0
      %1667 = vmatpush1.bf16.msra.mxu0 0
      %1668 = vmatprep.subr.bf16.mxu0 0
      %1669 = vmatpush1.bf16.msra.mxu0 0
      %1670 = vmatprep.subr.bf16.mxu0 0
      %1671 = vmatpush1.bf16.msra.mxu0 %v1558
      %1672 = vmatprep.subr.bf16.mxu0 0
      %1673 = vmatpush2.bf16.msra.mxu0 0
      %1674 = vmatprep.subr.bf16.mxu0 0
      %1675 = vmatpush2.bf16.msra.mxu0 0
      %1676 = vmatprep.subr.bf16.mxu0 0
      %1677 = vmatpush2.bf16.msra.mxu0 0
      %1678 = vmatprep.subr.bf16.mxu0 0
      %1679 = vmatpush2.bf16.msra.mxu0 0
      %1680 = vmatprep.subr.bf16.mxu0 0
      %1681 = vmatpush2.bf16.msra.mxu0 0
      %1682 = vmatprep.subr.bf16.mxu0 0
      %1683 = vmatpush2.bf16.msra.mxu0 0
      %1684 = vmatprep.subr.bf16.mxu0 0
      %1685 = vmatpush2.bf16.msra.mxu0 0
      %1686 = vmatprep.subr.bf16.mxu0 0
      %1687 = vmatpush2.bf16.msra.mxu0 0
      %1688 = vmatprep.mubr.bf16.mxu0 0
      %1689 = vmatmul.mubr.bf16.gmra.mxu0 %v1561
      %v1690 = vpop.f32.mrf.mxu0
      %v1691 = vadd.f32 %v1552, %v1690
      %v1692 = vpop.f32.mrf.mxu0
      %v1693 = vpop.f32.mrf.mxu0
      %v1694 = vadd.f32 %v1552, %v1693
      %v1695 = vpop.f32.mrf.mxu0
      %1696 = vmatprep.mubr.bf16.mxu0 0
      %1697 = vmatmul.mubr.bf16.gmra.mxu0 %v1564
      %v1698 = vpop.f32.mrf.mxu0
      %v1699 = vadd.f32 %v1552, %v1698
      %v1700 = vpop.f32.mrf.mxu0
      %v1701 = vpop.f32.mrf.mxu0
      %v1702 = vadd.f32 %v1552, %v1701
      %v1703 = vpop.f32.mrf.mxu0
      %1704 = vmatprep.mubr.bf16.mxu0 0
      %1705 = vmatmul.mubr.bf16.gmra.mxu0 %v1567
      %v1706 = vpop.f32.mrf.mxu0
      %v1707 = vadd.f32 %v1552, %v1706
      %v1708 = vpop.f32.mrf.mxu0
      %v1709 = vpop.f32.mrf.mxu0
      %v1710 = vadd.f32 %v1552, %v1709
      %v1711 = vpop.f32.mrf.mxu0
      %1712 = vmatprep.mubr.bf16.mxu0 0
      %1713 = vmatmul.mubr.bf16.gmra.mxu0 %v1570
      %v1714 = vpop.f32.mrf.mxu0
      %v1715 = vadd.f32 %v1552, %v1714
      %v1716 = vpop.f32.mrf.mxu0
      %v1717 = vpop.f32.mrf.mxu0
      %v1718 = vadd.f32 %v1552, %v1717
      %v1719 = vpop.f32.mrf.mxu0
      %1720 = vmatprep.mubr.bf16.mxu0 0
      %1721 = vmatmul.mubr.bf16.gmra.mxu0 %v1573
      %v1722 = vpop.f32.mrf.mxu0
      %v1723 = vadd.f32 %v1552, %v1722
      %v1724 = vpop.f32.mrf.mxu0
      %v1725 = vpop.f32.mrf.mxu0
      %v1726 = vadd.f32 %v1552, %v1725
      %v1727 = vpop.f32.mrf.mxu0
      %1728 = vmatprep.mubr.bf16.mxu0 0
      %1729 = vmatmul.mubr.bf16.gmra.mxu0 %v1576
      %v1730 = vpop.f32.mrf.mxu0
      %v1731 = vadd.f32 %v1552, %v1730
      %v1732 = vpop.f32.mrf.mxu0
      %v1733 = vpop.f32.mrf.mxu0
      %v1734 = vadd.f32 %v1552, %v1733
      %v1735 = vpop.f32.mrf.mxu0
      %1736 = vmatprep.mubr.bf16.mxu0 0
      %1737 = vmatmul.mubr.bf16.gmra.mxu0 %v1579
      %v1738 = vpop.f32.mrf.mxu0
      %v1739 = vadd.f32 %v1552, %v1738
      %v1740 = vpop.f32.mrf.mxu0
      %v1741 = vpop.f32.mrf.mxu0
      %v1742 = vadd.f32 %v1552, %v1741
      %v1743 = vpop.f32.mrf.mxu0
      %1744 = vmatprep.mubr.bf16.mxu0 0
      %1745 = vmatmul.mubr.bf16.gmra.mxu0 %v1582
      %v1746 = vpop.f32.mrf.mxu0
      %v1747 = vadd.f32 %v1552, %v1746
      %v1748 = vpop.f32.mrf.mxu0
      %v1749 = vpop.f32.mrf.mxu0
      %v1750 = vadd.f32 %v1552, %v1749
      %v1751 = vpop.f32.mrf.mxu0
      %1752 = vmatprep.mubr.bf16.mxu0 0
      %1753 = vmatmul.mubr.bf16.gmra.mxu0 %v1585
      %v1754 = vpop.f32.mrf.mxu0
      %v1755 = vadd.f32 %v1552, %v1754
      %v1756 = vpop.f32.mrf.mxu0
      %v1757 = vpop.f32.mrf.mxu0
      %v1758 = vadd.f32 %v1552, %v1757
      %v1759 = vpop.f32.mrf.mxu0
      %1760 = vmatprep.mubr.bf16.mxu0 0
      %1761 = vmatmul.mubr.bf16.gmra.mxu0 %v1588
      %v1762 = vpop.f32.mrf.mxu0
      %v1763 = vadd.f32 %v1552, %v1762
      %v1764 = vpop.f32.mrf.mxu0
      %v1765 = vpop.f32.mrf.mxu0
      %v1766 = vadd.f32 %v1552, %v1765
      %v1767 = vpop.f32.mrf.mxu0
      %1768 = vmatprep.mubr.bf16.mxu0 0
      %1769 = vmatmul.mubr.bf16.gmra.mxu0 %v1591
      %v1770 = vpop.f32.mrf.mxu0
      %v1771 = vadd.f32 %v1552, %v1770
      %v1772 = vpop.f32.mrf.mxu0
      %v1773 = vpop.f32.mrf.mxu0
      %v1774 = vadd.f32 %v1552, %v1773
      %v1775 = vpop.f32.mrf.mxu0
      %1776 = vmatprep.mubr.bf16.mxu0 0
      %1777 = vmatmul.mubr.bf16.gmra.mxu0 %v1594
      %v1778 = vpop.f32.mrf.mxu0
      %v1779 = vadd.f32 %v1552, %v1778
      %v1780 = vpop.f32.mrf.mxu0
      %v1781 = vpop.f32.mrf.mxu0
      %v1782 = vadd.f32 %v1552, %v1781
      %v1783 = vpop.f32.mrf.mxu0
      %1784 = vmatprep.mubr.bf16.mxu0 0
      %1785 = vmatmul.mubr.bf16.gmra.mxu0 %v1597
      %v1786 = vpop.f32.mrf.mxu0
      %v1787 = vadd.f32 %v1552, %v1786
      %v1788 = vpop.f32.mrf.mxu0
      %v1789 = vpop.f32.mrf.mxu0
      %v1790 = vadd.f32 %v1552, %v1789
      %v1791 = vpop.f32.mrf.mxu0
      %1792 = vmatprep.mubr.bf16.mxu0 0
      %1793 = vmatmul.mubr.bf16.gmra.mxu0 %v1600
      %v1794 = vpop.f32.mrf.mxu0
      %v1795 = vadd.f32 %v1552, %v1794
      %v1796 = vpop.f32.mrf.mxu0
      %v1797 = vpop.f32.mrf.mxu0
      %v1798 = vadd.f32 %v1552, %v1797
      %v1799 = vpop.f32.mrf.mxu0
      %1800 = vmatprep.mubr.bf16.mxu0 0
      %1801 = vmatmul.mubr.bf16.gmra.mxu0 %v1603
      %v1802 = vpop.f32.mrf.mxu0
      %v1803 = vadd.f32 %v1552, %v1802
      %v1804 = vpop.f32.mrf.mxu0
      %v1805 = vpop.f32.mrf.mxu0
      %v1806 = vadd.f32 %v1552, %v1805
      %v1807 = vpop.f32.mrf.mxu0
      %1808 = vmatprep.mubr.bf16.mxu0 0
      %1809 = vmatmul.mubr.bf16.gmra.mxu0 %v1606
      %v1810 = vpop.f32.mrf.mxu0
      %v1811 = vadd.f32 %v1552, %v1810
      %v1812 = vpop.f32.mrf.mxu0
      %v1813 = vpop.f32.mrf.mxu0
      %v1814 = vadd.f32 %v1552, %v1813
      %v1815 = vpop.f32.mrf.mxu0
      %1816 = vmatprep.mubr.bf16.mxu0 0
      %1817 = vmatmul.mubr.bf16.gmra.mxu0 %v1609
      %v1818 = vpop.f32.mrf.mxu0
      %v1819 = vadd.f32 %v1552, %v1818
      %v1820 = vpop.f32.mrf.mxu0
      %v1821 = vpop.f32.mrf.mxu0
      %v1822 = vadd.f32 %v1552, %v1821
      %v1823 = vpop.f32.mrf.mxu0
      %1824 = vmatprep.mubr.bf16.mxu0 0
      %1825 = vmatmul.mubr.bf16.gmra.mxu0 %v1612
      %v1826 = vpop.f32.mrf.mxu0
      %v1827 = vadd.f32 %v1552, %v1826
      %v1828 = vpop.f32.mrf.mxu0
      %v1829 = vpop.f32.mrf.mxu0
      %v1830 = vadd.f32 %v1552, %v1829
      %v1831 = vpop.f32.mrf.mxu0
      %1832 = vmatprep.mubr.bf16.mxu0 0
      %1833 = vmatmul.mubr.bf16.gmra.mxu0 %v1615
      %v1834 = vpop.f32.mrf.mxu0
      %v1835 = vadd.f32 %v1552, %v1834
      %v1836 = vpop.f32.mrf.mxu0
      %v1837 = vpop.f32.mrf.mxu0
      %v1838 = vadd.f32 %v1552, %v1837
      %v1839 = vpop.f32.mrf.mxu0
      %1840 = vmatprep.mubr.bf16.mxu0 0
      %1841 = vmatmul.mubr.bf16.gmra.mxu0 %v1618
      %v1842 = vpop.f32.mrf.mxu0
      %v1843 = vadd.f32 %v1552, %v1842
      %v1844 = vpop.f32.mrf.mxu0
      %v1845 = vpop.f32.mrf.mxu0
      %v1846 = vadd.f32 %v1552, %v1845
      %v1847 = vpop.f32.mrf.mxu0
      %1848 = vmatprep.mubr.bf16.mxu0 0
      %1849 = vmatmul.mubr.bf16.gmra.mxu0 %v1621
      %v1850 = vpop.f32.mrf.mxu0
      %v1851 = vadd.f32 %v1552, %v1850
      %v1852 = vpop.f32.mrf.mxu0
      %v1853 = vpop.f32.mrf.mxu0
      %v1854 = vadd.f32 %v1552, %v1853
      %v1855 = vpop.f32.mrf.mxu0
      %1856 = vmatprep.mubr.bf16.mxu0 0
      %1857 = vmatmul.mubr.bf16.gmra.mxu0 %v1624
      %v1858 = vpop.f32.mrf.mxu0
      %v1859 = vadd.f32 %v1552, %v1858
      %v1860 = vpop.f32.mrf.mxu0
      %v1861 = vpop.f32.mrf.mxu0
      %v1862 = vadd.f32 %v1552, %v1861
      %v1863 = vpop.f32.mrf.mxu0
      %1864 = vmatprep.mubr.bf16.mxu0 0
      %1865 = vmatmul.mubr.bf16.gmra.mxu0 %v1627
      %v1866 = vpop.f32.mrf.mxu0
      %v1867 = vadd.f32 %v1552, %v1866
      %v1868 = vpop.f32.mrf.mxu0
      %v1869 = vpop.f32.mrf.mxu0
      %v1870 = vadd.f32 %v1552, %v1869
      %v1871 = vpop.f32.mrf.mxu0
      %1872 = vmatprep.mubr.bf16.mxu0 0
      %1873 = vmatmul.mubr.bf16.gmra.mxu0 %v1630
      %v1874 = vpop.f32.mrf.mxu0
      %v1875 = vadd.f32 %v1552, %v1874
      %v1876 = vpop.f32.mrf.mxu0
      %v1877 = vpop.f32.mrf.mxu0
      %v1878 = vadd.f32 %v1552, %v1877
      %v1879 = vpop.f32.mrf.mxu0
      %1880 = vmatprep.mubr.bf16.mxu0 0
      %1881 = vmatmul.mubr.bf16.gmra.mxu0 %v1633
      %v1882 = vpop.f32.mrf.mxu0
      %v1883 = vadd.f32 %v1552, %v1882
      %v1884 = vpop.f32.mrf.mxu0
      %v1885 = vpop.f32.mrf.mxu0
      %v1886 = vadd.f32 %v1552, %v1885
      %v1887 = vpop.f32.mrf.mxu0
      %1888 = vmatprep.mubr.bf16.mxu0 0
      %1889 = vmatmul.mubr.bf16.gmra.mxu0 %v1636
      %v1890 = vpop.f32.mrf.mxu0
      %v1891 = vadd.f32 %v1552, %v1890
      %v1892 = vpop.f32.mrf.mxu0
      %v1893 = vpop.f32.mrf.mxu0
      %v1894 = vadd.f32 %v1552, %v1893
      %v1895 = vpop.f32.mrf.mxu0
      %1896 = vmatprep.mubr.bf16.mxu0 0
      %1897 = vmatmul.mubr.bf16.gmra.mxu0 %v1639
      %v1898 = vpop.f32.mrf.mxu0
      %v1899 = vadd.f32 %v1552, %v1898
      %v1900 = vpop.f32.mrf.mxu0
      %v1901 = vpop.f32.mrf.mxu0
      %v1902 = vadd.f32 %v1552, %v1901
      %v1903 = vpop.f32.mrf.mxu0
      %1904 = vmatprep.mubr.bf16.mxu0 0
      %1905 = vmatmul.mubr.bf16.gmra.mxu0 %v1642
      %v1906 = vpop.f32.mrf.mxu0
      %v1907 = vadd.f32 %v1552, %v1906
      %v1908 = vpop.f32.mrf.mxu0
      %v1909 = vpop.f32.mrf.mxu0
      %v1910 = vadd.f32 %v1552, %v1909
      %v1911 = vpop.f32.mrf.mxu0
      %1912 = vmatprep.mubr.bf16.mxu0 0
      %1913 = vmatmul.mubr.bf16.gmra.mxu0 %v1645
      %v1914 = vpop.f32.mrf.mxu0
      %v1915 = vadd.f32 %v1552, %v1914
      %v1916 = vpop.f32.mrf.mxu0
      %v1917 = vpop.f32.mrf.mxu0
      %v1918 = vadd.f32 %v1552, %v1917
      %v1919 = vpop.f32.mrf.mxu0
      %1920 = vmatprep.mubr.bf16.mxu0 0
      %1921 = vmatmul.mubr.bf16.gmra.mxu0 %v1648
      %v1922 = vpop.f32.mrf.mxu0
      %v1923 = vadd.f32 %v1552, %v1922
      %v1924 = vpop.f32.mrf.mxu0
      %v1925 = vpop.f32.mrf.mxu0
      %v1926 = vadd.f32 %v1552, %v1925
      %v1927 = vpop.f32.mrf.mxu0
      %1928 = vmatprep.mubr.bf16.mxu0 0
      %1929 = vmatmul.mubr.bf16.gmra.mxu0 %v1651
      %v1930 = vpop.f32.mrf.mxu0
      %v1931 = vadd.f32 %v1552, %v1930
      %v1932 = vpop.f32.mrf.mxu0
      %v1933 = vpop.f32.mrf.mxu0
      %v1934 = vadd.f32 %v1552, %v1933
      %v1935 = vpop.f32.mrf.mxu0
      %1936 = vmatprep.mubr.bf16.mxu0 0
      %1937 = vmatmul.mubr.bf16.gmra.mxu0 %v1654
      %v1938 = vpop.f32.mrf.mxu0
      %v1939 = vadd.f32 %v1552, %v1938
      %v1940 = vpop.f32.mrf.mxu0
      %v1941 = vpop.f32.mrf.mxu0
      %v1942 = vadd.f32 %v1552, %v1941
      %v1943 = vpop.f32.mrf.mxu0
      %1944 = vdwg.mxu0
      %v1945 = vmax.f32 %v1691, 0.0
      %v1946 = vmax.f32 %v1694, 0.0
      %v1947 = vmax.f32 %v1699, 0.0
      %v1948 = vmax.f32 %v1702, 0.0
      %v1949 = vmax.f32 %v1707, 0.0
      %v1950 = vmax.f32 %v1710, 0.0
      %v1951 = vmax.f32 %v1715, 0.0
      %v1952 = vmax.f32 %v1718, 0.0
      %v1953 = vmax.f32 %v1723, 0.0
      %v1954 = vmax.f32 %v1726, 0.0
      %v1955 = vmax.f32 %v1731, 0.0
      %v1956 = vmax.f32 %v1734, 0.0
      %v1957 = vmax.f32 %v1739, 0.0
      %v1958 = vmax.f32 %v1742, 0.0
      %v1959 = vmax.f32 %v1747, 0.0
      %v1960 = vmax.f32 %v1750, 0.0
      %v1961 = vmax.f32 %v1755, 0.0
      %v1962 = vmax.f32 %v1758, 0.0
      %v1963 = vmax.f32 %v1763, 0.0
      %v1964 = vmax.f32 %v1766, 0.0
      %v1965 = vmax.f32 %v1771, 0.0
      %v1966 = vmax.f32 %v1774, 0.0
      %v1967 = vmax.f32 %v1779, 0.0
      %v1968 = vmax.f32 %v1782, 0.0
      %v1969 = vmax.f32 %v1787, 0.0
      %v1970 = vmax.f32 %v1790, 0.0
      %v1971 = vmax.f32 %v1795, 0.0
      %v1972 = vmax.f32 %v1798, 0.0
      %v1973 = vmax.f32 %v1803, 0.0
      %v1974 = vmax.f32 %v1806, 0.0
      %v1975 = vmax.f32 %v1811, 0.0
      %v1976 = vmax.f32 %v1814, 0.0
      %v1977 = vmax.f32 %v1819, 0.0
      %v1978 = vmax.f32 %v1822, 0.0
      %v1979 = vmax.f32 %v1827, 0.0
      %v1980 = vmax.f32 %v1830, 0.0
      %v1981 = vmax.f32 %v1835, 0.0
      %v1982 = vmax.f32 %v1838, 0.0
      %v1983 = vmax.f32 %v1843, 0.0
      %v1984 = vmax.f32 %v1846, 0.0
      %v1985 = vmax.f32 %v1851, 0.0
      %v1986 = vmax.f32 %v1854, 0.0
      %v1987 = vmax.f32 %v1859, 0.0
      %v1988 = vmax.f32 %v1862, 0.0
      %v1989 = vmax.f32 %v1867, 0.0
      %v1990 = vmax.f32 %v1870, 0.0
      %v1991 = vmax.f32 %v1875, 0.0
      %v1992 = vmax.f32 %v1878, 0.0
      %v1993 = vmax.f32 %v1883, 0.0
      %v1994 = vmax.f32 %v1886, 0.0
      %v1995 = vmax.f32 %v1891, 0.0
      %v1996 = vmax.f32 %v1894, 0.0
      %v1997 = vmax.f32 %v1899, 0.0
      %v1998 = vmax.f32 %v1902, 0.0
      %v1999 = vmax.f32 %v1907, 0.0
      %v2000 = vmax.f32 %v1910, 0.0
      %v2001 = vmax.f32 %v1915, 0.0
      %v2002 = vmax.f32 %v1918, 0.0
      %v2003 = vmax.f32 %v1923, 0.0
      %v2004 = vmax.f32 %v1926, 0.0
      %v2005 = vmax.f32 %v1931, 0.0
      %v2006 = vmax.f32 %v1934, 0.0
      %v2007 = vmax.f32 %v1939, 0.0
      %v2008 = vmax.f32 %v1942, 0.0
      %vm2009 = vcmask 261120
      %v2010 = vsel %vm2009, %v1945, -inf
      %v2011 = vsel %vm2009, %v1946, -inf
      %v2012 = vmax.f32 %v2010, %v2011
      %v2013 = vrot.slane %v2012, 4
      %v2014 = vmax.f32 %v2012, %v2013
      %v2015 = vrot.slane %v2014, 2
      %v2016 = vmax.f32 %v2014, %v2015
      %v2017 = vrot.slane %v2016, 1
      %v2018 = vmax.f32 %v2016, %v2017
      %v2019 = vsel %vm2009, %v1947, -inf
      %v2020 = vsel %vm2009, %v1948, -inf
      %v2021 = vmax.f32 %v2019, %v2020
      %v2022 = vrot.slane %v2021, 4
      %v2023 = vmax.f32 %v2021, %v2022
      %v2024 = vrot.slane %v2023, 2
      %v2025 = vmax.f32 %v2023, %v2024
      %v2026 = vrot.slane %v2025, 1
      %v2027 = vmax.f32 %v2025, %v2026
      %v2028 = vsel %vm2009, %v1949, -inf
      %v2029 = vsel %vm2009, %v1950, -inf
      %v2030 = vmax.f32 %v2028, %v2029
      %v2031 = vrot.slane %v2030, 4
      %v2032 = vmax.f32 %v2030, %v2031
      %v2033 = vrot.slane %v2032, 2
      %v2034 = vmax.f32 %v2032, %v2033
      %v2035 = vrot.slane %v2034, 1
      %v2036 = vmax.f32 %v2034, %v2035
      %v2037 = vsel %vm2009, %v1951, -inf
      %v2038 = vsel %vm2009, %v1952, -inf
      %v2039 = vmax.f32 %v2037, %v2038
      %v2040 = vrot.slane %v2039, 4
      %v2041 = vmax.f32 %v2039, %v2040
      %v2042 = vrot.slane %v2041, 2
      %v2043 = vmax.f32 %v2041, %v2042
      %v2044 = vrot.slane %v2043, 1
      %v2045 = vmax.f32 %v2043, %v2044
      %v2046 = vsel %vm2009, %v1953, -inf
      %v2047 = vsel %vm2009, %v1954, -inf
      %v2048 = vmax.f32 %v2046, %v2047
      %v2049 = vrot.slane %v2048, 4
      %v2050 = vmax.f32 %v2048, %v2049
      %v2051 = vrot.slane %v2050, 2
      %v2052 = vmax.f32 %v2050, %v2051
      %v2053 = vrot.slane %v2052, 1
      %v2054 = vmax.f32 %v2052, %v2053
      %v2055 = vsel %vm2009, %v1955, -inf
      %v2056 = vsel %vm2009, %v1956, -inf
      %v2057 = vmax.f32 %v2055, %v2056
      %v2058 = vrot.slane %v2057, 4
      %v2059 = vmax.f32 %v2057, %v2058
      %v2060 = vrot.slane %v2059, 2
      %v2061 = vmax.f32 %v2059, %v2060
      %v2062 = vrot.slane %v2061, 1
      %v2063 = vmax.f32 %v2061, %v2062
      %v2064 = vsel %vm2009, %v1957, -inf
      %v2065 = vsel %vm2009, %v1958, -inf
      %v2066 = vmax.f32 %v2064, %v2065
      %v2067 = vrot.slane %v2066, 4
      %v2068 = vmax.f32 %v2066, %v2067
      %v2069 = vrot.slane %v2068, 2
      %v2070 = vmax.f32 %v2068, %v2069
      %v2071 = vrot.slane %v2070, 1
      %v2072 = vmax.f32 %v2070, %v2071
      %v2073 = vsel %vm2009, %v1959, -inf
      %v2074 = vsel %vm2009, %v1960, -inf
      %v2075 = vmax.f32 %v2073, %v2074
      %v2076 = vrot.slane %v2075, 4
      %v2077 = vmax.f32 %v2075, %v2076
      %v2078 = vrot.slane %v2077, 2
      %v2079 = vmax.f32 %v2077, %v2078
      %v2080 = vrot.slane %v2079, 1
      %v2081 = vmax.f32 %v2079, %v2080
      %v2082 = vsel %vm2009, %v1961, -inf
      %v2083 = vsel %vm2009, %v1962, -inf
      %v2084 = vmax.f32 %v2082, %v2083
      %v2085 = vrot.slane %v2084, 4
      %v2086 = vmax.f32 %v2084, %v2085
      %v2087 = vrot.slane %v2086, 2
      %v2088 = vmax.f32 %v2086, %v2087
      %v2089 = vrot.slane %v2088, 1
      %v2090 = vmax.f32 %v2088, %v2089
      %v2091 = vsel %vm2009, %v1963, -inf
      %v2092 = vsel %vm2009, %v1964, -inf
      %v2093 = vmax.f32 %v2091, %v2092
      %v2094 = vrot.slane %v2093, 4
      %v2095 = vmax.f32 %v2093, %v2094
      %v2096 = vrot.slane %v2095, 2
      %v2097 = vmax.f32 %v2095, %v2096
      %v2098 = vrot.slane %v2097, 1
      %v2099 = vmax.f32 %v2097, %v2098
      %v2100 = vsel %vm2009, %v1965, -inf
      %v2101 = vsel %vm2009, %v1966, -inf
      %v2102 = vmax.f32 %v2100, %v2101
      %v2103 = vrot.slane %v2102, 4
      %v2104 = vmax.f32 %v2102, %v2103
      %v2105 = vrot.slane %v2104, 2
      %v2106 = vmax.f32 %v2104, %v2105
      %v2107 = vrot.slane %v2106, 1
      %v2108 = vmax.f32 %v2106, %v2107
      %v2109 = vsel %vm2009, %v1967, -inf
      %v2110 = vsel %vm2009, %v1968, -inf
      %v2111 = vmax.f32 %v2109, %v2110
      %v2112 = vrot.slane %v2111, 4
      %v2113 = vmax.f32 %v2111, %v2112
      %v2114 = vrot.slane %v2113, 2
      %v2115 = vmax.f32 %v2113, %v2114
      %v2116 = vrot.slane %v2115, 1
      %v2117 = vmax.f32 %v2115, %v2116
      %v2118 = vsel %vm2009, %v1969, -inf
      %v2119 = vsel %vm2009, %v1970, -inf
      %v2120 = vmax.f32 %v2118, %v2119
      %v2121 = vrot.slane %v2120, 4
      %v2122 = vmax.f32 %v2120, %v2121
      %v2123 = vrot.slane %v2122, 2
      %v2124 = vmax.f32 %v2122, %v2123
      %v2125 = vrot.slane %v2124, 1
      %v2126 = vmax.f32 %v2124, %v2125
      %v2127 = vsel %vm2009, %v1971, -inf
      %v2128 = vsel %vm2009, %v1972, -inf
      %v2129 = vmax.f32 %v2127, %v2128
      %v2130 = vrot.slane %v2129, 4
      %v2131 = vmax.f32 %v2129, %v2130
      %v2132 = vrot.slane %v2131, 2
      %v2133 = vmax.f32 %v2131, %v2132
      %v2134 = vrot.slane %v2133, 1
      %v2135 = vmax.f32 %v2133, %v2134
      %v2136 = vsel %vm2009, %v1973, -inf
      %v2137 = vsel %vm2009, %v1974, -inf
      %v2138 = vmax.f32 %v2136, %v2137
      %v2139 = vrot.slane %v2138, 4
      %v2140 = vmax.f32 %v2138, %v2139
      %v2141 = vrot.slane %v2140, 2
      %v2142 = vmax.f32 %v2140, %v2141
      %v2143 = vrot.slane %v2142, 1
      %v2144 = vmax.f32 %v2142, %v2143
      %v2145 = vsel %vm2009, %v1975, -inf
      %v2146 = vsel %vm2009, %v1976, -inf
      %v2147 = vmax.f32 %v2145, %v2146
      %v2148 = vrot.slane %v2147, 4
      %v2149 = vmax.f32 %v2147, %v2148
      %v2150 = vrot.slane %v2149, 2
      %v2151 = vmax.f32 %v2149, %v2150
      %v2152 = vrot.slane %v2151, 1
      %v2153 = vmax.f32 %v2151, %v2152
      %v2154 = vsel %vm2009, %v1977, -inf
      %v2155 = vsel %vm2009, %v1978, -inf
      %v2156 = vmax.f32 %v2154, %v2155
      %v2157 = vrot.slane %v2156, 4
      %v2158 = vmax.f32 %v2156, %v2157
      %v2159 = vrot.slane %v2158, 2
      %v2160 = vmax.f32 %v2158, %v2159
      %v2161 = vrot.slane %v2160, 1
      %v2162 = vmax.f32 %v2160, %v2161
      %v2163 = vsel %vm2009, %v1979, -inf
      %v2164 = vsel %vm2009, %v1980, -inf
      %v2165 = vmax.f32 %v2163, %v2164
      %v2166 = vrot.slane %v2165, 4
      %v2167 = vmax.f32 %v2165, %v2166
      %v2168 = vrot.slane %v2167, 2
      %v2169 = vmax.f32 %v2167, %v2168
      %v2170 = vrot.slane %v2169, 1
      %v2171 = vmax.f32 %v2169, %v2170
      %v2172 = vsel %vm2009, %v1981, -inf
      %v2173 = vsel %vm2009, %v1982, -inf
      %v2174 = vmax.f32 %v2172, %v2173
      %v2175 = vrot.slane %v2174, 4
      %v2176 = vmax.f32 %v2174, %v2175
      %v2177 = vrot.slane %v2176, 2
      %v2178 = vmax.f32 %v2176, %v2177
      %v2179 = vrot.slane %v2178, 1
      %v2180 = vmax.f32 %v2178, %v2179
      %v2181 = vsel %vm2009, %v1983, -inf
      %v2182 = vsel %vm2009, %v1984, -inf
      %v2183 = vmax.f32 %v2181, %v2182
      %v2184 = vrot.slane %v2183, 4
      %v2185 = vmax.f32 %v2183, %v2184
      %v2186 = vrot.slane %v2185, 2
      %v2187 = vmax.f32 %v2185, %v2186
      %v2188 = vrot.slane %v2187, 1
      %v2189 = vmax.f32 %v2187, %v2188
      %v2190 = vsel %vm2009, %v1985, -inf
      %v2191 = vsel %vm2009, %v1986, -inf
      %v2192 = vmax.f32 %v2190, %v2191
      %v2193 = vrot.slane %v2192, 4
      %v2194 = vmax.f32 %v2192, %v2193
      %v2195 = vrot.slane %v2194, 2
      %v2196 = vmax.f32 %v2194, %v2195
      %v2197 = vrot.slane %v2196, 1
      %v2198 = vmax.f32 %v2196, %v2197
      %v2199 = vsel %vm2009, %v1987, -inf
      %v2200 = vsel %vm2009, %v1988, -inf
      %v2201 = vmax.f32 %v2199, %v2200
      %v2202 = vrot.slane %v2201, 4
      %v2203 = vmax.f32 %v2201, %v2202
      %v2204 = vrot.slane %v2203, 2
      %v2205 = vmax.f32 %v2203, %v2204
      %v2206 = vrot.slane %v2205, 1
      %v2207 = vmax.f32 %v2205, %v2206
      %v2208 = vsel %vm2009, %v1989, -inf
      %v2209 = vsel %vm2009, %v1990, -inf
      %v2210 = vmax.f32 %v2208, %v2209
      %v2211 = vrot.slane %v2210, 4
      %v2212 = vmax.f32 %v2210, %v2211
      %v2213 = vrot.slane %v2212, 2
      %v2214 = vmax.f32 %v2212, %v2213
      %v2215 = vrot.slane %v2214, 1
      %v2216 = vmax.f32 %v2214, %v2215
      %v2217 = vsel %vm2009, %v1991, -inf
      %v2218 = vsel %vm2009, %v1992, -inf
      %v2219 = vmax.f32 %v2217, %v2218
      %v2220 = vrot.slane %v2219, 4
      %v2221 = vmax.f32 %v2219, %v2220
      %v2222 = vrot.slane %v2221, 2
      %v2223 = vmax.f32 %v2221, %v2222
      %v2224 = vrot.slane %v2223, 1
      %v2225 = vmax.f32 %v2223, %v2224
      %v2226 = vsel %vm2009, %v1993, -inf
      %v2227 = vsel %vm2009, %v1994, -inf
      %v2228 = vmax.f32 %v2226, %v2227
      %v2229 = vrot.slane %v2228, 4
      %v2230 = vmax.f32 %v2228, %v2229
      %v2231 = vrot.slane %v2230, 2
      %v2232 = vmax.f32 %v2230, %v2231
      %v2233 = vrot.slane %v2232, 1
      %v2234 = vmax.f32 %v2232, %v2233
      %v2235 = vsel %vm2009, %v1995, -inf
      %v2236 = vsel %vm2009, %v1996, -inf
      %v2237 = vmax.f32 %v2235, %v2236
      %v2238 = vrot.slane %v2237, 4
      %v2239 = vmax.f32 %v2237, %v2238
      %v2240 = vrot.slane %v2239, 2
      %v2241 = vmax.f32 %v2239, %v2240
      %v2242 = vrot.slane %v2241, 1
      %v2243 = vmax.f32 %v2241, %v2242
      %v2244 = vsel %vm2009, %v1997, -inf
      %v2245 = vsel %vm2009, %v1998, -inf
      %v2246 = vmax.f32 %v2244, %v2245
      %v2247 = vrot.slane %v2246, 4
      %v2248 = vmax.f32 %v2246, %v2247
      %v2249 = vrot.slane %v2248, 2
      %v2250 = vmax.f32 %v2248, %v2249
      %v2251 = vrot.slane %v2250, 1
      %v2252 = vmax.f32 %v2250, %v2251
      %v2253 = vsel %vm2009, %v1999, -inf
      %v2254 = vsel %vm2009, %v2000, -inf
      %v2255 = vmax.f32 %v2253, %v2254
      %v2256 = vrot.slane %v2255, 4
      %v2257 = vmax.f32 %v2255, %v2256
      %v2258 = vrot.slane %v2257, 2
      %v2259 = vmax.f32 %v2257, %v2258
      %v2260 = vrot.slane %v2259, 1
      %v2261 = vmax.f32 %v2259, %v2260
      %v2262 = vsel %vm2009, %v2001, -inf
      %v2263 = vsel %vm2009, %v2002, -inf
      %v2264 = vmax.f32 %v2262, %v2263
      %v2265 = vrot.slane %v2264, 4
      %v2266 = vmax.f32 %v2264, %v2265
      %v2267 = vrot.slane %v2266, 2
      %v2268 = vmax.f32 %v2266, %v2267
      %v2269 = vrot.slane %v2268, 1
      %v2270 = vmax.f32 %v2268, %v2269
      %v2271 = vsel %vm2009, %v2003, -inf
      %v2272 = vsel %vm2009, %v2004, -inf
      %v2273 = vmax.f32 %v2271, %v2272
      %v2274 = vrot.slane %v2273, 4
      %v2275 = vmax.f32 %v2273, %v2274
      %v2276 = vrot.slane %v2275, 2
      %v2277 = vmax.f32 %v2275, %v2276
      %v2278 = vrot.slane %v2277, 1
      %v2279 = vmax.f32 %v2277, %v2278
      %v2280 = vsel %vm2009, %v2005, -inf
      %v2281 = vsel %vm2009, %v2006, -inf
      %v2282 = vmax.f32 %v2280, %v2281
      %v2283 = vrot.slane %v2282, 4
      %v2284 = vmax.f32 %v2282, %v2283
      %v2285 = vrot.slane %v2284, 2
      %v2286 = vmax.f32 %v2284, %v2285
      %v2287 = vrot.slane %v2286, 1
      %v2288 = vmax.f32 %v2286, %v2287
      %v2289 = vsel %vm2009, %v2007, -inf
      %v2290 = vsel %vm2009, %v2008, -inf
      %v2291 = vmax.f32 %v2289, %v2290
      %v2292 = vrot.slane %v2291, 4
      %v2293 = vmax.f32 %v2291, %v2292
      %v2294 = vrot.slane %v2293, 2
      %v2295 = vmax.f32 %v2293, %v2294
      %v2296 = vrot.slane %v2295, 1
      %v2297 = vmax.f32 %v2295, %v2296
      %vm2330 = vcmask 1041409
      %v2331 = vsel %vm2330, %v2027, %v2018
      %vm2332 = vcmask 1042434
      %v2333 = vsel %vm2332, %v2036, %v2331
      %vm2334 = vcmask 1043459
      %v2335 = vsel %vm2334, %v2045, %v2333
      %vm2336 = vcmask 1044484
      %v2337 = vsel %vm2336, %v2054, %v2335
      %vm2338 = vcmask 1045509
      %v2339 = vsel %vm2338, %v2063, %v2337
      %vm2340 = vcmask 1046534
      %v2341 = vsel %vm2340, %v2072, %v2339
      %vm2342 = vcmask 1047559
      %v2343 = vsel %vm2342, %v2081, %v2341
      %v2344 = vsel %vm2330, %v2099, %v2090
      %v2345 = vsel %vm2332, %v2108, %v2344
      %v2346 = vsel %vm2334, %v2117, %v2345
      %v2347 = vsel %vm2336, %v2126, %v2346
      %v2348 = vsel %vm2338, %v2135, %v2347
      %v2349 = vsel %vm2340, %v2144, %v2348
      %v2350 = vsel %vm2342, %v2153, %v2349
      %v2351 = vsel %vm2330, %v2171, %v2162
      %v2352 = vsel %vm2332, %v2180, %v2351
      %v2353 = vsel %vm2334, %v2189, %v2352
      %v2354 = vsel %vm2336, %v2198, %v2353
      %v2355 = vsel %vm2338, %v2207, %v2354
      %v2356 = vsel %vm2340, %v2216, %v2355
      %v2357 = vsel %vm2342, %v2225, %v2356
      %v2358 = vsel %vm2330, %v2243, %v2234
      %v2359 = vsel %vm2332, %v2252, %v2358
      %v2360 = vsel %vm2334, %v2261, %v2359
      %v2361 = vsel %vm2336, %v2270, %v2360
      %v2362 = vsel %vm2338, %v2279, %v2361
      %v2363 = vsel %vm2340, %v2288, %v2362
      %v2364 = vsel %vm2342, %v2297, %v2363
      %2369 = vst.msk [vmem:[%s316] sm:$0xff] %vm2009, %v2343
      %2370 = vst.msk [vmem:[%s316 + $0x8] sm:$0xff] %vm2009, %v2350
      %2371 = vst.msk [vmem:[%s316 + $0x10] sm:$0xff] %vm2009, %v2357
      %2372 = vst.msk [vmem:[%s316 + $0x18] sm:$0xff] %vm2009, %v2364
      %s2373 = smul.u32 4, %s23
      %p2374 = scmp.lt.s32.totalorder %s22, 1
      %s2375 = scalar_select %p2374, %s22, 1
      %p2376 = scmp.lt.s32.totalorder %s2373, 3
      %s2377 = scalar_select %p2376, %s2373, 3
      %s2378 = smul.addr %s2375, 4
      %s2379 = sadd.s32 %s2377, %s2378
      %s2380 = smul.addr %s2379, 8
      %s2381 = scalar_lea.vmem %s7, %s2380
      // Predicated region
      $region49: #{local_aggregator_forward.2} parent=47 // pred_check
        %p2382 = pneg %p204
      $region50: #{local_aggregator_forward.2} parent=47 // pred_check_branch
        %2384 = sbr.rel (%p2382) target = $region52
      $region51: #{local_aggregator_forward.2} parent=47 // pred_region
        %s2385 = smul.u32 4, %s23
      $region52: #{local_aggregator_forward.2} parent=47 // pred_fallthru
        _
    $region48: #{local_aggregator_forward.2} parent=5 // pred_fallthru
      _
    %p2386 = scmp.le.s32.totalorder 2, %s13
    // Predicated region
    $region53: #{local_aggregator_forward.2} parent=5 // pred_check
      %p2387 = pneg %p2386
    $region54: #{local_aggregator_forward.2} parent=5 // pred_check_branch
      %2389 = sbr.rel (%p2387) target = $region56
    $region55: #{local_aggregator_forward.2} parent=5 // pred_region
      %s2390 = ssub.s32 %s13, 2
      // Predicated region
      $region57: #{local_aggregator_forward.2} parent=55 // pred_check
        %p2391 = pneg %p210
      $region58: #{local_aggregator_forward.2} parent=55 // pred_check_branch
        %2393 = sbr.rel (%p2391) target = $region60
      $region59: #{local_aggregator_forward.2} parent=55 // pred_region
        %s2394 = smul.u32 4, %s25
        %p2395 = scmp.lt.s32.totalorder %s24, 1
        %s2396 = scalar_select %p2395, %s24, 1
        %p2397 = scmp.lt.s32.totalorder %s2394, 3
        %s2398 = scalar_select %p2397, %s2394, 3
        %s2399 = smul.addr %s2396, 4
        %s2400 = sadd.s32 %s2398, %s2399
        %s2401 = smul.addr %s2400, 8
        %s2402 = scalar_lea.vmem %s7, %s2401
      $region60: #{local_aggregator_forward.2} parent=55 // pred_fallthru
        _
    $region56: #{local_aggregator_forward.2} parent=5 // pred_fallthru
      _
  $region6: #{local_aggregator_forward.2} parent=0 // loop_footer
    %s17 = sadd.s32 1, %s13
  $region7: #{local_aggregator_forward.2} parent=0 // loop_footer_branch
    %12 = sbr.rel target = $region3
  $region8: #{local_aggregator_forward.2} parent=0 // loop_exit
    _

// kernel: local_aggregator_forward.3
$region0: #{local_aggregator_forward.3}
  #allocation0 [shape = 'u32[]', space=smem, size = 0x4, offset = 0x4, fixed_abs, tag = 'smem constant byte address 0x4 - core index']
  #allocation1 [shape = 'u32[144,128]{1,0:T(1,128)}', space=vmem, size = 0x12000, scoped, tag = 'internal scratch']
  %s0 = inlined_call_operand.vmem [shape: bf16[2,512,38], index: 0, kind: input, shape index: {}]
  %s1 = inlined_call_operand.vmem [shape: f32[2,32,32], index: 1, kind: input, shape index: {}]
  %s2 = inlined_call_operand.vmem [shape: bf16[38,32], index: 2, kind: input, shape index: {}]
  %s3 = inlined_call_operand.vmem [shape: f32[1,32], index: 3, kind: input, shape index: {}]
  %s4 = inlined_call_operand.vmem [shape: bf16[32,128], index: 4, kind: input, shape index: {}]
  %s5 = inlined_call_operand.vmem [shape: f32[1,128], index: 5, kind: input, shape index: {}]
  %s6 = inlined_call_operand.vmem [shape: bf16[128,32], index: 6, kind: input, shape index: {}]
  %s7 = inlined_call_operand.vmem [shape: f32[1,32], index: 7, kind: input, shape index: {}]
  %s8 = inlined_call_operand.hbm [shape: f32[2,32,32], index: 8, kind: output, shape index: {}]
  %s9 = sld [smem:[#allocation0]]
  $region65: #{local_aggregator_forward.3} parent=0
    _
  %s11 = ssub.s32 1, %s9
  %s12 = scalar_select 0, %s11, %s9
  $region1: #{local_aggregator_forward.3} parent=0
    #allocation2 [shape = 'u8[32768]{0}', space=vmem, size = 0x8000, scoped, tag = 'output window, operand 0']
    #allocation3 [shape = 's32[2]{0}', space=sflag, size = 0x8, scoped, tag = 'scoped memory for local_aggregator_forward.3']
    %13 = vsyncpa [#allocation3], 0
    %s14 = scalar_lea.sflag [#allocation3], 1
    %15 = vsyncpa %s14, 0
    loop: start=0, step=1, limit=4
    $region2: #{local_aggregator_forward.3} parent=1 // loop_pre_header
      _
    $region3: #{local_aggregator_forward.3} parent=1 // loop_header
      %s17 = sphi 0, %s21
      %p18 = scmp.ge.s32.totalorder %s17, 4
      %s24 = sphi 0, %s36
      %s25 = sphi 0, %s32
      %s26 = sphi 0, %s24
      %s27 = sphi 0, %s25
      %s28 = sphi 0, %s26
      %s29 = sphi 0, %s27
      %s41 = sphi 0, %s43
      %s44 = sphi 0, %s41
      %s45 = sphi 0, %s44
      %s61 = sphi 0, %s45
      %s69 = sphi 0, %s71
      %s72 = sphi 0, %s69
      %s73 = sphi 0, %s72
      %s89 = sphi 0, %s73
      %s93 = sphi 0, %s93
      %s95 = sphi 0, %s93
      %s96 = sphi 0, %s95
      %s110 = sphi 0, %s96
      %s114 = sphi 0, %s114
      %s116 = sphi 0, %s114
      %s117 = sphi 0, %s116
      %s131 = sphi 0, %s117
      %s135 = sphi 0, %s135
      %s137 = sphi 0, %s135
      %s138 = sphi 0, %s137
      %s152 = sphi 0, %s138
      %s156 = sphi 0, %s156
      %s158 = sphi 0, %s156
      %s159 = sphi 0, %s158
      %s173 = sphi 0, %s159
      %s177 = sphi 0, %s177
      %s179 = sphi 0, %s177
      %s180 = sphi 0, %s179
      %s194 = sphi 0, %s180
      %s198 = sphi 0, %s198
      %s200 = sphi 0, %s198
      %s201 = sphi 0, %s200
      %s215 = sphi 0, %s201
      %s223 = sphi 0, %s225
      %s226 = sphi 0, %s223
      %s227 = sphi 0, %s226
      %s243 = sphi 0, %s227
    $region4: #{local_aggregator_forward.3} parent=1 // loop_header_branch
      %20 = sbr.rel (%p18) target = $region8
    $region5: #{local_aggregator_forward.3} parent=1 // loop_body
      %s22 = ssub.s32 %s17, 1
      %s23 = ssub.s32 %s17, 2
      %s30 = sadd.s32 1, %s25
      %p31 = scmp.ge.s32.totalorder %s30, 1
      %s32 = scalar_select %p31, 0, %s30
      %s33 = sadd.s32 1, %s24
      %s34 = scalar_select %p31, %s33, %s24
      %p35 = scmp.ge.s32.totalorder %s34, 2
      %s36 = scalar_select %p35, 0, %s34
      %s37 = ssub.s32 %s24, %s36
      %s38 = ssub.s32 %s25, %s32
      %s39 = sor.u32 %s37, %s38
      %p40 = scmp.eq.s32.totalorder %s39, 0
      %s42 = sadd.s32 %s41, 1
      %s43 = scalar_select %p40, %s41, %s42
      %p46 = pneg %p40
      %p47 = scmp.eq.s32.totalorder %s17, 1
      %p48 = por %p46, %p47
      %p49 = scmp.ne.s32.totalorder %s41, %s44
      %p50 = scmp.eq.s32.totalorder %s17, 0
      %p51 = por %p49, %p50
      %p52 = scmp.ne.s32.totalorder %s41, %s44
      %p53 = scmp.eq.s32.totalorder %s22, 1
      %p54 = por %p52, %p53
      %p55 = scmp.ne.s32.totalorder %s44, %s45
      %p56 = scmp.eq.s32.totalorder %s22, 0
      %p57 = por %p55, %p56
      %p58 = scmp.ne.s32.totalorder %s44, %s45
      %p59 = scmp.eq.s32.totalorder %s23, 1
      %p60 = por %p58, %p59
      %p62 = scmp.ne.s32.totalorder %s45, %s61
      %p63 = scmp.eq.s32.totalorder %s23, 0
      %p64 = por %p62, %p63
      %s65 = ssub.s32 %s24, %s36
      %s66 = ssub.s32 %s25, %s32
      %s67 = sor.u32 %s65, %s66
      %p68 = scmp.eq.s32.totalorder %s67, 0
      %s70 = sadd.s32 %s69, 1
      %s71 = scalar_select %p68, %s69, %s70
      %p74 = pneg %p68
      %p75 = scmp.eq.s32.totalorder %s17, 1
      %p76 = por %p74, %p75
      %p77 = scmp.ne.s32.totalorder %s69, %s72
      %p78 = scmp.eq.s32.totalorder %s17, 0
      %p79 = por %p77, %p78
      %p80 = scmp.ne.s32.totalorder %s69, %s72
      %p81 = scmp.eq.s32.totalorder %s22, 1
      %p82 = por %p80, %p81
      %p83 = scmp.ne.s32.totalorder %s72, %s73
      %p84 = scmp.eq.s32.totalorder %s22, 0
      %p85 = por %p83, %p84
      %p86 = scmp.ne.s32.totalorder %s72, %s73
      %p87 = scmp.eq.s32.totalorder %s23, 1
      %p88 = por %p86, %p87
      %p90 = scmp.ne.s32.totalorder %s73, %s89
      %p91 = scmp.eq.s32.totalorder %s23, 0
      %p92 = por %p90, %p91
      %s94 = sadd.s32 %s93, 1
      %p97 = scmp.eq.s32.totalorder %s17, 1
      %p98 = scmp.ne.s32.totalorder %s93, %s95
      %p99 = scmp.eq.s32.totalorder %s17, 0
      %p100 = por %p98, %p99
      %p101 = scmp.ne.s32.totalorder %s93, %s95
      %p102 = scmp.eq.s32.totalorder %s22, 1
      %p103 = por %p101, %p102
      %p104 = scmp.ne.s32.totalorder %s95, %s96
      %p105 = scmp.eq.s32.totalorder %s22, 0
      %p106 = por %p104, %p105
      %p107 = scmp.ne.s32.totalorder %s95, %s96
      %p108 = scmp.eq.s32.totalorder %s23, 1
      %p109 = por %p107, %p108
      %p111 = scmp.ne.s32.totalorder %s96, %s110
      %p112 = scmp.eq.s32.totalorder %s23, 0
      %p113 = por %p111, %p112
      %s115 = sadd.s32 %s114, 1
      %p118 = scmp.eq.s32.totalorder %s17, 1
      %p119 = scmp.ne.s32.totalorder %s114, %s116
      %p120 = scmp.eq.s32.totalorder %s17, 0
      %p121 = por %p119, %p120
      %p122 = scmp.ne.s32.totalorder %s114, %s116
      %p123 = scmp.eq.s32.totalorder %s22, 1
      %p124 = por %p122, %p123
      %p125 = scmp.ne.s32.totalorder %s116, %s117
      %p126 = scmp.eq.s32.totalorder %s22, 0
      %p127 = por %p125, %p126
      %p128 = scmp.ne.s32.totalorder %s116, %s117
      %p129 = scmp.eq.s32.totalorder %s23, 1
      %p130 = por %p128, %p129
      %p132 = scmp.ne.s32.totalorder %s117, %s131
      %p133 = scmp.eq.s32.totalorder %s23, 0
      %p134 = por %p132, %p133
      %s136 = sadd.s32 %s135, 1
      %p139 = scmp.eq.s32.totalorder %s17, 1
      %p140 = scmp.ne.s32.totalorder %s135, %s137
      %p141 = scmp.eq.s32.totalorder %s17, 0
      %p142 = por %p140, %p141
      %p143 = scmp.ne.s32.totalorder %s135, %s137
      %p144 = scmp.eq.s32.totalorder %s22, 1
      %p145 = por %p143, %p144
      %p146 = scmp.ne.s32.totalorder %s137, %s138
      %p147 = scmp.eq.s32.totalorder %s22, 0
      %p148 = por %p146, %p147
      %p149 = scmp.ne.s32.totalorder %s137, %s138
      %p150 = scmp.eq.s32.totalorder %s23, 1
      %p151 = por %p149, %p150
      %p153 = scmp.ne.s32.totalorder %s138, %s152
      %p154 = scmp.eq.s32.totalorder %s23, 0
      %p155 = por %p153, %p154
      %s157 = sadd.s32 %s156, 1
      %p160 = scmp.eq.s32.totalorder %s17, 1
      %p161 = scmp.ne.s32.totalorder %s156, %s158
      %p162 = scmp.eq.s32.totalorder %s17, 0
      %p163 = por %p161, %p162
      %p164 = scmp.ne.s32.totalorder %s156, %s158
      %p165 = scmp.eq.s32.totalorder %s22, 1
      %p166 = por %p164, %p165
      %p167 = scmp.ne.s32.totalorder %s158, %s159
      %p168 = scmp.eq.s32.totalorder %s22, 0
      %p169 = por %p167, %p168
      %p170 = scmp.ne.s32.totalorder %s158, %s159
      %p171 = scmp.eq.s32.totalorder %s23, 1
      %p172 = por %p170, %p171
      %p174 = scmp.ne.s32.totalorder %s159, %s173
      %p175 = scmp.eq.s32.totalorder %s23, 0
      %p176 = por %p174, %p175
      %s178 = sadd.s32 %s177, 1
      %p181 = scmp.eq.s32.totalorder %s17, 1
      %p182 = scmp.ne.s32.totalorder %s177, %s179
      %p183 = scmp.eq.s32.totalorder %s17, 0
      %p184 = por %p182, %p183
      %p185 = scmp.ne.s32.totalorder %s177, %s179
      %p186 = scmp.eq.s32.totalorder %s22, 1
      %p187 = por %p185, %p186
      %p188 = scmp.ne.s32.totalorder %s179, %s180
      %p189 = scmp.eq.s32.totalorder %s22, 0
      %p190 = por %p188, %p189
      %p191 = scmp.ne.s32.totalorder %s179, %s180
      %p192 = scmp.eq.s32.totalorder %s23, 1
      %p193 = por %p191, %p192
      %p195 = scmp.ne.s32.totalorder %s180, %s194
      %p196 = scmp.eq.s32.totalorder %s23, 0
      %p197 = por %p195, %p196
      %s199 = sadd.s32 %s198, 1
      %p202 = scmp.eq.s32.totalorder %s17, 1
      %p203 = scmp.ne.s32.totalorder %s198, %s200
      %p204 = scmp.eq.s32.totalorder %s17, 0
      %p205 = por %p203, %p204
      %p206 = scmp.ne.s32.totalorder %s198, %s200
      %p207 = scmp.eq.s32.totalorder %s22, 1
      %p208 = por %p206, %p207
      %p209 = scmp.ne.s32.totalorder %s200, %s201
      %p210 = scmp.eq.s32.totalorder %s22, 0
      %p211 = por %p209, %p210
      %p212 = scmp.ne.s32.totalorder %s200, %s201
      %p213 = scmp.eq.s32.totalorder %s23, 1
      %p214 = por %p212, %p213
      %p216 = scmp.ne.s32.totalorder %s201, %s215
      %p217 = scmp.eq.s32.totalorder %s23, 0
      %p218 = por %p216, %p217
      %s219 = ssub.s32 %s24, %s36
      %s220 = ssub.s32 %s25, %s32
      %s221 = sor.u32 %s219, %s220
      %p222 = scmp.eq.s32.totalorder %s221, 0
      %s224 = sadd.s32 %s223, 1
      %s225 = scalar_select %p222, %s223, %s224
      %p228 = pneg %p222
      %p229 = scmp.eq.s32.totalorder %s17, 1
      %p230 = por %p228, %p229
      %p231 = scmp.ne.s32.totalorder %s223, %s226
      %p232 = scmp.eq.s32.totalorder %s17, 0
      %p233 = por %p231, %p232
      %p234 = scmp.ne.s32.totalorder %s223, %s226
      %p235 = scmp.eq.s32.totalorder %s22, 1
      %p236 = por %p234, %p235
      %p237 = scmp.ne.s32.totalorder %s226, %s227
      %p238 = scmp.eq.s32.totalorder %s22, 0
      %p239 = por %p237, %p238
      %p240 = scmp.ne.s32.totalorder %s226, %s227
      %p241 = scmp.eq.s32.totalorder %s23, 1
      %p242 = por %p240, %p241
      %p244 = scmp.ne.s32.totalorder %s227, %s243
      %p245 = scmp.eq.s32.totalorder %s23, 0
      %p246 = por %p244, %p245
      %p247 = scmp.le.s32.totalorder 1, %s17
      %p248 = scmp.lt.s32.totalorder %s17, 3
      %p249 = pnand %p247, %p248
      %p250 = pneg %p249
      // Predicated region
      $region9: #{local_aggregator_forward.3} parent=5 // pred_check
        _
      $region10: #{local_aggregator_forward.3} parent=5 // pred_check_branch
        %252 = sbr.rel (%p249) target = $region12
      $region11: #{local_aggregator_forward.3} parent=5 // pred_region
        %s253 = ssub.s32 %s17, 1
        // Predicated region
        $region13: #{local_aggregator_forward.3} parent=11 // pred_check
          %p254 = pneg %p106
        $region14: #{local_aggregator_forward.3} parent=11 // pred_check_branch
          %256 = sbr.rel (%p254) target = $region16
        $region15: #{local_aggregator_forward.3} parent=11 // pred_region
          _
        $region16: #{local_aggregator_forward.3} parent=11 // pred_fallthru
          _
        // Predicated region
        $region17: #{local_aggregator_forward.3} parent=11 // pred_check
          %p257 = pneg %p127
        $region18: #{local_aggregator_forward.3} parent=11 // pred_check_branch
          %259 = sbr.rel (%p257) target = $region20
        $region19: #{local_aggregator_forward.3} parent=11 // pred_region
          _
        $region20: #{local_aggregator_forward.3} parent=11 // pred_fallthru
          _
        // Predicated region
        $region21: #{local_aggregator_forward.3} parent=11 // pred_check
          %p260 = pneg %p148
        $region22: #{local_aggregator_forward.3} parent=11 // pred_check_branch
          %262 = sbr.rel (%p260) target = $region24
        $region23: #{local_aggregator_forward.3} parent=11 // pred_region
          _
        $region24: #{local_aggregator_forward.3} parent=11 // pred_fallthru
          _
        // Predicated region
        $region25: #{local_aggregator_forward.3} parent=11 // pred_check
          %p263 = pneg %p169
        $region26: #{local_aggregator_forward.3} parent=11 // pred_check_branch
          %265 = sbr.rel (%p263) target = $region28
        $region27: #{local_aggregator_forward.3} parent=11 // pred_region
          _
        $region28: #{local_aggregator_forward.3} parent=11 // pred_fallthru
          _
        // Predicated region
        $region29: #{local_aggregator_forward.3} parent=11 // pred_check
          %p266 = pneg %p190
        $region30: #{local_aggregator_forward.3} parent=11 // pred_check_branch
          %268 = sbr.rel (%p266) target = $region32
        $region31: #{local_aggregator_forward.3} parent=11 // pred_region
          _
        $region32: #{local_aggregator_forward.3} parent=11 // pred_fallthru
          _
        // Predicated region
        $region33: #{local_aggregator_forward.3} parent=11 // pred_check
          %p269 = pneg %p211
        $region34: #{local_aggregator_forward.3} parent=11 // pred_check_branch
          %271 = sbr.rel (%p269) target = $region36
        $region35: #{local_aggregator_forward.3} parent=11 // pred_region
          _
        $region36: #{local_aggregator_forward.3} parent=11 // pred_fallthru
          _
      $region12: #{local_aggregator_forward.3} parent=5 // pred_fallthru
        _
      %p272 = scmp.lt.s32.totalorder %s17, 2
      // Predicated region
      $region37: #{local_aggregator_forward.3} parent=5 // pred_check
        %p273 = pneg %p272
      $region38: #{local_aggregator_forward.3} parent=5 // pred_check_branch
        %275 = sbr.rel (%p273) target = $region40
      $region39: #{local_aggregator_forward.3} parent=5 // pred_region
        // Predicated region
        $region41: #{local_aggregator_forward.3} parent=39 // pred_check
          %p276 = pneg %p51
        $region42: #{local_aggregator_forward.3} parent=39 // pred_check_branch
          %278 = sbr.rel (%p276) target = $region44
        $region43: #{local_aggregator_forward.3} parent=39 // pred_region
          %s279 = smul.u32 64, %s25
          %p280 = scmp.lt.s32.totalorder %s24, 1
          %s281 = scalar_select %p280, %s24, 1
          %p282 = scmp.lt.s32.totalorder %s279, 63
          %s283 = scalar_select %p282, %s279, 63
          %s284 = smul.addr %s281, 64
          %s285 = sadd.s32 %s283, %s284
          %s286 = smul.addr %s285, 4
          %s287 = scalar_lea.vmem %s0, %s286
          %s288 = smul.u32 64, %s25
        $region44: #{local_aggregator_forward.3} parent=39 // pred_fallthru
          _
        // Predicated region
        $region45: #{local_aggregator_forward.3} parent=39 // pred_check
          %p289 = pneg %p79
        $region46: #{local_aggregator_forward.3} parent=39 // pred_check_branch
          %291 = sbr.rel (%p289) target = $region48
        $region47: #{local_aggregator_forward.3} parent=39 // pred_region
          %s292 = smul.u32 4, %s25
          %p293 = scmp.lt.s32.totalorder %s24, 1
          %s294 = scalar_select %p293, %s24, 1
          %p295 = scmp.lt.s32.totalorder %s292, 3
          %s296 = scalar_select %p295, %s292, 3
          %s297 = smul.addr %s294, 4
          %s298 = sadd.s32 %s296, %s297
          %s299 = smul.addr %s298, 8
          %s300 = scalar_lea.vmem %s1, %s299
          %s301 = smul.u32 4, %s25
        $region48: #{local_aggregator_forward.3} parent=39 // pred_fallthru
          _
      $region40: #{local_aggregator_forward.3} parent=5 // pred_fallthru
        _
      %p302 = scmp.le.s32.totalorder 1, %s17
      %p303 = scmp.lt.s32.totalorder %s17, 3
      %p304 = pnand %p302, %p303
      %p305 = pneg %p304
      // Predicated region
      $region49: #{local_aggregator_forward.3} parent=5 // pred_check
        _
      $region50: #{local_aggregator_forward.3} parent=5 // pred_check_branch
        %307 = sbr.rel (%p304) target = $region52
      $region51: #{local_aggregator_forward.3} parent=5 // pred_region
        %s308 = ssub.s32 %s17, 1
        %s309 = smul.u32 64, %s27
        %p310 = scmp.lt.s32.totalorder %s26, 1
        %s311 = scalar_select %p310, %s26, 1
        %p312 = scmp.lt.s32.totalorder %s309, 63
        %s313 = scalar_select %p312, %s309, 63
        %s314 = smul.addr %s311, 64
        %s315 = sadd.s32 %s313, %s314
        %s316 = smul.addr %s315, 4
        %s317 = scalar_lea.vmem %s0, %s316
        %p318 = pneg %p57
        %p319 = pneg %p54
        %s320 = smul.u32 4, %s27
        %p321 = scmp.lt.s32.totalorder %s26, 1
        %s322 = scalar_select %p321, %s26, 1
        %p323 = scmp.lt.s32.totalorder %s320, 3
        %s324 = scalar_select %p323, %s320, 3
        %s325 = smul.addr %s322, 4
        %s326 = sadd.s32 %s324, %s325
        %s327 = smul.addr %s326, 8
        %s328 = scalar_lea.vmem %s1, %s327
        %p329 = pneg %p85
        %p330 = pneg %p82
        %p331 = pneg %p106
        %p332 = pneg %p103
        %p333 = pneg %p127
        %p334 = pneg %p124
        %p335 = pneg %p148
        %p336 = pneg %p145
        %p337 = pneg %p169
        %p338 = pneg %p166
        %p339 = pneg %p190
        %p340 = pneg %p187
        %p341 = pneg %p211
        %p342 = pneg %p208
        %p343 = pneg %p239
        %p344 = pneg %p236
        %s345 = sand.u32 %s226, 1
        %s346 = scalar_lea.sflag [#allocation3], %s345
        %s347 = sand.u32 %s226, 1
        %s348 = smul.addr %s347, 32
        %s349 = scalar_lea.vmem [#allocation2], %s348
        %s350 = smul.u32 64, %s27
        %p351 = scmp.lt.s32.totalorder %s26, 1
        %s352 = scalar_select %p351, %s26, 1
        %p353 = scmp.lt.s32.totalorder %s350, 63
        %s354 = scalar_select %p353, %s350, 63
        %s355 = smul.addr %s352, 64
        %s356 = sadd.s32 %s354, %s355
        %s357 = smul.addr %s356, 4
        %s358 = scalar_lea.vmem %s0, %s357
        %s359 = smul.u32 64, %s27
        %s360 = smul.u32 4, %s27
        %p361 = scmp.lt.s32.totalorder %s26, 1
        %s362 = scalar_select %p361, %s26, 1
        %p363 = scmp.lt.s32.totalorder %s360, 3
        %s364 = scalar_select %p363, %s360, 3
        %s365 = smul.addr %s362, 4
        %s366 = sadd.s32 %s364, %s365
        %s367 = smul.addr %s366, 8
        %s368 = scalar_lea.vmem %s1, %s367
        %s369 = smul.u32 4, %s27
        %v371 = vld [vmem:[%s358] sm:$0xf]
        %v372 = vld [vmem:[%s358 + $0x4] sm:$0xf]
        %v373 = vld [vmem:[%s358 + $0x8] sm:$0xf]
        %v374 = vld [vmem:[%s358 + $0xc] sm:$0xf]
        %v375 = vld [vmem:[%s358 + $0x10] sm:$0xf]
        %v376 = vld [vmem:[%s358 + $0x14] sm:$0xf]
        %v377 = vld [vmem:[%s358 + $0x18] sm:$0xf]
        %v378 = vld [vmem:[%s358 + $0x1c] sm:$0xf]
        %v379 = vld [vmem:[%s358 + $0x20] sm:$0xf]
        %v380 = vld [vmem:[%s358 + $0x24] sm:$0xf]
        %v381 = vld [vmem:[%s358 + $0x28] sm:$0xf]
        %v382 = vld [vmem:[%s358 + $0x2c] sm:$0xf]
        %v383 = vld [vmem:[%s358 + $0x30] sm:$0xf]
        %v384 = vld [vmem:[%s358 + $0x34] sm:$0xf]
        %v385 = vld [vmem:[%s358 + $0x38] sm:$0xf]
        %v386 = vld [vmem:[%s358 + $0x3c] sm:$0xf]
        %v387 = vld [vmem:[%s358 + $0x40] sm:$0xf]
        %v388 = vld [vmem:[%s358 + $0x44] sm:$0xf]
        %v389 = vld [vmem:[%s358 + $0x48] sm:$0xf]
        %v390 = vld [vmem:[%s358 + $0x4c] sm:$0xf]
        %v391 = vld [vmem:[%s358 + $0x50] sm:$0xf]
        %v392 = vld [vmem:[%s358 + $0x54] sm:$0xf]
        %v393 = vld [vmem:[%s358 + $0x58] sm:$0xf]
        %v394 = vld [vmem:[%s358 + $0x5c] sm:$0xf]
        %v395 = vld [vmem:[%s358 + $0x60] sm:$0xf]
        %v396 = vld [vmem:[%s358 + $0x64] sm:$0xf]
        %v397 = vld [vmem:[%s358 + $0x68] sm:$0xf]
        %v398 = vld [vmem:[%s358 + $0x6c] sm:$0xf]
        %v399 = vld [vmem:[%s358 + $0x70] sm:$0xf]
        %v400 = vld [vmem:[%s358 + $0x74] sm:$0xf]
        %v401 = vld [vmem:[%s358 + $0x78] sm:$0xf]
        %v402 = vld [vmem:[%s358 + $0x7c] sm:$0xf]
        %v403 = vld [vmem:[%s358 + $0x80] sm:$0xf]
        %v404 = vld [vmem:[%s358 + $0x84] sm:$0xf]
        %v405 = vld [vmem:[%s358 + $0x88] sm:$0xf]
        %v406 = vld [vmem:[%s358 + $0x8c] sm:$0xf]
        %v407 = vld [vmem:[%s358 + $0x90] sm:$0xf]
        %v408 = vld [vmem:[%s358 + $0x94] sm:$0xf]
        %v409 = vld [vmem:[%s358 + $0x98] sm:$0xf]
        %v410 = vld [vmem:[%s358 + $0x9c] sm:$0xf]
        %v411 = vld [vmem:[%s358 + $0xa0] sm:$0xf]
        %v412 = vld [vmem:[%s358 + $0xa4] sm:$0xf]
        %v413 = vld [vmem:[%s358 + $0xa8] sm:$0xf]
        %v414 = vld [vmem:[%s358 + $0xac] sm:$0xf]
        %v415 = vld [vmem:[%s358 + $0xb0] sm:$0xf]
        %v416 = vld [vmem:[%s358 + $0xb4] sm:$0xf]
        %v417 = vld [vmem:[%s358 + $0xb8] sm:$0xf]
        %v418 = vld [vmem:[%s358 + $0xbc] sm:$0xf]
        %v419 = vld [vmem:[%s358 + $0xc0] sm:$0xf]
        %v420 = vld [vmem:[%s358 + $0xc4] sm:$0xf]
        %v421 = vld [vmem:[%s358 + $0xc8] sm:$0xf]
        %v422 = vld [vmem:[%s358 + $0xcc] sm:$0xf]
        %v423 = vld [vmem:[%s358 + $0xd0] sm:$0xf]
        %v424 = vld [vmem:[%s358 + $0xd4] sm:$0xf]
        %v425 = vld [vmem:[%s358 + $0xd8] sm:$0xf]
        %v426 = vld [vmem:[%s358 + $0xdc] sm:$0xf]
        %v427 = vld [vmem:[%s358 + $0xe0] sm:$0xf]
        %v428 = vld [vmem:[%s358 + $0xe4] sm:$0xf]
        %v429 = vld [vmem:[%s358 + $0xe8] sm:$0xf]
        %v430 = vld [vmem:[%s358 + $0xec] sm:$0xf]
        %v431 = vld [vmem:[%s358 + $0xf0] sm:$0xf]
        %v432 = vld [vmem:[%s358 + $0xf4] sm:$0xf]
        %v433 = vld [vmem:[%s358 + $0xf8] sm:$0xf]
        %v434 = vld [vmem:[%s358 + $0xfc] sm:$0xf]
        %v435 = vld [vmem:[%s2] sm:$0xf]
        %v436 = vld [vmem:[%s2 + $0x4] sm:$0xf]
        %v437 = vld [vmem:[%s2 + $0x8] sm:$0xf]
        %v438 = vld [vmem:[%s2 + $0xc] sm:$0xf]
        %v439 = vld [vmem:[%s2 + $0x10] sm:$0x7]
        %v440 = vld [vmem:[%s3] sm:$0x1]
        %v442 = vlaneseq
        %v443 = vshrl.u32 %v442, 7
        %v444 = vsub.s32 0, %v443
        %v445 = vrot.slane %v440, %v444
        %v511 = vunpack.c.l.b16 %v371
        %v512 = vunpack.c.l.b16 %v372
        %v513 = vunpack.c.l.b16 %v373
        %v514 = vunpack.c.l.b16 %v374
        %v515 = vunpack.c.l.b16 %v375
        %v516 = vunpack.c.l.b16 %v376
        %v517 = vunpack.c.l.b16 %v377
        %v518 = vunpack.c.l.b16 %v378
        %v519 = vunpack.c.l.b16 %v379
        %v520 = vunpack.c.l.b16 %v380
        %v521 = vunpack.c.l.b16 %v381
        %v522 = vunpack.c.l.b16 %v382
        %v523 = vunpack.c.l.b16 %v383
        %v524 = vunpack.c.l.b16 %v384
        %v525 = vunpack.c.l.b16 %v385
        %v526 = vunpack.c.l.b16 %v386
        %v527 = vunpack.c.l.b16 %v387
        %v528 = vunpack.c.l.b16 %v388
        %v529 = vunpack.c.l.b16 %v389
        %v530 = vunpack.c.l.b16 %v390
        %v531 = vunpack.c.l.b16 %v391
        %v532 = vunpack.c.l.b16 %v392
        %v533 = vunpack.c.l.b16 %v393
        %v534 = vunpack.c.l.b16 %v394
        %v535 = vunpack.c.l.b16 %v395
        %v536 = vunpack.c.l.b16 %v396
        %v537 = vunpack.c.l.b16 %v397
        %v538 = vunpack.c.l.b16 %v398
        %v539 = vunpack.c.l.b16 %v399
        %v540 = vunpack.c.l.b16 %v400
        %v541 = vunpack.c.l.b16 %v401
        %v542 = vunpack.c.l.b16 %v402
        %v543 = vunpack.c.l.b16 %v403
        %v544 = vunpack.c.l.b16 %v404
        %v545 = vunpack.c.l.b16 %v405
        %v546 = vunpack.c.l.b16 %v406
        %v547 = vunpack.c.l.b16 %v407
        %v548 = vunpack.c.l.b16 %v408
        %v549 = vunpack.c.l.b16 %v409
        %v550 = vunpack.c.l.b16 %v410
        %v551 = vunpack.c.l.b16 %v411
        %v552 = vunpack.c.l.b16 %v412
        %v553 = vunpack.c.l.b16 %v413
        %v554 = vunpack.c.l.b16 %v414
        %v555 = vunpack.c.l.b16 %v415
        %v556 = vunpack.c.l.b16 %v416
        %v557 = vunpack.c.l.b16 %v417
        %v558 = vunpack.c.l.b16 %v418
        %v559 = vunpack.c.l.b16 %v419
        %v560 = vunpack.c.l.b16 %v420
        %v561 = vunpack.c.l.b16 %v421
        %v562 = vunpack.c.l.b16 %v422
        %v563 = vunpack.c.l.b16 %v423
        %v564 = vunpack.c.l.b16 %v424
        %v565 = vunpack.c.l.b16 %v425
        %v566 = vunpack.c.l.b16 %v426
        %v567 = vunpack.c.l.b16 %v427
        %v568 = vunpack.c.l.b16 %v428
        %v569 = vunpack.c.l.b16 %v429
        %v570 = vunpack.c.l.b16 %v430
        %v571 = vunpack.c.l.b16 %v431
        %v572 = vunpack.c.l.b16 %v432
        %v573 = vunpack.c.l.b16 %v433
        %v574 = vunpack.c.l.b16 %v434
        %v575 = vpack.c.b16 %v512, %v511
        %v576 = vpack.c.b16 %v514, %v513
        %v577 = vpack.c.b16 %v516, %v515
        %v578 = vpack.c.b16 %v518, %v517
        %v579 = vpack.c.b16 %v520, %v519
        %v580 = vpack.c.b16 %v522, %v521
        %v581 = vpack.c.b16 %v524, %v523
        %v582 = vpack.c.b16 %v526, %v525
        %v583 = vpack.c.b16 %v528, %v527
        %v584 = vpack.c.b16 %v530, %v529
        %v585 = vpack.c.b16 %v532, %v531
        %v586 = vpack.c.b16 %v534, %v533
        %v587 = vpack.c.b16 %v536, %v535
        %v588 = vpack.c.b16 %v538, %v537
        %v589 = vpack.c.b16 %v540, %v539
        %v590 = vpack.c.b16 %v542, %v541
        %v591 = vpack.c.b16 %v544, %v543
        %v592 = vpack.c.b16 %v546, %v545
        %v593 = vpack.c.b16 %v548, %v547
        %v594 = vpack.c.b16 %v550, %v549
        %v595 = vpack.c.b16 %v552, %v551
        %v596 = vpack.c.b16 %v554, %v553
        %v597 = vpack.c.b16 %v556, %v555
        %v598 = vpack.c.b16 %v558, %v557
        %v599 = vpack.c.b16 %v560, %v559
        %v600 = vpack.c.b16 %v562, %v561
        %v601 = vpack.c.b16 %v564, %v563
        %v602 = vpack.c.b16 %v566, %v565
        %v603 = vpack.c.b16 %v568, %v567
        %v604 = vpack.c.b16 %v570, %v569
        %v605 = vpack.c.b16 %v572, %v571
        %v606 = vpack.c.b16 %v574, %v573
        %v612 = vunpack.c.l.b16 %v435
        %v613 = vunpack.c.l.b16 %v436
        %v614 = vunpack.c.l.b16 %v437
        %v615 = vunpack.c.l.b16 %v438
        %v616 = vunpack.c.l.b16 %v439
        %v617 = vpack.c.b16 %v613, %v612
        %v618 = vpack.c.b16 %v615, %v614
        %v619 = vpack.c.b16 %v616, %v616
        %vm622 = vcmask 310272
        %v624 = vsel %vm622, %v575, 0
        %v627 = vsel %vm622, %v576, 0
        %v630 = vsel %vm622, %v577, 0
        %v633 = vsel %vm622, %v578, 0
        %v636 = vsel %vm622, %v579, 0
        %v639 = vsel %vm622, %v580, 0
        %v642 = vsel %vm622, %v581, 0
        %v645 = vsel %vm622, %v582, 0
        %v648 = vsel %vm622, %v583, 0
        %v651 = vsel %vm622, %v584, 0
        %v654 = vsel %vm622, %v585, 0
        %v657 = vsel %vm622, %v586, 0
        %v660 = vsel %vm622, %v587, 0
        %v663 = vsel %vm622, %v588, 0
        %v666 = vsel %vm622, %v589, 0
        %v669 = vsel %vm622, %v590, 0
        %v672 = vsel %vm622, %v591, 0
        %v675 = vsel %vm622, %v592, 0
        %v678 = vsel %vm622, %v593, 0
        %v681 = vsel %vm622, %v594, 0
        %v684 = vsel %vm622, %v595, 0
        %v687 = vsel %vm622, %v596, 0
        %v690 = vsel %vm622, %v597, 0
        %v693 = vsel %vm622, %v598, 0
        %v696 = vsel %vm622, %v599, 0
        %v699 = vsel %vm622, %v600, 0
        %v702 = vsel %vm622, %v601, 0
        %v705 = vsel %vm622, %v602, 0
        %v708 = vsel %vm622, %v603, 0
        %v711 = vsel %vm622, %v604, 0
        %v714 = vsel %vm622, %v605, 0
        %v717 = vsel %vm622, %v606, 0
        %vm719 = vcmask 1042432
        %v721 = vsel %vm719, %v619, 0
        %723 = vmatprep.subr.bf16.mxu0 0
        %724 = vmatpush1.bf16.msra.mxu0 0
        %725 = vmatprep.subr.bf16.mxu0 0
        %726 = vmatpush1.bf16.msra.mxu0 0
        %727 = vmatprep.subr.bf16.mxu0 0
        %728 = vmatpush1.bf16.msra.mxu0 0
        %729 = vmatprep.subr.bf16.mxu0 0
        %730 = vmatpush1.bf16.msra.mxu0 0
        %731 = vmatprep.subr.bf16.mxu0 0
        %732 = vmatpush1.bf16.msra.mxu0 0
        %733 = vmatprep.subr.bf16.mxu0 0
        %734 = vmatpush1.bf16.msra.mxu0 %v721
        %735 = vmatprep.subr.bf16.mxu0 0
        %736 = vmatpush1.bf16.msra.mxu0 %v618
        %737 = vmatprep.subr.bf16.mxu0 0
        %738 = vmatpush1.bf16.msra.mxu0 %v617
        %739 = vmatprep.subr.bf16.mxu0 0
        %740 = vmatpush2.bf16.msra.mxu0 0
        %741 = vmatprep.subr.bf16.mxu0 0
        %742 = vmatpush2.bf16.msra.mxu0 0
        %743 = vmatprep.subr.bf16.mxu0 0
        %744 = vmatpush2.bf16.msra.mxu0 0
        %745 = vmatprep.subr.bf16.mxu0 0
        %746 = vmatpush2.bf16.msra.mxu0 0
        %747 = vmatprep.subr.bf16.mxu0 0
        %748 = vmatpush2.bf16.msra.mxu0 0
        %749 = vmatprep.subr.bf16.mxu0 0
        %750 = vmatpush2.bf16.msra.mxu0 0
        %751 = vmatprep.subr.bf16.mxu0 0
        %752 = vmatpush2.bf16.msra.mxu0 0
        %753 = vmatprep.subr.bf16.mxu0 0
        %754 = vmatpush2.bf16.msra.mxu0 0
        %755 = vmatprep.mubr.bf16.mxu0 0
        %756 = vmatmul.mubr.bf16.gmra.mxu0 %v624
        %v757 = vpop.f32.mrf.mxu0
        %v758 = vadd.f32 %v445, %v757
        %v759 = vpop.f32.mrf.mxu0
        %v760 = vpop.f32.mrf.mxu0
        %v761 = vadd.f32 %v445, %v760
        %v762 = vpop.f32.mrf.mxu0
        %763 = vmatprep.mubr.bf16.mxu0 0
        %764 = vmatmul.mubr.bf16.gmra.mxu0 %v627
        %v765 = vpop.f32.mrf.mxu0
        %v766 = vadd.f32 %v445, %v765
        %v767 = vpop.f32.mrf.mxu0
        %v768 = vpop.f32.mrf.mxu0
        %v769 = vadd.f32 %v445, %v768
        %v770 = vpop.f32.mrf.mxu0
        %771 = vmatprep.mubr.bf16.mxu0 0
        %772 = vmatmul.mubr.bf16.gmra.mxu0 %v630
        %v773 = vpop.f32.mrf.mxu0
        %v774 = vadd.f32 %v445, %v773
        %v775 = vpop.f32.mrf.mxu0
        %v776 = vpop.f32.mrf.mxu0
        %v777 = vadd.f32 %v445, %v776
        %v778 = vpop.f32.mrf.mxu0
        %779 = vmatprep.mubr.bf16.mxu0 0
        %780 = vmatmul.mubr.bf16.gmra.mxu0 %v633
        %v781 = vpop.f32.mrf.mxu0
        %v782 = vadd.f32 %v445, %v781
        %v783 = vpop.f32.mrf.mxu0
        %v784 = vpop.f32.mrf.mxu0
        %v785 = vadd.f32 %v445, %v784
        %v786 = vpop.f32.mrf.mxu0
        %787 = vmatprep.mubr.bf16.mxu0 0
        %788 = vmatmul.mubr.bf16.gmra.mxu0 %v636
        %v789 = vpop.f32.mrf.mxu0
        %v790 = vadd.f32 %v445, %v789
        %v791 = vpop.f32.mrf.mxu0
        %v792 = vpop.f32.mrf.mxu0
        %v793 = vadd.f32 %v445, %v792
        %v794 = vpop.f32.mrf.mxu0
        %795 = vmatprep.mubr.bf16.mxu0 0
        %796 = vmatmul.mubr.bf16.gmra.mxu0 %v639
        %v797 = vpop.f32.mrf.mxu0
        %v798 = vadd.f32 %v445, %v797
        %v799 = vpop.f32.mrf.mxu0
        %v800 = vpop.f32.mrf.mxu0
        %v801 = vadd.f32 %v445, %v800
        %v802 = vpop.f32.mrf.mxu0
        %803 = vmatprep.mubr.bf16.mxu0 0
        %804 = vmatmul.mubr.bf16.gmra.mxu0 %v642
        %v805 = vpop.f32.mrf.mxu0
        %v806 = vadd.f32 %v445, %v805
        %v807 = vpop.f32.mrf.mxu0
        %v808 = vpop.f32.mrf.mxu0
        %v809 = vadd.f32 %v445, %v808
        %v810 = vpop.f32.mrf.mxu0
        %811 = vmatprep.mubr.bf16.mxu0 0
        %812 = vmatmul.mubr.bf16.gmra.mxu0 %v645
        %v813 = vpop.f32.mrf.mxu0
        %v814 = vadd.f32 %v445, %v813
        %v815 = vpop.f32.mrf.mxu0
        %v816 = vpop.f32.mrf.mxu0
        %v817 = vadd.f32 %v445, %v816
        %v818 = vpop.f32.mrf.mxu0
        %819 = vmatprep.mubr.bf16.mxu0 0
        %820 = vmatmul.mubr.bf16.gmra.mxu0 %v648
        %v821 = vpop.f32.mrf.mxu0
        %v822 = vadd.f32 %v445, %v821
        %v823 = vpop.f32.mrf.mxu0
        %v824 = vpop.f32.mrf.mxu0
        %v825 = vadd.f32 %v445, %v824
        %v826 = vpop.f32.mrf.mxu0
        %827 = vmatprep.mubr.bf16.mxu0 0
        %828 = vmatmul.mubr.bf16.gmra.mxu0 %v651
        %v829 = vpop.f32.mrf.mxu0
        %v830 = vadd.f32 %v445, %v829
        %v831 = vpop.f32.mrf.mxu0
        %v832 = vpop.f32.mrf.mxu0
        %v833 = vadd.f32 %v445, %v832
        %v834 = vpop.f32.mrf.mxu0
        %835 = vmatprep.mubr.bf16.mxu0 0
        %836 = vmatmul.mubr.bf16.gmra.mxu0 %v654
        %v837 = vpop.f32.mrf.mxu0
        %v838 = vadd.f32 %v445, %v837
        %v839 = vpop.f32.mrf.mxu0
        %v840 = vpop.f32.mrf.mxu0
        %v841 = vadd.f32 %v445, %v840
        %v842 = vpop.f32.mrf.mxu0
        %843 = vmatprep.mubr.bf16.mxu0 0
        %844 = vmatmul.mubr.bf16.gmra.mxu0 %v657
        %v845 = vpop.f32.mrf.mxu0
        %v846 = vadd.f32 %v445, %v845
        %v847 = vpop.f32.mrf.mxu0
        %v848 = vpop.f32.mrf.mxu0
        %v849 = vadd.f32 %v445, %v848
        %v850 = vpop.f32.mrf.mxu0
        %851 = vmatprep.mubr.bf16.mxu0 0
        %852 = vmatmul.mubr.bf16.gmra.mxu0 %v660
        %v853 = vpop.f32.mrf.mxu0
        %v854 = vadd.f32 %v445, %v853
        %v855 = vpop.f32.mrf.mxu0
        %v856 = vpop.f32.mrf.mxu0
        %v857 = vadd.f32 %v445, %v856
        %v858 = vpop.f32.mrf.mxu0
        %859 = vmatprep.mubr.bf16.mxu0 0
        %860 = vmatmul.mubr.bf16.gmra.mxu0 %v663
        %v861 = vpop.f32.mrf.mxu0
        %v862 = vadd.f32 %v445, %v861
        %v863 = vpop.f32.mrf.mxu0
        %v864 = vpop.f32.mrf.mxu0
        %v865 = vadd.f32 %v445, %v864
        %v866 = vpop.f32.mrf.mxu0
        %867 = vmatprep.mubr.bf16.mxu0 0
        %868 = vmatmul.mubr.bf16.gmra.mxu0 %v666
        %v869 = vpop.f32.mrf.mxu0
        %v870 = vadd.f32 %v445, %v869
        %v871 = vpop.f32.mrf.mxu0
        %v872 = vpop.f32.mrf.mxu0
        %v873 = vadd.f32 %v445, %v872
        %v874 = vpop.f32.mrf.mxu0
        %875 = vmatprep.mubr.bf16.mxu0 0
        %876 = vmatmul.mubr.bf16.gmra.mxu0 %v669
        %v877 = vpop.f32.mrf.mxu0
        %v878 = vadd.f32 %v445, %v877
        %v879 = vpop.f32.mrf.mxu0
        %v880 = vpop.f32.mrf.mxu0
        %v881 = vadd.f32 %v445, %v880
        %v882 = vpop.f32.mrf.mxu0
        %883 = vmatprep.mubr.bf16.mxu0 0
        %884 = vmatmul.mubr.bf16.gmra.mxu0 %v672
        %v885 = vpop.f32.mrf.mxu0
        %v886 = vadd.f32 %v445, %v885
        %v887 = vpop.f32.mrf.mxu0
        %v888 = vpop.f32.mrf.mxu0
        %v889 = vadd.f32 %v445, %v888
        %v890 = vpop.f32.mrf.mxu0
        %891 = vmatprep.mubr.bf16.mxu0 0
        %892 = vmatmul.mubr.bf16.gmra.mxu0 %v675
        %v893 = vpop.f32.mrf.mxu0
        %v894 = vadd.f32 %v445, %v893
        %v895 = vpop.f32.mrf.mxu0
        %v896 = vpop.f32.mrf.mxu0
        %v897 = vadd.f32 %v445, %v896
        %v898 = vpop.f32.mrf.mxu0
        %899 = vmatprep.mubr.bf16.mxu0 0
        %900 = vmatmul.mubr.bf16.gmra.mxu0 %v678
        %v901 = vpop.f32.mrf.mxu0
        %v902 = vadd.f32 %v445, %v901
        %v903 = vpop.f32.mrf.mxu0
        %v904 = vpop.f32.mrf.mxu0
        %v905 = vadd.f32 %v445, %v904
        %v906 = vpop.f32.mrf.mxu0
        %907 = vmatprep.mubr.bf16.mxu0 0
        %908 = vmatmul.mubr.bf16.gmra.mxu0 %v681
        %v909 = vpop.f32.mrf.mxu0
        %v910 = vadd.f32 %v445, %v909
        %v911 = vpop.f32.mrf.mxu0
        %v912 = vpop.f32.mrf.mxu0
        %v913 = vadd.f32 %v445, %v912
        %v914 = vpop.f32.mrf.mxu0
        %915 = vmatprep.mubr.bf16.mxu0 0
        %916 = vmatmul.mubr.bf16.gmra.mxu0 %v684
        %v917 = vpop.f32.mrf.mxu0
        %v918 = vadd.f32 %v445, %v917
        %v919 = vpop.f32.mrf.mxu0
        %v920 = vpop.f32.mrf.mxu0
        %v921 = vadd.f32 %v445, %v920
        %v922 = vpop.f32.mrf.mxu0
        %923 = vmatprep.mubr.bf16.mxu0 0
        %924 = vmatmul.mubr.bf16.gmra.mxu0 %v687
        %v925 = vpop.f32.mrf.mxu0
        %v926 = vadd.f32 %v445, %v925
        %v927 = vpop.f32.mrf.mxu0
        %v928 = vpop.f32.mrf.mxu0
        %v929 = vadd.f32 %v445, %v928
        %v930 = vpop.f32.mrf.mxu0
        %931 = vmatprep.mubr.bf16.mxu0 0
        %932 = vmatmul.mubr.bf16.gmra.mxu0 %v690
        %v933 = vpop.f32.mrf.mxu0
        %v934 = vadd.f32 %v445, %v933
        %v935 = vpop.f32.mrf.mxu0
        %v936 = vpop.f32.mrf.mxu0
        %v937 = vadd.f32 %v445, %v936
        %v938 = vpop.f32.mrf.mxu0
        %939 = vmatprep.mubr.bf16.mxu0 0
        %940 = vmatmul.mubr.bf16.gmra.mxu0 %v693
        %v941 = vpop.f32.mrf.mxu0
        %v942 = vadd.f32 %v445, %v941
        %v943 = vpop.f32.mrf.mxu0
        %v944 = vpop.f32.mrf.mxu0
        %v945 = vadd.f32 %v445, %v944
        %v946 = vpop.f32.mrf.mxu0
        %947 = vmatprep.mubr.bf16.mxu0 0
        %948 = vmatmul.mubr.bf16.gmra.mxu0 %v696
        %v949 = vpop.f32.mrf.mxu0
        %v950 = vadd.f32 %v445, %v949
        %v951 = vpop.f32.mrf.mxu0
        %v952 = vpop.f32.mrf.mxu0
        %v953 = vadd.f32 %v445, %v952
        %v954 = vpop.f32.mrf.mxu0
        %955 = vmatprep.mubr.bf16.mxu0 0
        %956 = vmatmul.mubr.bf16.gmra.mxu0 %v699
        %v957 = vpop.f32.mrf.mxu0
        %v958 = vadd.f32 %v445, %v957
        %v959 = vpop.f32.mrf.mxu0
        %v960 = vpop.f32.mrf.mxu0
        %v961 = vadd.f32 %v445, %v960
        %v962 = vpop.f32.mrf.mxu0
        %963 = vmatprep.mubr.bf16.mxu0 0
        %964 = vmatmul.mubr.bf16.gmra.mxu0 %v702
        %v965 = vpop.f32.mrf.mxu0
        %v966 = vadd.f32 %v445, %v965
        %v967 = vpop.f32.mrf.mxu0
        %v968 = vpop.f32.mrf.mxu0
        %v969 = vadd.f32 %v445, %v968
        %v970 = vpop.f32.mrf.mxu0
        %971 = vmatprep.mubr.bf16.mxu0 0
        %972 = vmatmul.mubr.bf16.gmra.mxu0 %v705
        %v973 = vpop.f32.mrf.mxu0
        %v974 = vadd.f32 %v445, %v973
        %v975 = vpop.f32.mrf.mxu0
        %v976 = vpop.f32.mrf.mxu0
        %v977 = vadd.f32 %v445, %v976
        %v978 = vpop.f32.mrf.mxu0
        %979 = vmatprep.mubr.bf16.mxu0 0
        %980 = vmatmul.mubr.bf16.gmra.mxu0 %v708
        %v981 = vpop.f32.mrf.mxu0
        %v982 = vadd.f32 %v445, %v981
        %v983 = vpop.f32.mrf.mxu0
        %v984 = vpop.f32.mrf.mxu0
        %v985 = vadd.f32 %v445, %v984
        %v986 = vpop.f32.mrf.mxu0
        %987 = vmatprep.mubr.bf16.mxu0 0
        %988 = vmatmul.mubr.bf16.gmra.mxu0 %v711
        %v989 = vpop.f32.mrf.mxu0
        %v990 = vadd.f32 %v445, %v989
        %v991 = vpop.f32.mrf.mxu0
        %v992 = vpop.f32.mrf.mxu0
        %v993 = vadd.f32 %v445, %v992
        %v994 = vpop.f32.mrf.mxu0
        %995 = vmatprep.mubr.bf16.mxu0 0
        %996 = vmatmul.mubr.bf16.gmra.mxu0 %v714
        %v997 = vpop.f32.mrf.mxu0
        %v998 = vadd.f32 %v445, %v997
        %v999 = vpop.f32.mrf.mxu0
        %v1000 = vpop.f32.mrf.mxu0
        %v1001 = vadd.f32 %v445, %v1000
        %v1002 = vpop.f32.mrf.mxu0
        %1003 = vmatprep.mubr.bf16.mxu0 0
        %1004 = vmatmul.mubr.bf16.gmra.mxu0 %v717
        %v1005 = vpop.f32.mrf.mxu0
        %v1006 = vadd.f32 %v445, %v1005
        %v1007 = vpop.f32.mrf.mxu0
        %v1008 = vpop.f32.mrf.mxu0
        %v1009 = vadd.f32 %v445, %v1008
        %v1010 = vpop.f32.mrf.mxu0
        %1011 = vdwg.mxu0
        %vm1012 = vcmask 261120
        %v1013 = vsel %vm1012, %v758, -inf
        %v1014 = vsel %vm1012, %v761, -inf
        %v1015 = vmax.f32 %v1013, %v1014
        %v1016 = vrot.slane %v1015, 4
        %v1017 = vmax.f32 %v1015, %v1016
        %v1018 = vrot.slane %v1017, 2
        %v1019 = vmax.f32 %v1017, %v1018
        %v1020 = vrot.slane %v1019, 1
        %v1021 = vmax.f32 %v1019, %v1020
        %v1022 = vsel %vm1012, %v766, -inf
        %v1023 = vsel %vm1012, %v769, -inf
        %v1024 = vmax.f32 %v1022, %v1023
        %v1025 = vrot.slane %v1024, 4
        %v1026 = vmax.f32 %v1024, %v1025
        %v1027 = vrot.slane %v1026, 2
        %v1028 = vmax.f32 %v1026, %v1027
        %v1029 = vrot.slane %v1028, 1
        %v1030 = vmax.f32 %v1028, %v1029
        %v1031 = vsel %vm1012, %v774, -inf
        %v1032 = vsel %vm1012, %v777, -inf
        %v1033 = vmax.f32 %v1031, %v1032
        %v1034 = vrot.slane %v1033, 4
        %v1035 = vmax.f32 %v1033, %v1034
        %v1036 = vrot.slane %v1035, 2
        %v1037 = vmax.f32 %v1035, %v1036
        %v1038 = vrot.slane %v1037, 1
        %v1039 = vmax.f32 %v1037, %v1038
        %v1040 = vsel %vm1012, %v782, -inf
        %v1041 = vsel %vm1012, %v785, -inf
        %v1042 = vmax.f32 %v1040, %v1041
        %v1043 = vrot.slane %v1042, 4
        %v1044 = vmax.f32 %v1042, %v1043
        %v1045 = vrot.slane %v1044, 2
        %v1046 = vmax.f32 %v1044, %v1045
        %v1047 = vrot.slane %v1046, 1
        %v1048 = vmax.f32 %v1046, %v1047
        %v1049 = vsel %vm1012, %v790, -inf
        %v1050 = vsel %vm1012, %v793, -inf
        %v1051 = vmax.f32 %v1049, %v1050
        %v1052 = vrot.slane %v1051, 4
        %v1053 = vmax.f32 %v1051, %v1052
        %v1054 = vrot.slane %v1053, 2
        %v1055 = vmax.f32 %v1053, %v1054
        %v1056 = vrot.slane %v1055, 1
        %v1057 = vmax.f32 %v1055, %v1056
        %v1058 = vsel %vm1012, %v798, -inf
        %v1059 = vsel %vm1012, %v801, -inf
        %v1060 = vmax.f32 %v1058, %v1059
        %v1061 = vrot.slane %v1060, 4
        %v1062 = vmax.f32 %v1060, %v1061
        %v1063 = vrot.slane %v1062, 2
        %v1064 = vmax.f32 %v1062, %v1063
        %v1065 = vrot.slane %v1064, 1
        %v1066 = vmax.f32 %v1064, %v1065
        %v1067 = vsel %vm1012, %v806, -inf
        %v1068 = vsel %vm1012, %v809, -inf
        %v1069 = vmax.f32 %v1067, %v1068
        %v1070 = vrot.slane %v1069, 4
        %v1071 = vmax.f32 %v1069, %v1070
        %v1072 = vrot.slane %v1071, 2
        %v1073 = vmax.f32 %v1071, %v1072
        %v1074 = vrot.slane %v1073, 1
        %v1075 = vmax.f32 %v1073, %v1074
        %v1076 = vsel %vm1012, %v814, -inf
        %v1077 = vsel %vm1012, %v817, -inf
        %v1078 = vmax.f32 %v1076, %v1077
        %v1079 = vrot.slane %v1078, 4
        %v1080 = vmax.f32 %v1078, %v1079
        %v1081 = vrot.slane %v1080, 2
        %v1082 = vmax.f32 %v1080, %v1081
        %v1083 = vrot.slane %v1082, 1
        %v1084 = vmax.f32 %v1082, %v1083
        %v1085 = vsel %vm1012, %v822, -inf
        %v1086 = vsel %vm1012, %v825, -inf
        %v1087 = vmax.f32 %v1085, %v1086
        %v1088 = vrot.slane %v1087, 4
        %v1089 = vmax.f32 %v1087, %v1088
        %v1090 = vrot.slane %v1089, 2
        %v1091 = vmax.f32 %v1089, %v1090
        %v1092 = vrot.slane %v1091, 1
        %v1093 = vmax.f32 %v1091, %v1092
        %v1094 = vsel %vm1012, %v830, -inf
        %v1095 = vsel %vm1012, %v833, -inf
        %v1096 = vmax.f32 %v1094, %v1095
        %v1097 = vrot.slane %v1096, 4
        %v1098 = vmax.f32 %v1096, %v1097
        %v1099 = vrot.slane %v1098, 2
        %v1100 = vmax.f32 %v1098, %v1099
        %v1101 = vrot.slane %v1100, 1
        %v1102 = vmax.f32 %v1100, %v1101
        %v1103 = vsel %vm1012, %v838, -inf
        %v1104 = vsel %vm1012, %v841, -inf
        %v1105 = vmax.f32 %v1103, %v1104
        %v1106 = vrot.slane %v1105, 4
        %v1107 = vmax.f32 %v1105, %v1106
        %v1108 = vrot.slane %v1107, 2
        %v1109 = vmax.f32 %v1107, %v1108
        %v1110 = vrot.slane %v1109, 1
        %v1111 = vmax.f32 %v1109, %v1110
        %v1112 = vsel %vm1012, %v846, -inf
        %v1113 = vsel %vm1012, %v849, -inf
        %v1114 = vmax.f32 %v1112, %v1113
        %v1115 = vrot.slane %v1114, 4
        %v1116 = vmax.f32 %v1114, %v1115
        %v1117 = vrot.slane %v1116, 2
        %v1118 = vmax.f32 %v1116, %v1117
        %v1119 = vrot.slane %v1118, 1
        %v1120 = vmax.f32 %v1118, %v1119
        %v1121 = vsel %vm1012, %v854, -inf
        %v1122 = vsel %vm1012, %v857, -inf
        %v1123 = vmax.f32 %v1121, %v1122
        %v1124 = vrot.slane %v1123, 4
        %v1125 = vmax.f32 %v1123, %v1124
        %v1126 = vrot.slane %v1125, 2
        %v1127 = vmax.f32 %v1125, %v1126
        %v1128 = vrot.slane %v1127, 1
        %v1129 = vmax.f32 %v1127, %v1128
        %v1130 = vsel %vm1012, %v862, -inf
        %v1131 = vsel %vm1012, %v865, -inf
        %v1132 = vmax.f32 %v1130, %v1131
        %v1133 = vrot.slane %v1132, 4
        %v1134 = vmax.f32 %v1132, %v1133
        %v1135 = vrot.slane %v1134, 2
        %v1136 = vmax.f32 %v1134, %v1135
        %v1137 = vrot.slane %v1136, 1
        %v1138 = vmax.f32 %v1136, %v1137
        %v1139 = vsel %vm1012, %v870, -inf
        %v1140 = vsel %vm1012, %v873, -inf
        %v1141 = vmax.f32 %v1139, %v1140
        %v1142 = vrot.slane %v1141, 4
        %v1143 = vmax.f32 %v1141, %v1142
        %v1144 = vrot.slane %v1143, 2
        %v1145 = vmax.f32 %v1143, %v1144
        %v1146 = vrot.slane %v1145, 1
        %v1147 = vmax.f32 %v1145, %v1146
        %v1148 = vsel %vm1012, %v878, -inf
        %v1149 = vsel %vm1012, %v881, -inf
        %v1150 = vmax.f32 %v1148, %v1149
        %v1151 = vrot.slane %v1150, 4
        %v1152 = vmax.f32 %v1150, %v1151
        %v1153 = vrot.slane %v1152, 2
        %v1154 = vmax.f32 %v1152, %v1153
        %v1155 = vrot.slane %v1154, 1
        %v1156 = vmax.f32 %v1154, %v1155
        %v1157 = vsel %vm1012, %v886, -inf
        %v1158 = vsel %vm1012, %v889, -inf
        %v1159 = vmax.f32 %v1157, %v1158
        %v1160 = vrot.slane %v1159, 4
        %v1161 = vmax.f32 %v1159, %v1160
        %v1162 = vrot.slane %v1161, 2
        %v1163 = vmax.f32 %v1161, %v1162
        %v1164 = vrot.slane %v1163, 1
        %v1165 = vmax.f32 %v1163, %v1164
        %v1166 = vsel %vm1012, %v894, -inf
        %v1167 = vsel %vm1012, %v897, -inf
        %v1168 = vmax.f32 %v1166, %v1167
        %v1169 = vrot.slane %v1168, 4
        %v1170 = vmax.f32 %v1168, %v1169
        %v1171 = vrot.slane %v1170, 2
        %v1172 = vmax.f32 %v1170, %v1171
        %v1173 = vrot.slane %v1172, 1
        %v1174 = vmax.f32 %v1172, %v1173
        %v1175 = vsel %vm1012, %v902, -inf
        %v1176 = vsel %vm1012, %v905, -inf
        %v1177 = vmax.f32 %v1175, %v1176
        %v1178 = vrot.slane %v1177, 4
        %v1179 = vmax.f32 %v1177, %v1178
        %v1180 = vrot.slane %v1179, 2
        %v1181 = vmax.f32 %v1179, %v1180
        %v1182 = vrot.slane %v1181, 1
        %v1183 = vmax.f32 %v1181, %v1182
        %v1184 = vsel %vm1012, %v910, -inf
        %v1185 = vsel %vm1012, %v913, -inf
        %v1186 = vmax.f32 %v1184, %v1185
        %v1187 = vrot.slane %v1186, 4
        %v1188 = vmax.f32 %v1186, %v1187
        %v1189 = vrot.slane %v1188, 2
        %v1190 = vmax.f32 %v1188, %v1189
        %v1191 = vrot.slane %v1190, 1
        %v1192 = vmax.f32 %v1190, %v1191
        %v1193 = vsel %vm1012, %v918, -inf
        %v1194 = vsel %vm1012, %v921, -inf
        %v1195 = vmax.f32 %v1193, %v1194
        %v1196 = vrot.slane %v1195, 4
        %v1197 = vmax.f32 %v1195, %v1196
        %v1198 = vrot.slane %v1197, 2
        %v1199 = vmax.f32 %v1197, %v1198
        %v1200 = vrot.slane %v1199, 1
        %v1201 = vmax.f32 %v1199, %v1200
        %v1202 = vsel %vm1012, %v926, -inf
        %v1203 = vsel %vm1012, %v929, -inf
        %v1204 = vmax.f32 %v1202, %v1203
        %v1205 = vrot.slane %v1204, 4
        %v1206 = vmax.f32 %v1204, %v1205
        %v1207 = vrot.slane %v1206, 2
        %v1208 = vmax.f32 %v1206, %v1207
        %v1209 = vrot.slane %v1208, 1
        %v1210 = vmax.f32 %v1208, %v1209
        %v1211 = vsel %vm1012, %v934, -inf
        %v1212 = vsel %vm1012, %v937, -inf
        %v1213 = vmax.f32 %v1211, %v1212
        %v1214 = vrot.slane %v1213, 4
        %v1215 = vmax.f32 %v1213, %v1214
        %v1216 = vrot.slane %v1215, 2
        %v1217 = vmax.f32 %v1215, %v1216
        %v1218 = vrot.slane %v1217, 1
        %v1219 = vmax.f32 %v1217, %v1218
        %v1220 = vsel %vm1012, %v942, -inf
        %v1221 = vsel %vm1012, %v945, -inf
        %v1222 = vmax.f32 %v1220, %v1221
        %v1223 = vrot.slane %v1222, 4
        %v1224 = vmax.f32 %v1222, %v1223
        %v1225 = vrot.slane %v1224, 2
        %v1226 = vmax.f32 %v1224, %v1225
        %v1227 = vrot.slane %v1226, 1
        %v1228 = vmax.f32 %v1226, %v1227
        %v1229 = vsel %vm1012, %v950, -inf
        %v1230 = vsel %vm1012, %v953, -inf
        %v1231 = vmax.f32 %v1229, %v1230
        %v1232 = vrot.slane %v1231, 4
        %v1233 = vmax.f32 %v1231, %v1232
        %v1234 = vrot.slane %v1233, 2
        %v1235 = vmax.f32 %v1233, %v1234
        %v1236 = vrot.slane %v1235, 1
        %v1237 = vmax.f32 %v1235, %v1236
        %v1238 = vsel %vm1012, %v958, -inf
        %v1239 = vsel %vm1012, %v961, -inf
        %v1240 = vmax.f32 %v1238, %v1239
        %v1241 = vrot.slane %v1240, 4
        %v1242 = vmax.f32 %v1240, %v1241
        %v1243 = vrot.slane %v1242, 2
        %v1244 = vmax.f32 %v1242, %v1243
        %v1245 = vrot.slane %v1244, 1
        %v1246 = vmax.f32 %v1244, %v1245
        %v1247 = vsel %vm1012, %v966, -inf
        %v1248 = vsel %vm1012, %v969, -inf
        %v1249 = vmax.f32 %v1247, %v1248
        %v1250 = vrot.slane %v1249, 4
        %v1251 = vmax.f32 %v1249, %v1250
        %v1252 = vrot.slane %v1251, 2
        %v1253 = vmax.f32 %v1251, %v1252
        %v1254 = vrot.slane %v1253, 1
        %v1255 = vmax.f32 %v1253, %v1254
        %v1256 = vsel %vm1012, %v974, -inf
        %v1257 = vsel %vm1012, %v977, -inf
        %v1258 = vmax.f32 %v1256, %v1257
        %v1259 = vrot.slane %v1258, 4
        %v1260 = vmax.f32 %v1258, %v1259
        %v1261 = vrot.slane %v1260, 2
        %v1262 = vmax.f32 %v1260, %v1261
        %v1263 = vrot.slane %v1262, 1
        %v1264 = vmax.f32 %v1262, %v1263
        %v1265 = vsel %vm1012, %v982, -inf
        %v1266 = vsel %vm1012, %v985, -inf
        %v1267 = vmax.f32 %v1265, %v1266
        %v1268 = vrot.slane %v1267, 4
        %v1269 = vmax.f32 %v1267, %v1268
        %v1270 = vrot.slane %v1269, 2
        %v1271 = vmax.f32 %v1269, %v1270
        %v1272 = vrot.slane %v1271, 1
        %v1273 = vmax.f32 %v1271, %v1272
        %v1274 = vsel %vm1012, %v990, -inf
        %v1275 = vsel %vm1012, %v993, -inf
        %v1276 = vmax.f32 %v1274, %v1275
        %v1277 = vrot.slane %v1276, 4
        %v1278 = vmax.f32 %v1276, %v1277
        %v1279 = vrot.slane %v1278, 2
        %v1280 = vmax.f32 %v1278, %v1279
        %v1281 = vrot.slane %v1280, 1
        %v1282 = vmax.f32 %v1280, %v1281
        %v1283 = vsel %vm1012, %v998, -inf
        %v1284 = vsel %vm1012, %v1001, -inf
        %v1285 = vmax.f32 %v1283, %v1284
        %v1286 = vrot.slane %v1285, 4
        %v1287 = vmax.f32 %v1285, %v1286
        %v1288 = vrot.slane %v1287, 2
        %v1289 = vmax.f32 %v1287, %v1288
        %v1290 = vrot.slane %v1289, 1
        %v1291 = vmax.f32 %v1289, %v1290
        %v1292 = vsel %vm1012, %v1006, -inf
        %v1293 = vsel %vm1012, %v1009, -inf
        %v1294 = vmax.f32 %v1292, %v1293
        %v1295 = vrot.slane %v1294, 4
        %v1296 = vmax.f32 %v1294, %v1295
        %v1297 = vrot.slane %v1296, 2
        %v1298 = vmax.f32 %v1296, %v1297
        %v1299 = vrot.slane %v1298, 1
        %v1300 = vmax.f32 %v1298, %v1299
        %v1301 = vpack.c.bf16 %v1021, %v1021
        %v1302 = vpack.c.bf16 %v1030, %v1030
        %v1303 = vpack.c.bf16 %v1039, %v1039
        %v1304 = vpack.c.bf16 %v1048, %v1048
        %v1305 = vpack.c.bf16 %v1057, %v1057
        %v1306 = vpack.c.bf16 %v1066, %v1066
        %v1307 = vpack.c.bf16 %v1075, %v1075
        %v1308 = vpack.c.bf16 %v1084, %v1084
        %v1309 = vpack.c.bf16 %v1093, %v1093
        %v1310 = vpack.c.bf16 %v1102, %v1102
        %v1311 = vpack.c.bf16 %v1111, %v1111
        %v1312 = vpack.c.bf16 %v1120, %v1120
        %v1313 = vpack.c.bf16 %v1129, %v1129
        %v1314 = vpack.c.bf16 %v1138, %v1138
        %v1315 = vpack.c.bf16 %v1147, %v1147
        %v1316 = vpack.c.bf16 %v1156, %v1156
        %v1317 = vpack.c.bf16 %v1165, %v1165
        %v1318 = vpack.c.bf16 %v1174, %v1174
        %v1319 = vpack.c.bf16 %v1183, %v1183
        %v1320 = vpack.c.bf16 %v1192, %v1192
        %v1321 = vpack.c.bf16 %v1201, %v1201
        %v1322 = vpack.c.bf16 %v1210, %v1210
        %v1323 = vpack.c.bf16 %v1219, %v1219
        %v1324 = vpack.c.bf16 %v1228, %v1228
        %v1325 = vpack.c.bf16 %v1237, %v1237
        %v1326 = vpack.c.bf16 %v1246, %v1246
        %v1327 = vpack.c.bf16 %v1255, %v1255
        %v1328 = vpack.c.bf16 %v1264, %v1264
        %v1329 = vpack.c.bf16 %v1273, %v1273
        %v1330 = vpack.c.bf16 %v1282, %v1282
        %v1331 = vpack.c.bf16 %v1291, %v1291
        %v1332 = vpack.c.bf16 %v1300, %v1300
        %v1333 = vld [vmem:[%s4] sm:$0xf]
        %v1334 = vld [vmem:[%s4 + $0x4] sm:$0xf]
        %v1335 = vld [vmem:[%s4 + $0x8] sm:$0xf]
        %v1336 = vld [vmem:[%s4 + $0xc] sm:$0xf]
        %v1337 = vld [vmem:[%s5] sm:$0x1]
        %v1339 = vlaneseq
        %v1340 = vshrl.u32 %v1339, 7
        %v1341 = vsub.s32 0, %v1340
        %v1342 = vrot.slane %v1337, %v1341
        %v1376 = vunpack.c.l.b16 %v1301
        %v1377 = vunpack.c.l.b16 %v1302
        %v1378 = vunpack.c.l.b16 %v1303
        %v1379 = vunpack.c.l.b16 %v1304
        %v1380 = vunpack.c.l.b16 %v1305
        %v1381 = vunpack.c.l.b16 %v1306
        %v1382 = vunpack.c.l.b16 %v1307
        %v1383 = vunpack.c.l.b16 %v1308
        %v1384 = vunpack.c.l.b16 %v1309
        %v1385 = vunpack.c.l.b16 %v1310
        %v1386 = vunpack.c.l.b16 %v1311
        %v1387 = vunpack.c.l.b16 %v1312
        %v1388 = vunpack.c.l.b16 %v1313
        %v1389 = vunpack.c.l.b16 %v1314
        %v1390 = vunpack.c.l.b16 %v1315
        %v1391 = vunpack.c.l.b16 %v1316
        %v1392 = vunpack.c.l.b16 %v1317
        %v1393 = vunpack.c.l.b16 %v1318
        %v1394 = vunpack.c.l.b16 %v1319
        %v1395 = vunpack.c.l.b16 %v1320
        %v1396 = vunpack.c.l.b16 %v1321
        %v1397 = vunpack.c.l.b16 %v1322
        %v1398 = vunpack.c.l.b16 %v1323
        %v1399 = vunpack.c.l.b16 %v1324
        %v1400 = vunpack.c.l.b16 %v1325
        %v1401 = vunpack.c.l.b16 %v1326
        %v1402 = vunpack.c.l.b16 %v1327
        %v1403 = vunpack.c.l.b16 %v1328
        %v1404 = vunpack.c.l.b16 %v1329
        %v1405 = vunpack.c.l.b16 %v1330
        %v1406 = vunpack.c.l.b16 %v1331
        %v1407 = vunpack.c.l.b16 %v1332
        %vm1408 = vcmask 1041409
        %v1409 = vsel %vm1408, %v1377, %v1376
        %vm1410 = vcmask 1042434
        %v1411 = vsel %vm1410, %v1378, %v1409
        %vm1412 = vcmask 1043459
        %v1413 = vsel %vm1412, %v1379, %v1411
        %vm1414 = vcmask 1044484
        %v1415 = vsel %vm1414, %v1380, %v1413
        %vm1416 = vcmask 1045509
        %v1417 = vsel %vm1416, %v1381, %v1415
        %vm1418 = vcmask 1046534
        %v1419 = vsel %vm1418, %v1382, %v1417
        %vm1420 = vcmask 1047559
        %v1421 = vsel %vm1420, %v1383, %v1419
        %v1422 = vsel %vm1408, %v1385, %v1384
        %v1423 = vsel %vm1410, %v1386, %v1422
        %v1424 = vsel %vm1412, %v1387, %v1423
        %v1425 = vsel %vm1414, %v1388, %v1424
        %v1426 = vsel %vm1416, %v1389, %v1425
        %v1427 = vsel %vm1418, %v1390, %v1426
        %v1428 = vsel %vm1420, %v1391, %v1427
        %v1429 = vsel %vm1408, %v1393, %v1392
        %v1430 = vsel %vm1410, %v1394, %v1429
        %v1431 = vsel %vm1412, %v1395, %v1430
        %v1432 = vsel %vm1414, %v1396, %v1431
        %v1433 = vsel %vm1416, %v1397, %v1432
        %v1434 = vsel %vm1418, %v1398, %v1433
        %v1435 = vsel %vm1420, %v1399, %v1434
        %v1436 = vsel %vm1408, %v1401, %v1400
        %v1437 = vsel %vm1410, %v1402, %v1436
        %v1438 = vsel %vm1412, %v1403, %v1437
        %v1439 = vsel %vm1414, %v1404, %v1438
        %v1440 = vsel %vm1416, %v1405, %v1439
        %v1441 = vsel %vm1418, %v1406, %v1440
        %v1442 = vsel %vm1420, %v1407, %v1441
        %v1443 = vpack.c.b16 %v1428, %v1421
        %v1444 = vpack.c.b16 %v1442, %v1435
        %v1449 = vunpack.c.l.b16 %v1333
        %v1450 = vunpack.c.l.b16 %v1334
        %v1451 = vunpack.c.l.b16 %v1335
        %v1452 = vunpack.c.l.b16 %v1336
        %v1453 = vpack.c.b16 %v1450, %v1449
        %v1454 = vpack.c.b16 %v1452, %v1451
        %v1458 = vsel %vm1012, %v1443, 0
        %v1461 = vsel %vm1012, %v1444, 0
        %1463 = vmatprep.subr.bf16.mxu0 0
        %1464 = vmatpush1.bf16.msra.mxu0 0
        %1465 = vmatprep.subr.bf16.mxu0 0
        %1466 = vmatpush1.bf16.msra.mxu0 0
        %1467 = vmatprep.subr.bf16.mxu0 0
        %1468 = vmatpush1.bf16.msra.mxu0 0
        %1469 = vmatprep.subr.bf16.mxu0 0
        %1470 = vmatpush1.bf16.msra.mxu0 0
        %1471 = vmatprep.subr.bf16.mxu0 0
        %1472 = vmatpush1.bf16.msra.mxu0 0
        %1473 = vmatprep.subr.bf16.mxu0 0
        %1474 = vmatpush1.bf16.msra.mxu0 0
        %1475 = vmatprep.subr.bf16.mxu0 0
        %1476 = vmatpush1.bf16.msra.mxu0 %v1454
        %1477 = vmatprep.subr.bf16.mxu0 0
        %1478 = vmatpush1.bf16.msra.mxu0 %v1453
        %1479 = vmatprep.subr.bf16.mxu0 0
        %1480 = vmatpush2.bf16.msra.mxu0 0
        %1481 = vmatprep.subr.bf16.mxu0 0
        %1482 = vmatpush2.bf16.msra.mxu0 0
        %1483 = vmatprep.subr.bf16.mxu0 0
        %1484 = vmatpush2.bf16.msra.mxu0 0
        %1485 = vmatprep.subr.bf16.mxu0 0
        %1486 = vmatpush2.bf16.msra.mxu0 0
        %1487 = vmatprep.subr.bf16.mxu0 0
        %1488 = vmatpush2.bf16.msra.mxu0 0
        %1489 = vmatprep.subr.bf16.mxu0 0
        %1490 = vmatpush2.bf16.msra.mxu0 0
        %1491 = vmatprep.subr.bf16.mxu0 0
        %1492 = vmatpush2.bf16.msra.mxu0 0
        %1493 = vmatprep.subr.bf16.mxu0 0
        %1494 = vmatpush2.bf16.msra.mxu0 0
        %1495 = vmatprep.mubr.bf16.mxu0 0
        %1496 = vmatmul.mubr.bf16.gmra.mxu0 %v1458
        %v1497 = vpop.f32.mrf.mxu0
        %v1498 = vadd.f32 %v1342, %v1497
        %v1499 = vpop.f32.mrf.mxu0
        %v1500 = vpop.f32.mrf.mxu0
        %v1501 = vadd.f32 %v1342, %v1500
        %v1502 = vpop.f32.mrf.mxu0
        %1503 = vmatprep.mubr.bf16.mxu0 0
        %1504 = vmatmul.mubr.bf16.gmra.mxu0 %v1461
        %v1505 = vpop.f32.mrf.mxu0
        %v1506 = vadd.f32 %v1342, %v1505
        %v1507 = vpop.f32.mrf.mxu0
        %v1508 = vpop.f32.mrf.mxu0
        %v1509 = vadd.f32 %v1342, %v1508
        %v1510 = vpop.f32.mrf.mxu0
        %1511 = vdwg.mxu0
        %v1512 = vmax.f32 %v1498, 0.0
        %v1513 = vmax.f32 %v1501, 0.0
        %v1514 = vmax.f32 %v1506, 0.0
        %v1515 = vmax.f32 %v1509, 0.0
        %v1516 = vpack.c.bf16 %v1513, %v1512
        %v1517 = vpack.c.bf16 %v1515, %v1514
        %v1518 = vld [vmem:[%s6] sm:$0xf]
        %v1519 = vld [vmem:[%s6 + $0x4] sm:$0xf]
        %v1520 = vld [vmem:[%s6 + $0x8] sm:$0xf]
        %v1521 = vld [vmem:[%s6 + $0xc] sm:$0xf]
        %v1522 = vld [vmem:[%s6 + $0x10] sm:$0xf]
        %v1523 = vld [vmem:[%s6 + $0x14] sm:$0xf]
        %v1524 = vld [vmem:[%s6 + $0x18] sm:$0xf]
        %v1525 = vld [vmem:[%s6 + $0x1c] sm:$0xf]
        %v1526 = vld [vmem:[%s6 + $0x20] sm:$0xf]
        %v1527 = vld [vmem:[%s6 + $0x24] sm:$0xf]
        %v1528 = vld [vmem:[%s6 + $0x28] sm:$0xf]
        %v1529 = vld [vmem:[%s6 + $0x2c] sm:$0xf]
        %v1530 = vld [vmem:[%s6 + $0x30] sm:$0xf]
        %v1531 = vld [vmem:[%s6 + $0x34] sm:$0xf]
        %v1532 = vld [vmem:[%s6 + $0x38] sm:$0xf]
        %v1533 = vld [vmem:[%s6 + $0x3c] sm:$0xf]
        %v1534 = vld [vmem:[%s7] sm:$0x1]
        %v1536 = vlaneseq
        %v1537 = vshrl.u32 %v1536, 7
        %v1538 = vsub.s32 0, %v1537
        %v1539 = vrot.slane %v1534, %v1538
        %v1557 = vunpack.c.l.b16 %v1518
        %v1558 = vunpack.c.l.b16 %v1519
        %v1559 = vunpack.c.l.b16 %v1520
        %v1560 = vunpack.c.l.b16 %v1521
        %v1561 = vunpack.c.l.b16 %v1522
        %v1562 = vunpack.c.l.b16 %v1523
        %v1563 = vunpack.c.l.b16 %v1524
        %v1564 = vunpack.c.l.b16 %v1525
        %v1565 = vunpack.c.l.b16 %v1526
        %v1566 = vunpack.c.l.b16 %v1527
        %v1567 = vunpack.c.l.b16 %v1528
        %v1568 = vunpack.c.l.b16 %v1529
        %v1569 = vunpack.c.l.b16 %v1530
        %v1570 = vunpack.c.l.b16 %v1531
        %v1571 = vunpack.c.l.b16 %v1532
        %v1572 = vunpack.c.l.b16 %v1533
        %v1573 = vpack.c.b16 %v1558, %v1557
        %v1574 = vpack.c.b16 %v1560, %v1559
        %v1575 = vpack.c.b16 %v1562, %v1561
        %v1576 = vpack.c.b16 %v1564, %v1563
        %v1577 = vpack.c.b16 %v1566, %v1565
        %v1578 = vpack.c.b16 %v1568, %v1567
        %v1579 = vpack.c.b16 %v1570, %v1569
        %v1580 = vpack.c.b16 %v1572, %v1571
        %1589 = vmatprep.subr.bf16.mxu0 0
        %1590 = vmatpush1.bf16.msra.mxu0 %v1580
        %1591 = vmatprep.subr.bf16.mxu0 0
        %1592 = vmatpush1.bf16.msra.mxu0 %v1579
        %1593 = vmatprep.subr.bf16.mxu0 0
        %1594 = vmatpush1.bf16.msra.mxu0 %v1578
        %1595 = vmatprep.subr.bf16.mxu0 0
        %1596 = vmatpush1.bf16.msra.mxu0 %v1577
        %1597 = vmatprep.subr.bf16.mxu0 0
        %1598 = vmatpush1.bf16.msra.mxu0 %v1576
        %1599 = vmatprep.subr.bf16.mxu0 0
        %1600 = vmatpush1.bf16.msra.mxu0 %v1575
        %1601 = vmatprep.subr.bf16.mxu0 0
        %1602 = vmatpush1.bf16.msra.mxu0 %v1574
        %1603 = vmatprep.subr.bf16.mxu0 0
        %1604 = vmatpush1.bf16.msra.mxu0 %v1573
        %1605 = vmatprep.subr.bf16.mxu0 0
        %1606 = vmatpush2.bf16.msra.mxu0 0
        %1607 = vmatprep.subr.bf16.mxu0 0
        %1608 = vmatpush2.bf16.msra.mxu0 0
        %1609 = vmatprep.subr.bf16.mxu0 0
        %1610 = vmatpush2.bf16.msra.mxu0 0
        %1611 = vmatprep.subr.bf16.mxu0 0
        %1612 = vmatpush2.bf16.msra.mxu0 0
        %1613 = vmatprep.subr.bf16.mxu0 0
        %1614 = vmatpush2.bf16.msra.mxu0 0
        %1615 = vmatprep.subr.bf16.mxu0 0
        %1616 = vmatpush2.bf16.msra.mxu0 0
        %1617 = vmatprep.subr.bf16.mxu0 0
        %1618 = vmatpush2.bf16.msra.mxu0 0
        %1619 = vmatprep.subr.bf16.mxu0 0
        %1620 = vmatpush2.bf16.msra.mxu0 0
        %1621 = vmatprep.mubr.bf16.mxu0 0
        %1622 = vmatmul.mubr.bf16.gmra.mxu0 %v1516
        %v1623 = vpop.f32.mrf.mxu0
        %v1624 = vadd.f32 %v1539, %v1623
        %v1625 = vpop.f32.mrf.mxu0
        %v1626 = vpop.f32.mrf.mxu0
        %v1627 = vadd.f32 %v1539, %v1626
        %v1628 = vpop.f32.mrf.mxu0
        %1629 = vmatprep.mubr.bf16.mxu0 0
        %1630 = vmatmul.mubr.bf16.gmra.mxu0 %v1517
        %v1631 = vpop.f32.mrf.mxu0
        %v1632 = vadd.f32 %v1539, %v1631
        %v1633 = vpop.f32.mrf.mxu0
        %v1634 = vpop.f32.mrf.mxu0
        %v1635 = vadd.f32 %v1539, %v1634
        %v1636 = vpop.f32.mrf.mxu0
        %1637 = vdwg.mxu0
        %v1638 = vld [vmem:[%s368] sm:$0xff]
        %v1639 = vld [vmem:[%s368 + $0x8] sm:$0xff]
        %v1640 = vld [vmem:[%s368 + $0x10] sm:$0xff]
        %v1641 = vld [vmem:[%s368 + $0x18] sm:$0xff]
        %v1642 = vadd.f32 %v1624, %v1638
        %v1643 = vadd.f32 %v1627, %v1639
        %v1644 = vadd.f32 %v1632, %v1640
        %v1645 = vadd.f32 %v1635, %v1641
        %v1646 = vmax.f32 %v1642, 0.0
        %v1647 = vmax.f32 %v1643, 0.0
        %v1648 = vmax.f32 %v1644, 0.0
        %v1649 = vmax.f32 %v1645, 0.0
        %1650 = vxpose.xlu0.b32.start [1/16] %v1646, 128
        %1651 = vxpose.xlu0.b32.cont [2/16] %v1647, 128
        %1652 = vxpose.xlu0.b32.cont [3/16] %v1648, 128
        %1653 = vxpose.xlu0.b32.cont [4/16] %v1649, 128
        %1654 = vxpose.xlu0.b32.cont [5/16] 0.0, 128
        %1655 = vxpose.xlu0.b32.cont [6/16] 0.0, 128
        %1656 = vxpose.xlu0.b32.cont [7/16] 0.0, 128
        %1657 = vxpose.xlu0.b32.cont [8/16] 0.0, 128
        %1658 = vxpose.xlu0.b32.cont [9/16] 0.0, 128
        %1659 = vxpose.xlu0.b32.cont [10/16] 0.0, 128
        %1660 = vxpose.xlu0.b32.cont [11/16] 0.0, 128
        %1661 = vxpose.xlu0.b32.cont [12/16] 0.0, 128
        %1662 = vxpose.xlu0.b32.cont [13/16] 0.0, 128
        %1663 = vxpose.xlu0.b32.cont [14/16] 0.0, 128
        %1664 = vxpose.xlu0.b32.cont [15/16] 0.0, 128
        %1665 = vxpose.xlu0.b32.end [16/16] 0.0, 128
        %v1666 = vpop.trf.xlu0
        %v1667 = vpop.trf.xlu0
        %v1668 = vpop.trf.xlu0
        %v1669 = vpop.trf.xlu0
        %v1670 = vpop.trf.xlu0
        %v1671 = vpop.trf.xlu0
        %v1672 = vpop.trf.xlu0
        %v1673 = vpop.trf.xlu0
        %v1674 = vpop.trf.xlu0
        %v1675 = vpop.trf.xlu0
        %v1676 = vpop.trf.xlu0
        %v1677 = vpop.trf.xlu0
        %v1678 = vpop.trf.xlu0
        %v1679 = vpop.trf.xlu0
        %v1680 = vpop.trf.xlu0
        %v1681 = vpop.trf.xlu0
        %1682 = vst.msk [vmem:[%s349] sm:$0xff] %vm1012, %v1666
        %1683 = vst.msk [vmem:[%s349 + $0x8] sm:$0xff] %vm1012, %v1667
        %1684 = vst.msk [vmem:[%s349 + $0x10] sm:$0xff] %vm1012, %v1668
        %1685 = vst.msk [vmem:[%s349 + $0x18] sm:$0xff] %vm1012, %v1669
        %s1686 = sand.u32 %s226, 1
        %s1687 = scalar_lea.sflag [#allocation3], %s1686
        %s1688 = sand.u32 %s226, 1
        %s1689 = smul.addr %s1688, 32
        %s1690 = scalar_lea.vmem [#allocation2], %s1689
        // Predicated region
        $region53: #{local_aggregator_forward.3} parent=51 // pred_check
          %p1691 = pneg %p236
        $region54: #{local_aggregator_forward.3} parent=51 // pred_check_branch
          %1693 = sbr.rel (%p1691) target = $region56
        $region55: #{local_aggregator_forward.3} parent=51 // pred_region
          %s1695 = ssub.s32 512, 512
          %1696 = vsyncadd %s1687, %s1695
          %s1697 = smul.addr %s26, 4
          %s1698 = sadd.s32 %s27, %s1697
          %s1699 = smul.addr %s1698, 128
          %s1700 = scalar_lea.hbm %s8, %s1699
          %s1701 = sshll.u32 %s1690, 4
          %s1702 = int_to_ptr.vmem [resolvable:$true] %s1701
          %1707 = dma.vmem_to_hbm [thread:$0]  %s1702, 512, %s1700, %s1687, 128, 128, 8
        $region56: #{local_aggregator_forward.3} parent=51 // pred_fallthru
          _
      $region52: #{local_aggregator_forward.3} parent=5 // pred_fallthru
        _
      %p1708 = scmp.le.s32.totalorder 2, %s17
      // Predicated region
      $region57: #{local_aggregator_forward.3} parent=5 // pred_check
        %p1709 = pneg %p1708
      $region58: #{local_aggregator_forward.3} parent=5 // pred_check_branch
        %1711 = sbr.rel (%p1709) target = $region60
      $region59: #{local_aggregator_forward.3} parent=5 // pred_region
        %s1712 = ssub.s32 %s17, 2
        // Predicated region
        $region61: #{local_aggregator_forward.3} parent=59 // pred_check
          %p1713 = pneg %p242
        $region62: #{local_aggregator_forward.3} parent=59 // pred_check_branch
          %1715 = sbr.rel (%p1713) target = $region64
        $region63: #{local_aggregator_forward.3} parent=59 // pred_region
          %s1716 = sand.u32 %s227, 1
          %s1717 = scalar_lea.sflag [#allocation3], %s1716
          %s1718 = sand.u32 %s227, 1
          %s1719 = smul.addr %s1718, 32
          %s1720 = scalar_lea.vmem [#allocation2], %s1719
          %1721 = dma.done %s1717, 512
        $region64: #{local_aggregator_forward.3} parent=59 // pred_fallthru
          _
      $region60: #{local_aggregator_forward.3} parent=5 // pred_fallthru
        _
    $region6: #{local_aggregator_forward.3} parent=1 // loop_footer
      %s21 = sadd.s32 1, %s17
    $region7: #{local_aggregator_forward.3} parent=1 // loop_footer_branch
      %16 = sbr.rel target = $region3
    $region8: #{local_aggregator_forward.3} parent=1 // loop_exit
      _
    %1722 = vsyncpa [#allocation3], 1
    %s1723 = scalar_lea.sflag [#allocation3], 1
    %1724 = vsyncpa %s1723, 1

</llo_original>
